<compile_context>
chip_gen: v7x
topology: tpu7x:2x2x1
jax: 0.10.0
libtpu: 0.0.40
codegen_flags: <defaults>
</compile_context>

<pallas_src>
import numpy as np
import jax
import jax.numpy as jnp
from jax.experimental import pallas as pl
from jax.experimental.pallas import tpu as pltpu

# Geometry implied by the PyTorch module (classifier expects hidden*14*14).
H = W = 28
HP = WP = 30                 # spatial size after padding=1
NW = 840                     # working width per image: 28 rows * 30 cols (2 wrap cols masked)
NPADW = 904                  # flattened padded plane (900) + 4 zero lanes (max im2col read = 901)
NPW = 808                    # pool-base span: covers q = 60*i + 2*j (max index 806)
PH = PW = 14                 # pooled spatial
BT_MAX = 8                   # batch-tile size for large batches


def fused_kernel(x_ref, w1_ref, b1_ref, w2_ref, b2_ref, mask_ref, wl_ref, bl_ref,
                 o_ref, im1_ref, pad2_ref, im2_ref, pm_ref):
    # x_ref:    (BT, C_in, 904)   flattened zero-padded input planes
    # w1_ref:   (HU, 9*C_in)      conv1 im2col weights, col = (ky*3+kx)*C_in + c
    # b1_ref:   (HU, 1)
    # w2_ref:   (HU, 9*HU)        conv2 im2col weights
    # b2_ref:   (HU, 1)
    # mask_ref: (1, BT*840)       zeroes the wrap/tail columns of each padded row
    # wl_ref:   (808, HU*OUT)     block-diagonal linear weights with the stride-2
    #                             pool-base selection folded in (zeros elsewhere)
    # bl_ref:   (1, OUT)
    # o_ref:    (BT, OUT)         logits
    # im1_ref:  (9*C_in, BT*840)  VMEM scratch: batched conv1 im2col stack
    # pad2_ref: (HU, BT*904)      VMEM scratch: re-padded conv1 output planes
    # im2_ref:  (9*HU, BT*840)    VMEM scratch: batched conv2 im2col stack
    # pm_ref:   (BT*HU, 808)      VMEM scratch: pooled planes, row = bi*HU + c
    bt = o_ref.shape[0]
    c_in = x_ref.shape[1]
    hu = pad2_ref.shape[0]
    out_dim = o_ref.shape[1]

    # ---- conv1: batched im2col stack + ONE MXU matmul, bias + ReLU + wrap mask ----
    for bi in range(bt):
        for k in range(9):
            s = (k // 3) * WP + (k % 3)
            im1_ref[k * c_in:(k + 1) * c_in, bi * NW:(bi + 1) * NW] = x_ref[bi, :, s:s + NW]
    h1 = jnp.dot(w1_ref[...], im1_ref[...], preferred_element_type=jnp.float32)
    h1 = jnp.maximum(h1 + b1_ref[...], 0.0) * mask_ref[...]          # (HU, BT*840)

    # ---- re-pad conv1 output into per-image flat 30x30 planes (borders zeroed) ----
    for bi in range(bt):
        base = bi * NPADW
        pad2_ref[:, base:base + WP + 1] = jnp.zeros((hu, WP + 1), jnp.float32)
        pad2_ref[:, base + WP + 1 + NW:base + NPADW] = \
            jnp.zeros((hu, NPADW - (WP + 1 + NW)), jnp.float32)
        pad2_ref[:, base + WP + 1:base + WP + 1 + NW] = h1[:, bi * NW:(bi + 1) * NW]

    # ---- conv2: batched im2col stack + ONE MXU matmul, bias + ReLU ----
    for bi in range(bt):
        for k in range(9):
            s = (k // 3) * WP + (k % 3)
            im2_ref[k * hu:(k + 1) * hu, bi * NW:(bi + 1) * NW] = \
                pad2_ref[:, bi * NPADW + s:bi * NPADW + s + NW]
    h2 = jnp.dot(w2_ref[...], im2_ref[...], preferred_element_type=jnp.float32)
    h2 = jnp.maximum(h2 + b2_ref[...], 0.0)                          # (HU, BT*840)

    # ---- 2x2/stride-2 max pool: 4-way shifted max per image.  Only the 196
    #      stride-2 base positions q = 60*i + 2*j carry nonzero linear weights,
    #      so garbage at non-base / wrap positions is harmless. ----
    for bi in range(bt):
        seg = h2[:, bi * NW:(bi + 1) * NW]                           # (HU, 840)
        cm = jnp.maximum(
            jnp.maximum(seg[:, 0:NPW], seg[:, 1:1 + NPW]),
            jnp.maximum(seg[:, WP:WP + NPW], seg[:, WP + 1:WP + 1 + NPW]))
        pm_ref[bi * hu:(bi + 1) * hu, :] = cm

    # ---- fused Linear: ONE batched block-diagonal matmul, then gather the
    #      per-channel diagonal blocks per image and add the bias ----
    res = jnp.dot(pm_ref[...], wl_ref[...], preferred_element_type=jnp.float32)  # (BT*HU, HU*OUT)
    for bi in range(bt):
        blk = res[bi * hu:(bi + 1) * hu, :]                          # (HU, HU*OUT)
        acc = bl_ref[...]                                            # (1, OUT)
        for c in range(hu):
            acc = acc + blk[c:c + 1, c * out_dim:(c + 1) * out_dim]
        o_ref[bi:bi + 1, :] = acc


def fashion_mnist_forward(x, params):
    B, c_in, h, w = x.shape
    assert (h, w) == (H, W), "classifier geometry requires 28x28 input"
    hu = params["b1"].shape[0]
    out_dim = params["bl"].shape[0]

    # batch tile: whole batch in one grid step when small, else tiles of 8
    bt = B if B <= BT_MAX else BT_MAX
    nb = -(-B // bt)
    bpad = nb * bt

    xf = x.astype(jnp.float32)
    if bpad != B:
        xf = jnp.pad(xf, ((0, bpad - B), (0, 0), (0, 0), (0, 0)))

    # --- layout glue only: spatial zero-pad, flatten, zero tail to 904 lanes ---
    xpad = jnp.pad(xf, ((0, 0), (0, 0), (1, 1), (1, 1)))
    x_flat = xpad.reshape(bpad, c_in, HP * WP)
    x_flat = jnp.pad(x_flat, ((0, 0), (0, 0), (0, NPADW - HP * WP)))

    # conv weights in im2col layout: (O,C,3,3) -> (O, 9*C), col = (ky*3+kx)*C + c
    w1_r = params["w1"].transpose(0, 2, 3, 1).reshape(hu, 9 * c_in)
    w2_r = params["w2"].transpose(0, 2, 3, 1).reshape(hu, 9 * hu)
    b1_r = params["b1"].reshape(hu, 1)
    b2_r = params["b2"].reshape(hu, 1)

    # wrap/tail-column mask over the working width, tiled across the batch tile
    mask1 = ((np.arange(NW) % WP) < W).astype(np.float32)
    mask = jnp.asarray(np.tile(mask1, bt)).reshape(1, bt * NW)

    # Linear weights with the max-pool stride-2 selection folded in, laid out
    # block-diagonally over channels:
    #   wl_big[q, c*OUT + o] = wl[o, c*196 + i*14 + j]  iff  q == 60*i + 2*j, else 0
    q_idx = (60 * np.arange(PH)[:, None] + 2 * np.arange(PW)[None, :]).reshape(-1)
    wl3 = params["wl"].reshape(out_dim, hu, PH * PW).transpose(1, 2, 0)   # (C, 196, O)
    wl_fold = jnp.zeros((hu, NPW, out_dim), jnp.float32).at[:, q_idx, :].set(wl3)
    wl_big = wl_fold.transpose(1, 0, 2).reshape(NPW, hu * out_dim)        # (808, HU*OUT)
    bl_r = params["bl"].reshape(1, out_dim)

    out = pl.pallas_call(
        fused_kernel,
        out_shape=jax.ShapeDtypeStruct((bpad, out_dim), jnp.float32),
        grid_spec=pltpu.PrefetchScalarGridSpec(
            num_scalar_prefetch=0,
            grid=(bpad // bt,),
            in_specs=[
                pl.BlockSpec((bt, c_in, NPADW), lambda b: (b, 0, 0)),
                pl.BlockSpec((hu, 9 * c_in), lambda b: (0, 0)),
                pl.BlockSpec((hu, 1), lambda b: (0, 0)),
                pl.BlockSpec((hu, 9 * hu), lambda b: (0, 0)),
                pl.BlockSpec((hu, 1), lambda b: (0, 0)),
                pl.BlockSpec((1, bt * NW), lambda b: (0, 0)),
                pl.BlockSpec((NPW, hu * out_dim), lambda b: (0, 0)),
                pl.BlockSpec((1, out_dim), lambda b: (0, 0)),
            ],
            out_specs=pl.BlockSpec((bt, out_dim), lambda b: (b, 0)),
            scratch_shapes=[
                pltpu.VMEM((9 * c_in, bt * NW), jnp.float32),
                pltpu.VMEM((hu, bt * NPADW), jnp.float32),
                pltpu.VMEM((9 * hu, bt * NW), jnp.float32),
                pltpu.VMEM((bt * hu, NPW), jnp.float32),
            ],
        ),
        compiler_params=pltpu.CompilerParams(
            dimension_semantics=("parallel",)),
    )(x_flat, w1_r, b1_r, w2_r, b2_r, mask, wl_big, bl_r)
    return out[:B]


def init_params(key, c_in, hu, out_dim):
    # Deterministic PyTorch-style uniform(-1/sqrt(fan_in), 1/sqrt(fan_in)) init.
    ks = jax.random.split(key, 6)

    def u(k, shape, fan_in):
        bound = 1.0 / np.sqrt(fan_in)
        return jax.random.uniform(k, shape, jnp.float32, -bound, bound)

    return {
        "w1": u(ks[0], (hu, c_in, 3, 3), c_in * 9),
        "b1": u(ks[1], (hu,), c_in * 9),
        "w2": u(ks[2], (hu, hu, 3, 3), hu * 9),
        "b2": u(ks[3], (hu,), hu * 9),
        "wl": u(ks[4], (out_dim, hu * PH * PW), hu * PH * PW),
        "bl": u(ks[5], (out_dim,), hu * PH * PW),
    }


def reference_forward(x, params):
    # Pure-JAX reference reproducing the PyTorch forward.
    y = jax.lax.conv_general_dilated(
        x, params["w1"], (1, 1), ((1, 1), (1, 1)),
        dimension_numbers=("NCHW", "OIHW", "NCHW"))
    y = jax.nn.relu(y + params["b1"][None, :, None, None])
    y = jax.lax.conv_general_dilated(
        y, params["w2"], (1, 1), ((1, 1), (1, 1)),
        dimension_numbers=("NCHW", "OIHW", "NCHW"))
    y = jax.nn.relu(y + params["b2"][None, :, None, None])
    y = jax.lax.reduce_window(y, -jnp.inf, jax.lax.max,
                              (1, 1, 2, 2), (1, 1, 2, 2), "VALID")
    y = y.reshape(y.shape[0], -1)
    return y @ params["wl"].T + params["bl"][None, :]


if __name__ == "__main__":
    key = jax.random.PRNGKey(0)
    kx, kp = jax.random.split(key)
    B, C_IN, HU, OUT = 2, 1, 8, 10   # input_shape=1, hidden_units=8, output_shape=10

    x = jax.random.normal(kx, (B, C_IN, H, W), jnp.float32)
    params = init_params(kp, C_IN, HU, OUT)

    out = fashion_mnist_forward(x, params)
    out = jax.block_until_ready(out)

    ref = reference_forward(x, params)
    if not np.allclose(np.asarray(out), np.asarray(ref), rtol=2e-2, atol=2e-2):
        raise AssertionError("Pallas output does not match reference")

    print("KERNEL_OK")
</pallas_src>

<mosaic_0001>
module attributes {stable_mosaic.version = 11 : i64} {
  func.func @fused_kernel(%arg0: i32, %arg1: memref<2x1x904xf32, #tpu.memory_space<vmem>>, %arg2: memref<8x9xf32, #tpu.memory_space<vmem>>, %arg3: memref<8x1xf32, #tpu.memory_space<vmem>>, %arg4: memref<8x72xf32, #tpu.memory_space<vmem>>, %arg5: memref<8x1xf32, #tpu.memory_space<vmem>>, %arg6: memref<1x1680xf32, #tpu.memory_space<vmem>>, %arg7: memref<808x80xf32, #tpu.memory_space<vmem>>, %arg8: memref<1x10xf32, #tpu.memory_space<vmem>>, %arg9: memref<2x10xf32, #tpu.memory_space<vmem>>, %arg10: memref<9x1680xf32, #tpu.memory_space<vmem>>, %arg11: memref<8x1808xf32, #tpu.memory_space<vmem>>, %arg12: memref<72x1680xf32, #tpu.memory_space<vmem>>, %arg13: memref<16x808xf32, #tpu.memory_space<vmem>>) attributes {dimension_semantics = [#tpu.dimension_semantics<parallel>], iteration_bounds = array<i64: 1>, scalar_prefetch = 0 : i64, scratch_operands = 4 : i64, tpu.core_type = #tpu.core_type<tc>, window_params = [{transform_indices = @transform_0, window_bounds = array<i64: 2, 1, 904>}, {pipeline_mode = #tpu.pipeline_mode<synchronous>, transform_indices = @transform_1, window_bounds = array<i64: 8, 9>}, {pipeline_mode = #tpu.pipeline_mode<synchronous>, transform_indices = @transform_2, window_bounds = array<i64: 8, 1>}, {pipeline_mode = #tpu.pipeline_mode<synchronous>, transform_indices = @transform_3, window_bounds = array<i64: 8, 72>}, {pipeline_mode = #tpu.pipeline_mode<synchronous>, transform_indices = @transform_4, window_bounds = array<i64: 8, 1>}, {pipeline_mode = #tpu.pipeline_mode<synchronous>, transform_indices = @transform_5, window_bounds = array<i64: 1, 1680>}, {pipeline_mode = #tpu.pipeline_mode<synchronous>, transform_indices = @transform_6, window_bounds = array<i64: 808, 80>}, {pipeline_mode = #tpu.pipeline_mode<synchronous>, transform_indices = @transform_7, window_bounds = array<i64: 1, 10>}, {transform_indices = @transform_8, window_bounds = array<i64: 2, 10>}]} {
    %c0 = arith.constant 0 : index
    %c0_0 = arith.constant 0 : index
    %c0_1 = arith.constant 0 : index
    %0 = vector.load %arg1[%c0, %c0_0, %c0_1] : memref<2x1x904xf32, #tpu.memory_space<vmem>>, vector<1x1x840xf32>
    %1 = vector.shape_cast %0 : vector<1x1x840xf32> to vector<1x840xf32>
    %c0_2 = arith.constant 0 : index
    %c0_3 = arith.constant 0 : index
    %2 = vector.load %arg10[%c0_2, %c0_3] : memref<9x1680xf32, #tpu.memory_space<vmem>>, vector<1x840xf32>
    tpu.vector_store %arg10[%c0_2, %c0_3], %1 {strides = array<i32>} : memref<9x1680xf32, #tpu.memory_space<vmem>>, vector<1x840xf32>,
    %c0_4 = arith.constant 0 : index
    %c0_5 = arith.constant 0 : index
    %c1 = arith.constant 1 : index
    %3 = vector.load %arg1[%c0_4, %c0_5, %c1] : memref<2x1x904xf32, #tpu.memory_space<vmem>>, vector<1x1x840xf32>
    %4 = vector.shape_cast %3 : vector<1x1x840xf32> to vector<1x840xf32>
    %c1_6 = arith.constant 1 : index
    %c0_7 = arith.constant 0 : index
    %5 = vector.load %arg10[%c1_6, %c0_7] : memref<9x1680xf32, #tpu.memory_space<vmem>>, vector<1x840xf32>
    tpu.vector_store %arg10[%c1_6, %c0_7], %4 {strides = array<i32>} : memref<9x1680xf32, #tpu.memory_space<vmem>>, vector<1x840xf32>,
    %c0_8 = arith.constant 0 : index
    %c0_9 = arith.constant 0 : index
    %c2 = arith.constant 2 : index
    %6 = vector.load %arg1[%c0_8, %c0_9, %c2] : memref<2x1x904xf32, #tpu.memory_space<vmem>>, vector<1x1x840xf32>
    %7 = vector.shape_cast %6 : vector<1x1x840xf32> to vector<1x840xf32>
    %c2_10 = arith.constant 2 : index
    %c0_11 = arith.constant 0 : index
    %8 = vector.load %arg10[%c2_10, %c0_11] : memref<9x1680xf32, #tpu.memory_space<vmem>>, vector<1x840xf32>
    tpu.vector_store %arg10[%c2_10, %c0_11], %7 {strides = array<i32>} : memref<9x1680xf32, #tpu.memory_space<vmem>>, vector<1x840xf32>,
    %c0_12 = arith.constant 0 : index
    %c0_13 = arith.constant 0 : index
    %c30 = arith.constant 30 : index
    %9 = vector.load %arg1[%c0_12, %c0_13, %c30] : memref<2x1x904xf32, #tpu.memory_space<vmem>>, vector<1x1x840xf32>
    %10 = vector.shape_cast %9 : vector<1x1x840xf32> to vector<1x840xf32>
    %c3 = arith.constant 3 : index
    %c0_14 = arith.constant 0 : index
    %11 = vector.load %arg10[%c3, %c0_14] : memref<9x1680xf32, #tpu.memory_space<vmem>>, vector<1x840xf32>
    tpu.vector_store %arg10[%c3, %c0_14], %10 {strides = array<i32>} : memref<9x1680xf32, #tpu.memory_space<vmem>>, vector<1x840xf32>,
    %c0_15 = arith.constant 0 : index
    %c0_16 = arith.constant 0 : index
    %c31 = arith.constant 31 : index
    %12 = vector.load %arg1[%c0_15, %c0_16, %c31] : memref<2x1x904xf32, #tpu.memory_space<vmem>>, vector<1x1x840xf32>
    %13 = vector.shape_cast %12 : vector<1x1x840xf32> to vector<1x840xf32>
    %c4 = arith.constant 4 : index
    %c0_17 = arith.constant 0 : index
    %14 = vector.load %arg10[%c4, %c0_17] : memref<9x1680xf32, #tpu.memory_space<vmem>>, vector<1x840xf32>
    tpu.vector_store %arg10[%c4, %c0_17], %13 {strides = array<i32>} : memref<9x1680xf32, #tpu.memory_space<vmem>>, vector<1x840xf32>,
    %c0_18 = arith.constant 0 : index
    %c0_19 = arith.constant 0 : index
    %c32 = arith.constant 32 : index
    %15 = vector.load %arg1[%c0_18, %c0_19, %c32] : memref<2x1x904xf32, #tpu.memory_space<vmem>>, vector<1x1x840xf32>
    %16 = vector.shape_cast %15 : vector<1x1x840xf32> to vector<1x840xf32>
    %c5 = arith.constant 5 : index
    %c0_20 = arith.constant 0 : index
    %17 = vector.load %arg10[%c5, %c0_20] : memref<9x1680xf32, #tpu.memory_space<vmem>>, vector<1x840xf32>
    tpu.vector_store %arg10[%c5, %c0_20], %16 {strides = array<i32>} : memref<9x1680xf32, #tpu.memory_space<vmem>>, vector<1x840xf32>,
    %c0_21 = arith.constant 0 : index
    %c0_22 = arith.constant 0 : index
    %c60 = arith.constant 60 : index
    %18 = vector.load %arg1[%c0_21, %c0_22, %c60] : memref<2x1x904xf32, #tpu.memory_space<vmem>>, vector<1x1x840xf32>
    %19 = vector.shape_cast %18 : vector<1x1x840xf32> to vector<1x840xf32>
    %c6 = arith.constant 6 : index
    %c0_23 = arith.constant 0 : index
    %20 = vector.load %arg10[%c6, %c0_23] : memref<9x1680xf32, #tpu.memory_space<vmem>>, vector<1x840xf32>
    tpu.vector_store %arg10[%c6, %c0_23], %19 {strides = array<i32>} : memref<9x1680xf32, #tpu.memory_space<vmem>>, vector<1x840xf32>,
    %c0_24 = arith.constant 0 : index
    %c0_25 = arith.constant 0 : index
    %c61 = arith.constant 61 : index
    %21 = vector.load %arg1[%c0_24, %c0_25, %c61] : memref<2x1x904xf32, #tpu.memory_space<vmem>>, vector<1x1x840xf32>
    %22 = vector.shape_cast %21 : vector<1x1x840xf32> to vector<1x840xf32>
    %c7 = arith.constant 7 : index
    %c0_26 = arith.constant 0 : index
    %23 = vector.load %arg10[%c7, %c0_26] : memref<9x1680xf32, #tpu.memory_space<vmem>>, vector<1x840xf32>
    tpu.vector_store %arg10[%c7, %c0_26], %22 {strides = array<i32>} : memref<9x1680xf32, #tpu.memory_space<vmem>>, vector<1x840xf32>,
    %c0_27 = arith.constant 0 : index
    %c0_28 = arith.constant 0 : index
    %c62 = arith.constant 62 : index
    %24 = vector.load %arg1[%c0_27, %c0_28, %c62] : memref<2x1x904xf32, #tpu.memory_space<vmem>>, vector<1x1x840xf32>
    %25 = vector.shape_cast %24 : vector<1x1x840xf32> to vector<1x840xf32>
    %c8 = arith.constant 8 : index
    %c0_29 = arith.constant 0 : index
    %26 = vector.load %arg10[%c8, %c0_29] : memref<9x1680xf32, #tpu.memory_space<vmem>>, vector<1x840xf32>
    tpu.vector_store %arg10[%c8, %c0_29], %25 {strides = array<i32>} : memref<9x1680xf32, #tpu.memory_space<vmem>>, vector<1x840xf32>,
    %c1_30 = arith.constant 1 : index
    %c0_31 = arith.constant 0 : index
    %c0_32 = arith.constant 0 : index
    %27 = vector.load %arg1[%c1_30, %c0_31, %c0_32] : memref<2x1x904xf32, #tpu.memory_space<vmem>>, vector<1x1x840xf32>
    %28 = vector.shape_cast %27 : vector<1x1x840xf32> to vector<1x840xf32>
    %c0_33 = arith.constant 0 : index
    %c840 = arith.constant 840 : index
    %29 = vector.load %arg10[%c0_33, %c840] : memref<9x1680xf32, #tpu.memory_space<vmem>>, vector<1x840xf32>
    tpu.vector_store %arg10[%c0_33, %c840], %28 {strides = array<i32>} : memref<9x1680xf32, #tpu.memory_space<vmem>>, vector<1x840xf32>,
    %c1_34 = arith.constant 1 : index
    %c0_35 = arith.constant 0 : index
    %c1_36 = arith.constant 1 : index
    %30 = vector.load %arg1[%c1_34, %c0_35, %c1_36] : memref<2x1x904xf32, #tpu.memory_space<vmem>>, vector<1x1x840xf32>
    %31 = vector.shape_cast %30 : vector<1x1x840xf32> to vector<1x840xf32>
    %c1_37 = arith.constant 1 : index
    %c840_38 = arith.constant 840 : index
    %32 = vector.load %arg10[%c1_37, %c840_38] : memref<9x1680xf32, #tpu.memory_space<vmem>>, vector<1x840xf32>
    tpu.vector_store %arg10[%c1_37, %c840_38], %31 {strides = array<i32>} : memref<9x1680xf32, #tpu.memory_space<vmem>>, vector<1x840xf32>,
    %c1_39 = arith.constant 1 : index
    %c0_40 = arith.constant 0 : index
    %c2_41 = arith.constant 2 : index
    %33 = vector.load %arg1[%c1_39, %c0_40, %c2_41] : memref<2x1x904xf32, #tpu.memory_space<vmem>>, vector<1x1x840xf32>
    %34 = vector.shape_cast %33 : vector<1x1x840xf32> to vector<1x840xf32>
    %c2_42 = arith.constant 2 : index
    %c840_43 = arith.constant 840 : index
    %35 = vector.load %arg10[%c2_42, %c840_43] : memref<9x1680xf32, #tpu.memory_space<vmem>>, vector<1x840xf32>
    tpu.vector_store %arg10[%c2_42, %c840_43], %34 {strides = array<i32>} : memref<9x1680xf32, #tpu.memory_space<vmem>>, vector<1x840xf32>,
    %c1_44 = arith.constant 1 : index
    %c0_45 = arith.constant 0 : index
    %c30_46 = arith.constant 30 : index
    %36 = vector.load %arg1[%c1_44, %c0_45, %c30_46] : memref<2x1x904xf32, #tpu.memory_space<vmem>>, vector<1x1x840xf32>
    %37 = vector.shape_cast %36 : vector<1x1x840xf32> to vector<1x840xf32>
    %c3_47 = arith.constant 3 : index
    %c840_48 = arith.constant 840 : index
    %38 = vector.load %arg10[%c3_47, %c840_48] : memref<9x1680xf32, #tpu.memory_space<vmem>>, vector<1x840xf32>
    tpu.vector_store %arg10[%c3_47, %c840_48], %37 {strides = array<i32>} : memref<9x1680xf32, #tpu.memory_space<vmem>>, vector<1x840xf32>,
    %c1_49 = arith.constant 1 : index
    %c0_50 = arith.constant 0 : index
    %c31_51 = arith.constant 31 : index
    %39 = vector.load %arg1[%c1_49, %c0_50, %c31_51] : memref<2x1x904xf32, #tpu.memory_space<vmem>>, vector<1x1x840xf32>
    %40 = vector.shape_cast %39 : vector<1x1x840xf32> to vector<1x840xf32>
    %c4_52 = arith.constant 4 : index
    %c840_53 = arith.constant 840 : index
    %41 = vector.load %arg10[%c4_52, %c840_53] : memref<9x1680xf32, #tpu.memory_space<vmem>>, vector<1x840xf32>
    tpu.vector_store %arg10[%c4_52, %c840_53], %40 {strides = array<i32>} : memref<9x1680xf32, #tpu.memory_space<vmem>>, vector<1x840xf32>,
    %c1_54 = arith.constant 1 : index
    %c0_55 = arith.constant 0 : index
    %c32_56 = arith.constant 32 : index
    %42 = vector.load %arg1[%c1_54, %c0_55, %c32_56] : memref<2x1x904xf32, #tpu.memory_space<vmem>>, vector<1x1x840xf32>
    %43 = vector.shape_cast %42 : vector<1x1x840xf32> to vector<1x840xf32>
    %c5_57 = arith.constant 5 : index
    %c840_58 = arith.constant 840 : index
    %44 = vector.load %arg10[%c5_57, %c840_58] : memref<9x1680xf32, #tpu.memory_space<vmem>>, vector<1x840xf32>
    tpu.vector_store %arg10[%c5_57, %c840_58], %43 {strides = array<i32>} : memref<9x1680xf32, #tpu.memory_space<vmem>>, vector<1x840xf32>,
    %c1_59 = arith.constant 1 : index
    %c0_60 = arith.constant 0 : index
    %c60_61 = arith.constant 60 : index
    %45 = vector.load %arg1[%c1_59, %c0_60, %c60_61] : memref<2x1x904xf32, #tpu.memory_space<vmem>>, vector<1x1x840xf32>
    %46 = vector.shape_cast %45 : vector<1x1x840xf32> to vector<1x840xf32>
    %c6_62 = arith.constant 6 : index
    %c840_63 = arith.constant 840 : index
    %47 = vector.load %arg10[%c6_62, %c840_63] : memref<9x1680xf32, #tpu.memory_space<vmem>>, vector<1x840xf32>
    tpu.vector_store %arg10[%c6_62, %c840_63], %46 {strides = array<i32>} : memref<9x1680xf32, #tpu.memory_space<vmem>>, vector<1x840xf32>,
    %c1_64 = arith.constant 1 : index
    %c0_65 = arith.constant 0 : index
    %c61_66 = arith.constant 61 : index
    %48 = vector.load %arg1[%c1_64, %c0_65, %c61_66] : memref<2x1x904xf32, #tpu.memory_space<vmem>>, vector<1x1x840xf32>
    %49 = vector.shape_cast %48 : vector<1x1x840xf32> to vector<1x840xf32>
    %c7_67 = arith.constant 7 : index
    %c840_68 = arith.constant 840 : index
    %50 = vector.load %arg10[%c7_67, %c840_68] : memref<9x1680xf32, #tpu.memory_space<vmem>>, vector<1x840xf32>
    tpu.vector_store %arg10[%c7_67, %c840_68], %49 {strides = array<i32>} : memref<9x1680xf32, #tpu.memory_space<vmem>>, vector<1x840xf32>,
    %c1_69 = arith.constant 1 : index
    %c0_70 = arith.constant 0 : index
    %c62_71 = arith.constant 62 : index
    %51 = vector.load %arg1[%c1_69, %c0_70, %c62_71] : memref<2x1x904xf32, #tpu.memory_space<vmem>>, vector<1x1x840xf32>
    %52 = vector.shape_cast %51 : vector<1x1x840xf32> to vector<1x840xf32>
    %c8_72 = arith.constant 8 : index
    %c840_73 = arith.constant 840 : index
    %53 = vector.load %arg10[%c8_72, %c840_73] : memref<9x1680xf32, #tpu.memory_space<vmem>>, vector<1x840xf32>
    tpu.vector_store %arg10[%c8_72, %c840_73], %52 {strides = array<i32>} : memref<9x1680xf32, #tpu.memory_space<vmem>>, vector<1x840xf32>,
    %c0_74 = arith.constant 0 : index
    %c0_75 = arith.constant 0 : index
    %54 = vector.load %arg2[%c0_74, %c0_75] : memref<8x9xf32, #tpu.memory_space<vmem>>, vector<8x9xf32>
    %c0_76 = arith.constant 0 : index
    %c0_77 = arith.constant 0 : index
    %55 = vector.load %arg10[%c0_76, %c0_77] : memref<9x1680xf32, #tpu.memory_space<vmem>>, vector<9x1680xf32>
    %cst = arith.constant dense<0.000000e+00> : vector<8x1680xf32>
    %56 = tpu.matmul %54, %55, %cst {dimension_numbers = #tpu.dot_dimension_numbers<[1], [0], [0], [1], [0, 0, 1, 1], [], []>} : vector<8x9xf32>, vector<9x1680xf32>, vector<8x1680xf32> -> vector<8x1680xf32>
    %c0_78 = arith.constant 0 : index
    %c0_79 = arith.constant 0 : index
    %57 = vector.load %arg3[%c0_78, %c0_79] : memref<8x1xf32, #tpu.memory_space<vmem>>, vector<8x1xf32>
    %58 = vector.broadcast %57 : vector<8x1xf32> to vector<8x1680xf32>
    %59 = arith.addf %56, %58 : vector<8x1680xf32>
    %cst_80 = arith.constant 0.000000e+00 : f32
    %60 = vector.broadcast %cst_80 : f32 to vector<8x1680xf32>
    %61 = arith.maximumf %59, %60 : vector<8x1680xf32>
    %c0_81 = arith.constant 0 : index
    %c0_82 = arith.constant 0 : index
    %62 = vector.load %arg6[%c0_81, %c0_82] : memref<1x1680xf32, #tpu.memory_space<vmem>>, vector<1x1680xf32>
    %63 = vector.broadcast %62 : vector<1x1680xf32> to vector<8x1680xf32>
    %64 = arith.mulf %61, %63 : vector<8x1680xf32>
    %cst_83 = arith.constant 0.000000e+00 : f32
    %65 = vector.broadcast %cst_83 : f32 to vector<8x31xf32>
    %c0_84 = arith.constant 0 : index
    %c0_85 = arith.constant 0 : index
    %66 = vector.load %arg11[%c0_84, %c0_85] : memref<8x1808xf32, #tpu.memory_space<vmem>>, vector<8x31xf32>
    tpu.vector_store %arg11[%c0_84, %c0_85], %65 {strides = array<i32>} : memref<8x1808xf32, #tpu.memory_space<vmem>>, vector<8x31xf32>,
    %cst_86 = arith.constant 0.000000e+00 : f32
    %67 = vector.broadcast %cst_86 : f32 to vector<8x33xf32>
    %c0_87 = arith.constant 0 : index
    %c871 = arith.constant 871 : index
    %68 = vector.load %arg11[%c0_87, %c871] : memref<8x1808xf32, #tpu.memory_space<vmem>>, vector<8x33xf32>
    tpu.vector_store %arg11[%c0_87, %c871], %67 {strides = array<i32>} : memref<8x1808xf32, #tpu.memory_space<vmem>>, vector<8x33xf32>,
    %69 = vector.extract_strided_slice %64 {offsets = [0, 0], sizes = [8, 840], strides = [1, 1]} : vector<8x1680xf32> to vector<8x840xf32>
    %c0_88 = arith.constant 0 : index
    %c31_89 = arith.constant 31 : index
    %70 = vector.load %arg11[%c0_88, %c31_89] : memref<8x1808xf32, #tpu.memory_space<vmem>>, vector<8x840xf32>
    tpu.vector_store %arg11[%c0_88, %c31_89], %69 {strides = array<i32>} : memref<8x1808xf32, #tpu.memory_space<vmem>>, vector<8x840xf32>,
    %cst_90 = arith.constant 0.000000e+00 : f32
    %71 = vector.broadcast %cst_90 : f32 to vector<8x31xf32>
    %c0_91 = arith.constant 0 : index
    %c904 = arith.constant 904 : index
    %72 = vector.load %arg11[%c0_91, %c904] : memref<8x1808xf32, #tpu.memory_space<vmem>>, vector<8x31xf32>
    tpu.vector_store %arg11[%c0_91, %c904], %71 {strides = array<i32>} : memref<8x1808xf32, #tpu.memory_space<vmem>>, vector<8x31xf32>,
    %cst_92 = arith.constant 0.000000e+00 : f32
    %73 = vector.broadcast %cst_92 : f32 to vector<8x33xf32>
    %c0_93 = arith.constant 0 : index
    %c1775 = arith.constant 1775 : index
    %74 = vector.load %arg11[%c0_93, %c1775] : memref<8x1808xf32, #tpu.memory_space<vmem>>, vector<8x33xf32>
    tpu.vector_store %arg11[%c0_93, %c1775], %73 {strides = array<i32>} : memref<8x1808xf32, #tpu.memory_space<vmem>>, vector<8x33xf32>,
    %75 = vector.extract_strided_slice %64 {offsets = [0, 840], sizes = [8, 840], strides = [1, 1]} : vector<8x1680xf32> to vector<8x840xf32>
    %c0_94 = arith.constant 0 : index
    %c935 = arith.constant 935 : index
    %76 = vector.load %arg11[%c0_94, %c935] : memref<8x1808xf32, #tpu.memory_space<vmem>>, vector<8x840xf32>
    tpu.vector_store %arg11[%c0_94, %c935], %75 {strides = array<i32>} : memref<8x1808xf32, #tpu.memory_space<vmem>>, vector<8x840xf32>,
    %c0_95 = arith.constant 0 : index
    %c0_96 = arith.constant 0 : index
    %77 = vector.load %arg11[%c0_95, %c0_96] : memref<8x1808xf32, #tpu.memory_space<vmem>>, vector<8x840xf32>
    %c0_97 = arith.constant 0 : index
    %c0_98 = arith.constant 0 : index
    %78 = vector.load %arg12[%c0_97, %c0_98] : memref<72x1680xf32, #tpu.memory_space<vmem>>, vector<8x840xf32>
    tpu.vector_store %arg12[%c0_97, %c0_98], %77 {strides = array<i32>} : memref<72x1680xf32, #tpu.memory_space<vmem>>, vector<8x840xf32>,
    %c0_99 = arith.constant 0 : index
    %c1_100 = arith.constant 1 : index
    %79 = vector.load %arg11[%c0_99, %c1_100] : memref<8x1808xf32, #tpu.memory_space<vmem>>, vector<8x840xf32>
    %c8_101 = arith.constant 8 : index
    %c0_102 = arith.constant 0 : index
    %80 = vector.load %arg12[%c8_101, %c0_102] : memref<72x1680xf32, #tpu.memory_space<vmem>>, vector<8x840xf32>
    tpu.vector_store %arg12[%c8_101, %c0_102], %79 {strides = array<i32>} : memref<72x1680xf32, #tpu.memory_space<vmem>>, vector<8x840xf32>,
    %c0_103 = arith.constant 0 : index
    %c2_104 = arith.constant 2 : index
    %81 = vector.load %arg11[%c0_103, %c2_104] : memref<8x1808xf32, #tpu.memory_space<vmem>>, vector<8x840xf32>
    %c16 = arith.constant 16 : index
    %c0_105 = arith.constant 0 : index
    %82 = vector.load %arg12[%c16, %c0_105] : memref<72x1680xf32, #tpu.memory_space<vmem>>, vector<8x840xf32>
    tpu.vector_store %arg12[%c16, %c0_105], %81 {strides = array<i32>} : memref<72x1680xf32, #tpu.memory_space<vmem>>, vector<8x840xf32>,
    %c0_106 = arith.constant 0 : index
    %c30_107 = arith.constant 30 : index
    %83 = vector.load %arg11[%c0_106, %c30_107] : memref<8x1808xf32, #tpu.memory_space<vmem>>, vector<8x840xf32>
    %c24 = arith.constant 24 : index
    %c0_108 = arith.constant 0 : index
    %84 = vector.load %arg12[%c24, %c0_108] : memref<72x1680xf32, #tpu.memory_space<vmem>>, vector<8x840xf32>
    tpu.vector_store %arg12[%c24, %c0_108], %83 {strides = array<i32>} : memref<72x1680xf32, #tpu.memory_space<vmem>>, vector<8x840xf32>,
    %c0_109 = arith.constant 0 : index
    %c31_110 = arith.constant 31 : index
    %85 = vector.load %arg11[%c0_109, %c31_110] : memref<8x1808xf32, #tpu.memory_space<vmem>>, vector<8x840xf32>
    %c32_111 = arith.constant 32 : index
    %c0_112 = arith.constant 0 : index
    %86 = vector.load %arg12[%c32_111, %c0_112] : memref<72x1680xf32, #tpu.memory_space<vmem>>, vector<8x840xf32>
    tpu.vector_store %arg12[%c32_111, %c0_112], %85 {strides = array<i32>} : memref<72x1680xf32, #tpu.memory_space<vmem>>, vector<8x840xf32>,
    %c0_113 = arith.constant 0 : index
    %c32_114 = arith.constant 32 : index
    %87 = vector.load %arg11[%c0_113, %c32_114] : memref<8x1808xf32, #tpu.memory_space<vmem>>, vector<8x840xf32>
    %c40 = arith.constant 40 : index
    %c0_115 = arith.constant 0 : index
    %88 = vector.load %arg12[%c40, %c0_115] : memref<72x1680xf32, #tpu.memory_space<vmem>>, vector<8x840xf32>
    tpu.vector_store %arg12[%c40, %c0_115], %87 {strides = array<i32>} : memref<72x1680xf32, #tpu.memory_space<vmem>>, vector<8x840xf32>,
    %c0_116 = arith.constant 0 : index
    %c60_117 = arith.constant 60 : index
    %89 = vector.load %arg11[%c0_116, %c60_117] : memref<8x1808xf32, #tpu.memory_space<vmem>>, vector<8x840xf32>
    %c48 = arith.constant 48 : index
    %c0_118 = arith.constant 0 : index
    %90 = vector.load %arg12[%c48, %c0_118] : memref<72x1680xf32, #tpu.memory_space<vmem>>, vector<8x840xf32>
    tpu.vector_store %arg12[%c48, %c0_118], %89 {strides = array<i32>} : memref<72x1680xf32, #tpu.memory_space<vmem>>, vector<8x840xf32>,
    %c0_119 = arith.constant 0 : index
    %c61_120 = arith.constant 61 : index
    %91 = vector.load %arg11[%c0_119, %c61_120] : memref<8x1808xf32, #tpu.memory_space<vmem>>, vector<8x840xf32>
    %c56 = arith.constant 56 : index
    %c0_121 = arith.constant 0 : index
    %92 = vector.load %arg12[%c56, %c0_121] : memref<72x1680xf32, #tpu.memory_space<vmem>>, vector<8x840xf32>
    tpu.vector_store %arg12[%c56, %c0_121], %91 {strides = array<i32>} : memref<72x1680xf32, #tpu.memory_space<vmem>>, vector<8x840xf32>,
    %c0_122 = arith.constant 0 : index
    %c62_123 = arith.constant 62 : index
    %93 = vector.load %arg11[%c0_122, %c62_123] : memref<8x1808xf32, #tpu.memory_space<vmem>>, vector<8x840xf32>
    %c64 = arith.constant 64 : index
    %c0_124 = arith.constant 0 : index
    %94 = vector.load %arg12[%c64, %c0_124] : memref<72x1680xf32, #tpu.memory_space<vmem>>, vector<8x840xf32>
    tpu.vector_store %arg12[%c64, %c0_124], %93 {strides = array<i32>} : memref<72x1680xf32, #tpu.memory_space<vmem>>, vector<8x840xf32>,
    %c0_125 = arith.constant 0 : index
    %c904_126 = arith.constant 904 : index
    %95 = vector.load %arg11[%c0_125, %c904_126] : memref<8x1808xf32, #tpu.memory_space<vmem>>, vector<8x840xf32>
    %c0_127 = arith.constant 0 : index
    %c840_128 = arith.constant 840 : index
    %96 = vector.load %arg12[%c0_127, %c840_128] : memref<72x1680xf32, #tpu.memory_space<vmem>>, vector<8x840xf32>
    tpu.vector_store %arg12[%c0_127, %c840_128], %95 {strides = array<i32>} : memref<72x1680xf32, #tpu.memory_space<vmem>>, vector<8x840xf32>,
    %c0_129 = arith.constant 0 : index
    %c905 = arith.constant 905 : index
    %97 = vector.load %arg11[%c0_129, %c905] : memref<8x1808xf32, #tpu.memory_space<vmem>>, vector<8x840xf32>
    %c8_130 = arith.constant 8 : index
    %c840_131 = arith.constant 840 : index
    %98 = vector.load %arg12[%c8_130, %c840_131] : memref<72x1680xf32, #tpu.memory_space<vmem>>, vector<8x840xf32>
    tpu.vector_store %arg12[%c8_130, %c840_131], %97 {strides = array<i32>} : memref<72x1680xf32, #tpu.memory_space<vmem>>, vector<8x840xf32>,
    %c0_132 = arith.constant 0 : index
    %c906 = arith.constant 906 : index
    %99 = vector.load %arg11[%c0_132, %c906] : memref<8x1808xf32, #tpu.memory_space<vmem>>, vector<8x840xf32>
    %c16_133 = arith.constant 16 : index
    %c840_134 = arith.constant 840 : index
    %100 = vector.load %arg12[%c16_133, %c840_134] : memref<72x1680xf32, #tpu.memory_space<vmem>>, vector<8x840xf32>
    tpu.vector_store %arg12[%c16_133, %c840_134], %99 {strides = array<i32>} : memref<72x1680xf32, #tpu.memory_space<vmem>>, vector<8x840xf32>,
    %c0_135 = arith.constant 0 : index
    %c934 = arith.constant 934 : index
    %101 = vector.load %arg11[%c0_135, %c934] : memref<8x1808xf32, #tpu.memory_space<vmem>>, vector<8x840xf32>
    %c24_136 = arith.constant 24 : index
    %c840_137 = arith.constant 840 : index
    %102 = vector.load %arg12[%c24_136, %c840_137] : memref<72x1680xf32, #tpu.memory_space<vmem>>, vector<8x840xf32>
    tpu.vector_store %arg12[%c24_136, %c840_137], %101 {strides = array<i32>} : memref<72x1680xf32, #tpu.memory_space<vmem>>, vector<8x840xf32>,
    %c0_138 = arith.constant 0 : index
    %c935_139 = arith.constant 935 : index
    %103 = vector.load %arg11[%c0_138, %c935_139] : memref<8x1808xf32, #tpu.memory_space<vmem>>, vector<8x840xf32>
    %c32_140 = arith.constant 32 : index
    %c840_141 = arith.constant 840 : index
    %104 = vector.load %arg12[%c32_140, %c840_141] : memref<72x1680xf32, #tpu.memory_space<vmem>>, vector<8x840xf32>
    tpu.vector_store %arg12[%c32_140, %c840_141], %103 {strides = array<i32>} : memref<72x1680xf32, #tpu.memory_space<vmem>>, vector<8x840xf32>,
    %c0_142 = arith.constant 0 : index
    %c936 = arith.constant 936 : index
    %105 = vector.load %arg11[%c0_142, %c936] : memref<8x1808xf32, #tpu.memory_space<vmem>>, vector<8x840xf32>
    %c40_143 = arith.constant 40 : index
    %c840_144 = arith.constant 840 : index
    %106 = vector.load %arg12[%c40_143, %c840_144] : memref<72x1680xf32, #tpu.memory_space<vmem>>, vector<8x840xf32>
    tpu.vector_store %arg12[%c40_143, %c840_144], %105 {strides = array<i32>} : memref<72x1680xf32, #tpu.memory_space<vmem>>, vector<8x840xf32>,
    %c0_145 = arith.constant 0 : index
    %c964 = arith.constant 964 : index
    %107 = vector.load %arg11[%c0_145, %c964] : memref<8x1808xf32, #tpu.memory_space<vmem>>, vector<8x840xf32>
    %c48_146 = arith.constant 48 : index
    %c840_147 = arith.constant 840 : index
    %108 = vector.load %arg12[%c48_146, %c840_147] : memref<72x1680xf32, #tpu.memory_space<vmem>>, vector<8x840xf32>
    tpu.vector_store %arg12[%c48_146, %c840_147], %107 {strides = array<i32>} : memref<72x1680xf32, #tpu.memory_space<vmem>>, vector<8x840xf32>,
    %c0_148 = arith.constant 0 : index
    %c965 = arith.constant 965 : index
    %109 = vector.load %arg11[%c0_148, %c965] : memref<8x1808xf32, #tpu.memory_space<vmem>>, vector<8x840xf32>
    %c56_149 = arith.constant 56 : index
    %c840_150 = arith.constant 840 : index
    %110 = vector.load %arg12[%c56_149, %c840_150] : memref<72x1680xf32, #tpu.memory_space<vmem>>, vector<8x840xf32>
    tpu.vector_store %arg12[%c56_149, %c840_150], %109 {strides = array<i32>} : memref<72x1680xf32, #tpu.memory_space<vmem>>, vector<8x840xf32>,
    %c0_151 = arith.constant 0 : index
    %c966 = arith.constant 966 : index
    %111 = vector.load %arg11[%c0_151, %c966] : memref<8x1808xf32, #tpu.memory_space<vmem>>, vector<8x840xf32>
    %c64_152 = arith.constant 64 : index
    %c840_153 = arith.constant 840 : index
    %112 = vector.load %arg12[%c64_152, %c840_153] : memref<72x1680xf32, #tpu.memory_space<vmem>>, vector<8x840xf32>
    tpu.vector_store %arg12[%c64_152, %c840_153], %111 {strides = array<i32>} : memref<72x1680xf32, #tpu.memory_space<vmem>>, vector<8x840xf32>,
    %c0_154 = arith.constant 0 : index
    %c0_155 = arith.constant 0 : index
    %113 = vector.load %arg4[%c0_154, %c0_155] : memref<8x72xf32, #tpu.memory_space<vmem>>, vector<8x72xf32>
    %c0_156 = arith.constant 0 : index
    %c0_157 = arith.constant 0 : index
    %114 = vector.load %arg12[%c0_156, %c0_157] : memref<72x1680xf32, #tpu.memory_space<vmem>>, vector<72x1680xf32>
    %cst_158 = arith.constant dense<0.000000e+00> : vector<8x1680xf32>
    %115 = tpu.matmul %113, %114, %cst_158 {dimension_numbers = #tpu.dot_dimension_numbers<[1], [0], [0], [1], [0, 0, 1, 1], [], []>} : vector<8x72xf32>, vector<72x1680xf32>, vector<8x1680xf32> -> vector<8x1680xf32>
    %c0_159 = arith.constant 0 : index
    %c0_160 = arith.constant 0 : index
    %116 = vector.load %arg5[%c0_159, %c0_160] : memref<8x1xf32, #tpu.memory_space<vmem>>, vector<8x1xf32>
    %117 = vector.broadcast %116 : vector<8x1xf32> to vector<8x1680xf32>
    %118 = arith.addf %115, %117 : vector<8x1680xf32>
    %cst_161 = arith.constant 0.000000e+00 : f32
    %119 = vector.broadcast %cst_161 : f32 to vector<8x1680xf32>
    %120 = arith.maximumf %118, %119 : vector<8x1680xf32>
    %121 = vector.extract_strided_slice %120 {offsets = [0, 0], sizes = [8, 840], strides = [1, 1]} : vector<8x1680xf32> to vector<8x840xf32>
    %122 = vector.extract_strided_slice %121 {offsets = [0, 0], sizes = [8, 808], strides = [1, 1]} : vector<8x840xf32> to vector<8x808xf32>
    %123 = vector.extract_strided_slice %121 {offsets = [0, 1], sizes = [8, 808], strides = [1, 1]} : vector<8x840xf32> to vector<8x808xf32>
    %124 = arith.maximumf %122, %123 : vector<8x808xf32>
    %125 = vector.extract_strided_slice %121 {offsets = [0, 30], sizes = [8, 808], strides = [1, 1]} : vector<8x840xf32> to vector<8x808xf32>
    %126 = vector.extract_strided_slice %121 {offsets = [0, 31], sizes = [8, 808], strides = [1, 1]} : vector<8x840xf32> to vector<8x808xf32>
    %127 = arith.maximumf %125, %126 : vector<8x808xf32>
    %128 = arith.maximumf %124, %127 : vector<8x808xf32>
    %c0_162 = arith.constant 0 : index
    %c0_163 = arith.constant 0 : index
    %129 = vector.load %arg13[%c0_162, %c0_163] : memref<16x808xf32, #tpu.memory_space<vmem>>, vector<8x808xf32>
    tpu.vector_store %arg13[%c0_162, %c0_163], %128 {strides = array<i32>} : memref<16x808xf32, #tpu.memory_space<vmem>>, vector<8x808xf32>,
    %130 = vector.extract_strided_slice %120 {offsets = [0, 840], sizes = [8, 840], strides = [1, 1]} : vector<8x1680xf32> to vector<8x840xf32>
    %131 = vector.extract_strided_slice %130 {offsets = [0, 0], sizes = [8, 808], strides = [1, 1]} : vector<8x840xf32> to vector<8x808xf32>
    %132 = vector.extract_strided_slice %130 {offsets = [0, 1], sizes = [8, 808], strides = [1, 1]} : vector<8x840xf32> to vector<8x808xf32>
    %133 = arith.maximumf %131, %132 : vector<8x808xf32>
    %134 = vector.extract_strided_slice %130 {offsets = [0, 30], sizes = [8, 808], strides = [1, 1]} : vector<8x840xf32> to vector<8x808xf32>
    %135 = vector.extract_strided_slice %130 {offsets = [0, 31], sizes = [8, 808], strides = [1, 1]} : vector<8x840xf32> to vector<8x808xf32>
    %136 = arith.maximumf %134, %135 : vector<8x808xf32>
    %137 = arith.maximumf %133, %136 : vector<8x808xf32>
    %c8_164 = arith.constant 8 : index
    %c0_165 = arith.constant 0 : index
    %138 = vector.load %arg13[%c8_164, %c0_165] : memref<16x808xf32, #tpu.memory_space<vmem>>, vector<8x808xf32>
    tpu.vector_store %arg13[%c8_164, %c0_165], %137 {strides = array<i32>} : memref<16x808xf32, #tpu.memory_space<vmem>>, vector<8x808xf32>,
    %c0_166 = arith.constant 0 : index
    %c0_167 = arith.constant 0 : index
    %139 = vector.load %arg13[%c0_166, %c0_167] : memref<16x808xf32, #tpu.memory_space<vmem>>, vector<16x808xf32>
    %c0_168 = arith.constant 0 : index
    %c0_169 = arith.constant 0 : index
    %140 = vector.load %arg7[%c0_168, %c0_169] : memref<808x80xf32, #tpu.memory_space<vmem>>, vector<808x80xf32>
    %cst_170 = arith.constant dense<0.000000e+00> : vector<16x80xf32>
    %141 = tpu.matmul %139, %140, %cst_170 {dimension_numbers = #tpu.dot_dimension_numbers<[1], [0], [0], [1], [0, 0, 1, 1], [], []>} : vector<16x808xf32>, vector<808x80xf32>, vector<16x80xf32> -> vector<16x80xf32>
    %142 = vector.extract_strided_slice %141 {offsets = [0, 0], sizes = [8, 80], strides = [1, 1]} : vector<16x80xf32> to vector<8x80xf32>
    %c0_171 = arith.constant 0 : index
    %c0_172 = arith.constant 0 : index
    %143 = vector.load %arg8[%c0_171, %c0_172] : memref<1x10xf32, #tpu.memory_space<vmem>>, vector<1x10xf32>
    %144 = vector.extract_strided_slice %142 {offsets = [0, 0], sizes = [1, 10], strides = [1, 1]} : vector<8x80xf32> to vector<1x10xf32>
    %145 = arith.addf %143, %144 : vector<1x10xf32>
    %146 = vector.extract_strided_slice %142 {offsets = [1, 10], sizes = [1, 10], strides = [1, 1]} : vector<8x80xf32> to vector<1x10xf32>
    %147 = arith.addf %145, %146 : vector<1x10xf32>
    %148 = vector.extract_strided_slice %142 {offsets = [2, 20], sizes = [1, 10], strides = [1, 1]} : vector<8x80xf32> to vector<1x10xf32>
    %149 = arith.addf %147, %148 : vector<1x10xf32>
    %150 = vector.extract_strided_slice %142 {offsets = [3, 30], sizes = [1, 10], strides = [1, 1]} : vector<8x80xf32> to vector<1x10xf32>
    %151 = arith.addf %149, %150 : vector<1x10xf32>
    %152 = vector.extract_strided_slice %142 {offsets = [4, 40], sizes = [1, 10], strides = [1, 1]} : vector<8x80xf32> to vector<1x10xf32>
    %153 = arith.addf %151, %152 : vector<1x10xf32>
    %154 = vector.extract_strided_slice %142 {offsets = [5, 50], sizes = [1, 10], strides = [1, 1]} : vector<8x80xf32> to vector<1x10xf32>
    %155 = arith.addf %153, %154 : vector<1x10xf32>
    %156 = vector.extract_strided_slice %142 {offsets = [6, 60], sizes = [1, 10], strides = [1, 1]} : vector<8x80xf32> to vector<1x10xf32>
    %157 = arith.addf %155, %156 : vector<1x10xf32>
    %158 = vector.extract_strided_slice %142 {offsets = [7, 70], sizes = [1, 10], strides = [1, 1]} : vector<8x80xf32> to vector<1x10xf32>
    %159 = arith.addf %157, %158 : vector<1x10xf32>
    %c0_173 = arith.constant 0 : index
    %c0_174 = arith.constant 0 : index
    %160 = vector.load %arg9[%c0_173, %c0_174] : memref<2x10xf32, #tpu.memory_space<vmem>>, vector<1x10xf32>
    tpu.vector_store %arg9[%c0_173, %c0_174], %159 {strides = array<i32>} : memref<2x10xf32, #tpu.memory_space<vmem>>, vector<1x10xf32>,
    %161 = vector.extract_strided_slice %141 {offsets = [8, 0], sizes = [8, 80], strides = [1, 1]} : vector<16x80xf32> to vector<8x80xf32>
    %c0_175 = arith.constant 0 : index
    %c0_176 = arith.constant 0 : index
    %162 = vector.load %arg8[%c0_175, %c0_176] : memref<1x10xf32, #tpu.memory_space<vmem>>, vector<1x10xf32>
    %163 = vector.extract_strided_slice %161 {offsets = [0, 0], sizes = [1, 10], strides = [1, 1]} : vector<8x80xf32> to vector<1x10xf32>
    %164 = arith.addf %162, %163 : vector<1x10xf32>
    %165 = vector.extract_strided_slice %161 {offsets = [1, 10], sizes = [1, 10], strides = [1, 1]} : vector<8x80xf32> to vector<1x10xf32>
    %166 = arith.addf %164, %165 : vector<1x10xf32>
    %167 = vector.extract_strided_slice %161 {offsets = [2, 20], sizes = [1, 10], strides = [1, 1]} : vector<8x80xf32> to vector<1x10xf32>
    %168 = arith.addf %166, %167 : vector<1x10xf32>
    %169 = vector.extract_strided_slice %161 {offsets = [3, 30], sizes = [1, 10], strides = [1, 1]} : vector<8x80xf32> to vector<1x10xf32>
    %170 = arith.addf %168, %169 : vector<1x10xf32>
    %171 = vector.extract_strided_slice %161 {offsets = [4, 40], sizes = [1, 10], strides = [1, 1]} : vector<8x80xf32> to vector<1x10xf32>
    %172 = arith.addf %170, %171 : vector<1x10xf32>
    %173 = vector.extract_strided_slice %161 {offsets = [5, 50], sizes = [1, 10], strides = [1, 1]} : vector<8x80xf32> to vector<1x10xf32>
    %174 = arith.addf %172, %173 : vector<1x10xf32>
    %175 = vector.extract_strided_slice %161 {offsets = [6, 60], sizes = [1, 10], strides = [1, 1]} : vector<8x80xf32> to vector<1x10xf32>
    %176 = arith.addf %174, %175 : vector<1x10xf32>
    %177 = vector.extract_strided_slice %161 {offsets = [7, 70], sizes = [1, 10], strides = [1, 1]} : vector<8x80xf32> to vector<1x10xf32>
    %178 = arith.addf %176, %177 : vector<1x10xf32>
    %c1_177 = arith.constant 1 : index
    %c0_178 = arith.constant 0 : index
    %179 = vector.load %arg9[%c1_177, %c0_178] : memref<2x10xf32, #tpu.memory_space<vmem>>, vector<1x10xf32>
    tpu.vector_store %arg9[%c1_177, %c0_178], %178 {strides = array<i32>} : memref<2x10xf32, #tpu.memory_space<vmem>>, vector<1x10xf32>,
    return
  }
  func.func @transform_0(%arg0: i32) -> (i32, i32, i32) {
    %c0_i32 = arith.constant 0 : i32
    %c0_i32_0 = arith.constant 0 : i32
    %c0_i32_1 = arith.constant 0 : i32
    return %arg0, %c0_i32, %c0_i32_0 : i32, i32, i32
  }
  func.func @transform_1(%arg0: i32) -> (i32, i32) {
    %c0_i32 = arith.constant 0 : i32
    %c0_i32_0 = arith.constant 0 : i32
    %c0_i32_1 = arith.constant 0 : i32
    return %c0_i32, %c0_i32_0 : i32, i32
  }
  func.func @transform_2(%arg0: i32) -> (i32, i32) {
    %c0_i32 = arith.constant 0 : i32
    %c0_i32_0 = arith.constant 0 : i32
    %c0_i32_1 = arith.constant 0 : i32
    return %c0_i32, %c0_i32_0 : i32, i32
  }
  func.func @transform_3(%arg0: i32) -> (i32, i32) {
    %c0_i32 = arith.constant 0 : i32
    %c0_i32_0 = arith.constant 0 : i32
    %c0_i32_1 = arith.constant 0 : i32
    return %c0_i32, %c0_i32_0 : i32, i32
  }
  func.func @transform_4(%arg0: i32) -> (i32, i32) {
    %c0_i32 = arith.constant 0 : i32
    %c0_i32_0 = arith.constant 0 : i32
    %c0_i32_1 = arith.constant 0 : i32
    return %c0_i32, %c0_i32_0 : i32, i32
  }
  func.func @transform_5(%arg0: i32) -> (i32, i32) {
    %c0_i32 = arith.constant 0 : i32
    %c0_i32_0 = arith.constant 0 : i32
    %c0_i32_1 = arith.constant 0 : i32
    return %c0_i32, %c0_i32_0 : i32, i32
  }
  func.func @transform_6(%arg0: i32) -> (i32, i32) {
    %c0_i32 = arith.constant 0 : i32
    %c0_i32_0 = arith.constant 0 : i32
    %c0_i32_1 = arith.constant 0 : i32
    return %c0_i32, %c0_i32_0 : i32, i32
  }
  func.func @transform_7(%arg0: i32) -> (i32, i32) {
    %c0_i32 = arith.constant 0 : i32
    %c0_i32_0 = arith.constant 0 : i32
    %c0_i32_1 = arith.constant 0 : i32
    return %c0_i32, %c0_i32_0 : i32, i32
  }
  func.func @transform_8(%arg0: i32) -> (i32, i32) {
    %c0_i32 = arith.constant 0 : i32
    %c0_i32_0 = arith.constant 0 : i32
    return %arg0, %c0_i32 : i32, i32
  }
}

</mosaic_0001>

<llo_original>
// kernel: tpu_custom_call.1
$region0: #{tpu_custom_call.1}
  #allocation0 [shape = 'u32[]', space=smem, size = 0x4, offset = 0x4, fixed_abs, tag = 'smem constant byte address 0x4 - core index']
  #allocation1 [shape = 'u32[144,128]{1,0:T(1,128)}', space=vmem, size = 0x12000, scoped, tag = 'internal scratch']
  #allocation2 [shape = 'f32[9,1680]{1,0:T(8,128)}', space=vmem, size = 0x1c000, scoped, tag = 'scratch operand']
  #allocation3 [shape = 'f32[8,1808]{1,0:T(8,128)}', space=vmem, size = 0xf000, scoped, tag = 'scratch operand']
  #allocation4 [shape = 'f32[72,1680]{1,0:T(8,128)}', space=vmem, size = 0x7e000, scoped, tag = 'scratch operand']
  #allocation5 [shape = 'f32[16,808]{1,0:T(8,128)}', space=vmem, size = 0xe000, scoped, tag = 'scratch operand']
  %s0 = inlined_call_operand.vmem [shape: f32[2,1,904], index: 0, kind: input, shape index: {}]
  %s1 = inlined_call_operand.vmem [shape: f32[8,9], index: 1, kind: input, shape index: {}]
  %s2 = inlined_call_operand.vmem [shape: f32[8,1], index: 2, kind: input, shape index: {}]
  %s3 = inlined_call_operand.vmem [shape: f32[8,72], index: 3, kind: input, shape index: {}]
  %s4 = inlined_call_operand.vmem [shape: f32[8,1], index: 4, kind: input, shape index: {}]
  %s5 = inlined_call_operand.vmem [shape: f32[1,1680], index: 5, kind: input, shape index: {}]
  %s6 = inlined_call_operand.vmem [shape: f32[808,80], index: 6, kind: input, shape index: {}]
  %s7 = inlined_call_operand.vmem [shape: f32[1,10], index: 7, kind: input, shape index: {}]
  %s8 = inlined_call_operand.hbm [shape: f32[2,10], index: 8, kind: output, shape index: {}]
  %s9 = sld [smem:[#allocation0]]
  $region42: #{tpu_custom_call.1} parent=0
    _
  %s11 = ssub.s32 1, %s9
  %s12 = scalar_select 0, %s11, %s9
  $region1: #{tpu_custom_call.1} parent=0
    #allocation6 [shape = 'u8[1024]{0}', space=vmem, size = 0x400, scoped, tag = 'output window, operand 0, single buffered']
    #allocation7 [shape = 's32[1]{0}', space=sflag, size = 0x4, scoped, tag = 'scoped memory for tpu_custom_call.1']
    %13 = vsyncpa [#allocation7], 0
    // Predicated region
    $region2: #{tpu_custom_call.1} parent=1 // pred_check
      _
    $region3: #{tpu_custom_call.1} parent=1 // pred_check_branch
      %15 = sbr.rel (0) target = $region5
    $region4: #{tpu_custom_call.1} parent=1 // pred_region
      _
    $region5: #{tpu_custom_call.1} parent=1 // pred_fallthru
      _
    // Predicated region
    $region6: #{tpu_custom_call.1} parent=1 // pred_check
      _
    $region7: #{tpu_custom_call.1} parent=1 // pred_check_branch
      %17 = sbr.rel (0) target = $region9
    $region8: #{tpu_custom_call.1} parent=1 // pred_region
      _
    $region9: #{tpu_custom_call.1} parent=1 // pred_fallthru
      _
    // Predicated region
    $region10: #{tpu_custom_call.1} parent=1 // pred_check
      _
    $region11: #{tpu_custom_call.1} parent=1 // pred_check_branch
      %19 = sbr.rel (0) target = $region13
    $region12: #{tpu_custom_call.1} parent=1 // pred_region
      _
    $region13: #{tpu_custom_call.1} parent=1 // pred_fallthru
      _
    // Predicated region
    $region14: #{tpu_custom_call.1} parent=1 // pred_check
      _
    $region15: #{tpu_custom_call.1} parent=1 // pred_check_branch
      %21 = sbr.rel (0) target = $region17
    $region16: #{tpu_custom_call.1} parent=1 // pred_region
      _
    $region17: #{tpu_custom_call.1} parent=1 // pred_fallthru
      _
    // Predicated region
    $region18: #{tpu_custom_call.1} parent=1 // pred_check
      _
    $region19: #{tpu_custom_call.1} parent=1 // pred_check_branch
      %23 = sbr.rel (0) target = $region21
    $region20: #{tpu_custom_call.1} parent=1 // pred_region
      _
    $region21: #{tpu_custom_call.1} parent=1 // pred_fallthru
      _
    // Predicated region
    $region22: #{tpu_custom_call.1} parent=1 // pred_check
      _
    $region23: #{tpu_custom_call.1} parent=1 // pred_check_branch
      %25 = sbr.rel (0) target = $region25
    $region24: #{tpu_custom_call.1} parent=1 // pred_region
      _
    $region25: #{tpu_custom_call.1} parent=1 // pred_fallthru
      _
    // Predicated region
    $region26: #{tpu_custom_call.1} parent=1 // pred_check
      _
    $region27: #{tpu_custom_call.1} parent=1 // pred_check_branch
      %27 = sbr.rel (0) target = $region29
    $region28: #{tpu_custom_call.1} parent=1 // pred_region
      _
    $region29: #{tpu_custom_call.1} parent=1 // pred_fallthru
      _
    // Predicated region
    $region30: #{tpu_custom_call.1} parent=1 // pred_check
      _
    $region31: #{tpu_custom_call.1} parent=1 // pred_check_branch
      %29 = sbr.rel (0) target = $region33
    $region32: #{tpu_custom_call.1} parent=1 // pred_region
      _
    $region33: #{tpu_custom_call.1} parent=1 // pred_fallthru
      _
    %v30 = vld [vmem:[%s0] sm:$0x7f]
    %v31 = vlaneseq
    %vm32 = vcmp.ge.s32.totalorder %v31, 0
    %vm33 = vcmp.lt.s32.totalorder %v31, 840
    %vm34 = vmand %vm32, %vm33
    %35 = vst.msk [vmem:[#allocation2] ss:$8 sm:$0xf] %vm34, %v30
    %36 = vst.msk [vmem:[#allocation2] ss:$8 sm:$0x70] %vm34, %v30
    %v37 = vld [vmem:[%s0] sm:$0x7f]
    %39 = vrot.lane.b32.xlu0 %v37, 127
    %v40 = vpop.permute.xlu0 %39
    %v41 = vrot.slane %v40, 1
    %vm42 = vcmask 1039360
    %v43 = vsel %vm42, %v40, %v41
    %s45 = scalar_lea.vmem [#allocation2], 1
    %46 = vst.msk [vmem:[%s45] ss:$8 sm:$0xf] %vm34, %v43
    %47 = vst.msk [vmem:[%s45] ss:$8 sm:$0x70] %vm34, %v43
    %v48 = vld [vmem:[%s0] sm:$0x7f]
    %50 = vrot.lane.b32.xlu0 %v48, 126
    %v51 = vpop.permute.xlu0 %50
    %v52 = vrot.slane %v51, 1
    %vm53 = vcmask 1031168
    %v54 = vsel %vm53, %v51, %v52
    %s56 = scalar_lea.vmem [#allocation2], 2
    %57 = vst.msk [vmem:[%s56] ss:$8 sm:$0xf] %vm34, %v54
    %58 = vst.msk [vmem:[%s56] ss:$8 sm:$0x70] %vm34, %v54
    %v59 = vld [vmem:[%s0] sm:$0x7f]
    %61 = vrot.lane.b32.xlu0 %v59, 98
    %v62 = vpop.permute.xlu0 %61
    %v63 = vrot.slane %v62, 1
    %vm64 = vcmask 801792
    %v65 = vsel %vm64, %v62, %v63
    %s67 = scalar_lea.vmem [#allocation2], 3
    %68 = vst.msk [vmem:[%s67] ss:$8 sm:$0xf] %vm34, %v65
    %69 = vst.msk [vmem:[%s67] ss:$8 sm:$0x70] %vm34, %v65
    %v70 = vld [vmem:[%s0] sm:$0x7f]
    %72 = vrot.lane.b32.xlu0 %v70, 97
    %v73 = vpop.permute.xlu0 %72
    %v74 = vrot.slane %v73, 1
    %vm75 = vcmask 793600
    %v76 = vsel %vm75, %v73, %v74
    %s78 = scalar_lea.vmem [#allocation2], 4
    %79 = vst.msk [vmem:[%s78] ss:$8 sm:$0xf] %vm34, %v76
    %80 = vst.msk [vmem:[%s78] ss:$8 sm:$0x70] %vm34, %v76
    %v81 = vld [vmem:[%s0] sm:$0x7f]
    %83 = vrot.lane.b32.xlu0 %v81, 96
    %v84 = vpop.permute.xlu0 %83
    %v85 = vrot.slane %v84, 1
    %vm86 = vcmask 785408
    %v87 = vsel %vm86, %v84, %v85
    %s89 = scalar_lea.vmem [#allocation2], 5
    %90 = vst.msk [vmem:[%s89] ss:$8 sm:$0xf] %vm34, %v87
    %91 = vst.msk [vmem:[%s89] ss:$8 sm:$0x70] %vm34, %v87
    %v92 = vld [vmem:[%s0] sm:$0xff]
    %94 = vrot.lane.b32.xlu0 %v92, 68
    %v95 = vpop.permute.xlu0 %94
    %v96 = vrot.slane %v95, 1
    %vm97 = vcmask 556032
    %v98 = vsel %vm97, %v95, %v96
    %s100 = scalar_lea.vmem [#allocation2], 6
    %101 = vst.msk [vmem:[%s100] ss:$8 sm:$0xf] %vm34, %v98
    %102 = vst.msk [vmem:[%s100] ss:$8 sm:$0x70] %vm34, %v98
    %v103 = vld [vmem:[%s0] sm:$0xff]
    %105 = vrot.lane.b32.xlu0 %v103, 67
    %v106 = vpop.permute.xlu0 %105
    %v107 = vrot.slane %v106, 1
    %vm108 = vcmask 547840
    %v109 = vsel %vm108, %v106, %v107
    %s111 = scalar_lea.vmem [#allocation2], 7
    %112 = vst.msk [vmem:[%s111] ss:$8 sm:$0xf] %vm34, %v109
    %113 = vst.msk [vmem:[%s111] ss:$8 sm:$0x70] %vm34, %v109
    %v114 = vld [vmem:[%s0] sm:$0xff]
    %116 = vrot.lane.b32.xlu0 %v114, 66
    %v117 = vpop.permute.xlu0 %116
    %v118 = vrot.slane %v117, 1
    %vm119 = vcmask 539648
    %v120 = vsel %vm119, %v117, %v118
    %s122 = scalar_lea.vmem [#allocation2], 112
    %123 = vst.msk [vmem:[%s122] ss:$8 sm:$0xf] %vm34, %v120
    %124 = vst.msk [vmem:[%s122] ss:$8 sm:$0x70] %vm34, %v120
    %s125 = scalar_lea.vmem %s0, 8
    %v126 = vld [vmem:[%s125] sm:$0x7f]
    %128 = vrot.lane.b32.xlu0 %v126, 72
    %v129 = vpop.permute.xlu0 %128
    %v130 = vrot.slane %v129, 7
    %vm131 = vcmask 588800
    %v132 = vsel %vm131, %v130, %v129
    %vm134 = vcmp.ge.s32.totalorder %v31, 72
    %vm135 = vcmp.lt.s32.totalorder %v31, 912
    %vm136 = vmand %vm134, %vm135
    %s137 = scalar_lea.vmem [#allocation2], 48
    %138 = vst.msk [vmem:[%s137] ss:$8 sm:$0xf] %vm136, %v132
    %139 = vst.msk [vmem:[%s137] ss:$8 sm:$0xf0] %vm136, %v132
    %v140 = vld [vmem:[%s125] sm:$0x7f]
    %142 = vrot.lane.b32.xlu0 %v140, 71
    %v143 = vpop.permute.xlu0 %142
    %v144 = vrot.slane %v143, 7
    %vm145 = vcmask 580608
    %v146 = vsel %vm145, %v144, %v143
    %s148 = scalar_lea.vmem [#allocation2], 49
    %149 = vst.msk [vmem:[%s148] ss:$8 sm:$0xf] %vm136, %v146
    %150 = vst.msk [vmem:[%s148] ss:$8 sm:$0xf0] %vm136, %v146
    %v151 = vld [vmem:[%s125] sm:$0x7f]
    %153 = vrot.lane.b32.xlu0 %v151, 70
    %v154 = vpop.permute.xlu0 %153
    %v155 = vrot.slane %v154, 7
    %vm156 = vcmask 572416
    %v157 = vsel %vm156, %v155, %v154
    %s159 = scalar_lea.vmem [#allocation2], 50
    %160 = vst.msk [vmem:[%s159] ss:$8 sm:$0xf] %vm136, %v157
    %161 = vst.msk [vmem:[%s159] ss:$8 sm:$0xf0] %vm136, %v157
    %v162 = vld [vmem:[%s125] sm:$0x7f]
    %164 = vrot.lane.b32.xlu0 %v162, 42
    %v165 = vpop.permute.xlu0 %164
    %v166 = vrot.slane %v165, 7
    %vm167 = vcmask 343040
    %v168 = vsel %vm167, %v166, %v165
    %s170 = scalar_lea.vmem [#allocation2], 51
    %171 = vst.msk [vmem:[%s170] ss:$8 sm:$0xf] %vm136, %v168
    %172 = vst.msk [vmem:[%s170] ss:$8 sm:$0xf0] %vm136, %v168
    %v173 = vld [vmem:[%s125] sm:$0x7f]
    %175 = vrot.lane.b32.xlu0 %v173, 41
    %v176 = vpop.permute.xlu0 %175
    %v177 = vrot.slane %v176, 7
    %vm178 = vcmask 334848
    %v179 = vsel %vm178, %v177, %v176
    %s181 = scalar_lea.vmem [#allocation2], 52
    %182 = vst.msk [vmem:[%s181] ss:$8 sm:$0xf] %vm136, %v179
    %183 = vst.msk [vmem:[%s181] ss:$8 sm:$0xf0] %vm136, %v179
    %v184 = vld [vmem:[%s125] sm:$0x7f]
    %186 = vrot.lane.b32.xlu0 %v184, 40
    %v187 = vpop.permute.xlu0 %186
    %v188 = vrot.slane %v187, 7
    %vm189 = vcmask 326656
    %v190 = vsel %vm189, %v188, %v187
    %s192 = scalar_lea.vmem [#allocation2], 53
    %193 = vst.msk [vmem:[%s192] ss:$8 sm:$0xf] %vm136, %v190
    %194 = vst.msk [vmem:[%s192] ss:$8 sm:$0xf0] %vm136, %v190
    %v195 = vld [vmem:[%s125] sm:$0xff]
    %197 = vrot.lane.b32.xlu0 %v195, 12
    %v198 = vpop.permute.xlu0 %197
    %v199 = vrot.slane %v198, 7
    %vm200 = vcmask 97280
    %v201 = vsel %vm200, %v199, %v198
    %s203 = scalar_lea.vmem [#allocation2], 54
    %204 = vst.msk [vmem:[%s203] ss:$8 sm:$0xf] %vm136, %v201
    %205 = vst.msk [vmem:[%s203] ss:$8 sm:$0xf0] %vm136, %v201
    %v206 = vld [vmem:[%s125] sm:$0xff]
    %208 = vrot.lane.b32.xlu0 %v206, 11
    %v209 = vpop.permute.xlu0 %208
    %v210 = vrot.slane %v209, 7
    %vm211 = vcmask 89088
    %v212 = vsel %vm211, %v210, %v209
    %s214 = scalar_lea.vmem [#allocation2], 55
    %215 = vst.msk [vmem:[%s214] ss:$8 sm:$0xf] %vm136, %v212
    %216 = vst.msk [vmem:[%s214] ss:$8 sm:$0xf0] %vm136, %v212
    %v217 = vld [vmem:[%s125] sm:$0xff]
    %219 = vrot.lane.b32.xlu0 %v217, 10
    %v220 = vpop.permute.xlu0 %219
    %v221 = vrot.slane %v220, 7
    %vm222 = vcmask 80896
    %v223 = vsel %vm222, %v221, %v220
    %s225 = scalar_lea.vmem [#allocation2], 160
    %226 = vst.msk [vmem:[%s225] ss:$8 sm:$0xf] %vm136, %v223
    %227 = vst.msk [vmem:[%s225] ss:$8 sm:$0xf0] %vm136, %v223
    %v228 = vld [vmem:[%s1] sm:$0xff]
    %v229 = vld [vmem:[#allocation2] sm:$0xff]
    %v230 = vld [vmem:[#allocation2 + $0x8] sm:$0xff]
    %v231 = vld [vmem:[#allocation2 + $0x10] sm:$0xff]
    %v232 = vld [vmem:[#allocation2 + $0x18] sm:$0xff]
    %v233 = vld [vmem:[#allocation2 + $0x20] sm:$0xff]
    %v234 = vld [vmem:[#allocation2 + $0x28] sm:$0xff]
    %v235 = vld [vmem:[#allocation2 + $0x30] sm:$0xff]
    %v236 = vld [vmem:[#allocation2 + $0x38] sm:$0xff]
    %v237 = vld [vmem:[#allocation2 + $0x40] sm:$0xff]
    %v238 = vld [vmem:[#allocation2 + $0x48] sm:$0xff]
    %v239 = vld [vmem:[#allocation2 + $0x50] sm:$0xff]
    %v240 = vld [vmem:[#allocation2 + $0x58] sm:$0xff]
    %v241 = vld [vmem:[#allocation2 + $0x60] sm:$0xff]
    %v242 = vld [vmem:[#allocation2 + $0x68] sm:$0xff]
    %v243 = vld [vmem:[#allocation2 + $0x70] sm:$0x1]
    %v244 = vld [vmem:[#allocation2 + $0x78] sm:$0x1]
    %v245 = vld [vmem:[#allocation2 + $0x80] sm:$0x1]
    %v246 = vld [vmem:[#allocation2 + $0x88] sm:$0x1]
    %v247 = vld [vmem:[#allocation2 + $0x90] sm:$0x1]
    %v248 = vld [vmem:[#allocation2 + $0x98] sm:$0x1]
    %v249 = vld [vmem:[#allocation2 + $0xa0] sm:$0x1]
    %v250 = vld [vmem:[#allocation2 + $0xa8] sm:$0x1]
    %v251 = vld [vmem:[#allocation2 + $0xb0] sm:$0x1]
    %v252 = vld [vmem:[#allocation2 + $0xb8] sm:$0x1]
    %v253 = vld [vmem:[#allocation2 + $0xc0] sm:$0x1]
    %v254 = vld [vmem:[#allocation2 + $0xc8] sm:$0x1]
    %v255 = vld [vmem:[#allocation2 + $0xd0] sm:$0x1]
    %v256 = vld [vmem:[#allocation2 + $0xd8] sm:$0x1]
    %v257 = vld [vmem:[%s2] sm:$0xff]
    %259 = vset.pattern.permute.xlu0 0
    %260 = vperm.xlu0 %259, %v257
    %v261 = vpop.permute.xlu0 %260
    %vm263 = vcmask 72704
    %v265 = vsel %vm263, %v228, 0
    %vm267 = vcmask 1040384
    %v269 = vsel %vm267, %v243, 0
    %v272 = vsel %vm267, %v244, 0
    %v275 = vsel %vm267, %v245, 0
    %v278 = vsel %vm267, %v246, 0
    %v281 = vsel %vm267, %v247, 0
    %v284 = vsel %vm267, %v248, 0
    %v287 = vsel %vm267, %v249, 0
    %v290 = vsel %vm267, %v250, 0
    %v293 = vsel %vm267, %v251, 0
    %v296 = vsel %vm267, %v252, 0
    %v299 = vsel %vm267, %v253, 0
    %v302 = vsel %vm267, %v254, 0
    %v305 = vsel %vm267, %v255, 0
    %v308 = vsel %vm267, %v256, 0
    %310 = vmatprep.subr.mxu0 %v230
    %311 = vmatpush1.msra.mxu0 %v229
    %312 = vmatprep.subr.mxu0 %v272
    %313 = vmatpush1.msra.mxu0 %v269
    %314 = vmatprep.subr.mxu0 0.0
    %315 = vmatpush1.msra.mxu0 0.0
    %316 = vmatprep.subr.mxu0 0.0
    %317 = vmatpush1.msra.mxu0 0.0
    %318 = vmatprep.subr.mxu0 0.0
    %319 = vmatpush1.msra.mxu0 0.0
    %320 = vmatprep.subr.mxu0 0.0
    %321 = vmatpush1.msra.mxu0 0.0
    %322 = vmatprep.subr.mxu0 0.0
    %323 = vmatpush1.msra.mxu0 0.0
    %324 = vmatprep.subr.mxu0 0.0
    %325 = vmatpush1.msra.mxu0 0.0
    %326 = vmatprep.subr.mxu0 0.0
    %327 = vmatpush1.msra.mxu0 0.0
    %328 = vmatprep.subr.mxu0 0.0
    %329 = vmatpush1.msra.mxu0 0.0
    %330 = vmatprep.subr.mxu0 0.0
    %331 = vmatpush1.msra.mxu0 0.0
    %332 = vmatprep.subr.mxu0 0.0
    %333 = vmatpush1.msra.mxu0 0.0
    %334 = vmatprep.subr.mxu0 0.0
    %335 = vmatpush1.msra.mxu0 0.0
    %336 = vmatprep.subr.mxu0 0.0
    %337 = vmatpush1.msra.mxu0 0.0
    %338 = vmatprep.subr.mxu0 0.0
    %339 = vmatpush1.msra.mxu0 0.0
    %340 = vmatprep.subr.mxu0 0.0
    %341 = vmatpush1.msra.mxu0 0.0
    %342 = vmatprep.subr.mxu0 0.0
    %343 = vmatpush1.msra.mxu0 0.0
    %344 = vmatprep.subr.mxu0 0.0
    %345 = vmatpush1.msra.mxu0 0.0
    %346 = vmatprep.subr.mxu0 0.0
    %347 = vmatpush1.msra.mxu0 0.0
    %348 = vmatprep.subr.mxu0 0.0
    %349 = vmatpush1.msra.mxu0 0.0
    %350 = vmatprep.subr.mxu0 0.0
    %351 = vmatpush1.msra.mxu0 0.0
    %352 = vmatprep.subr.mxu0 0.0
    %353 = vmatpush1.msra.mxu0 0.0
    %354 = vmatprep.subr.mxu0 0.0
    %355 = vmatpush1.msra.mxu0 0.0
    %356 = vmatprep.subr.mxu0 0.0
    %357 = vmatpush1.msra.mxu0 0.0
    %358 = vmatprep.subr.mxu0 0.0
    %359 = vmatpush1.msra.mxu0 0.0
    %360 = vmatprep.subr.mxu0 0.0
    %361 = vmatpush1.msra.mxu0 0.0
    %362 = vmatprep.subr.mxu0 0.0
    %363 = vmatpush1.msra.mxu0 0.0
    %364 = vmatprep.subr.mxu0 0.0
    %365 = vmatpush1.msra.mxu0 0.0
    %366 = vmatprep.subr.mxu0 0.0
    %367 = vmatpush1.msra.mxu0 0.0
    %368 = vmatprep.subr.mxu0 0.0
    %369 = vmatpush1.msra.mxu0 0.0
    %370 = vmatprep.subr.mxu0 0.0
    %371 = vmatpush1.msra.mxu0 0.0
    %372 = vmatprep.subr.mxu0 0.0
    %373 = vmatpush1.msra.mxu0 0.0
    %374 = vmatprep.mubr.f32.mxu0 0.0
    %375 = vmatmul.mubr.f32.gmra.mrb[0].mxu0 %v265
    %v376 = vpop.f32.mrb[0].mxu0
    %v377 = vadd.f32 %v261, %v376
    %v378 = vpop.f32.mrb[0].mxu0
    %v379 = vadd.f32 %v261, %v378
    %380 = vdwg.mxu0
    %381 = vmatprep.subr.mxu0 %v232
    %382 = vmatpush1.msra.mxu0 %v231
    %383 = vmatprep.subr.mxu0 %v278
    %384 = vmatpush1.msra.mxu0 %v275
    %385 = vmatprep.subr.mxu0 0.0
    %386 = vmatpush1.msra.mxu0 0.0
    %387 = vmatprep.subr.mxu0 0.0
    %388 = vmatpush1.msra.mxu0 0.0
    %389 = vmatprep.subr.mxu0 0.0
    %390 = vmatpush1.msra.mxu0 0.0
    %391 = vmatprep.subr.mxu0 0.0
    %392 = vmatpush1.msra.mxu0 0.0
    %393 = vmatprep.subr.mxu0 0.0
    %394 = vmatpush1.msra.mxu0 0.0
    %395 = vmatprep.subr.mxu0 0.0
    %396 = vmatpush1.msra.mxu0 0.0
    %397 = vmatprep.subr.mxu0 0.0
    %398 = vmatpush1.msra.mxu0 0.0
    %399 = vmatprep.subr.mxu0 0.0
    %400 = vmatpush1.msra.mxu0 0.0
    %401 = vmatprep.subr.mxu0 0.0
    %402 = vmatpush1.msra.mxu0 0.0
    %403 = vmatprep.subr.mxu0 0.0
    %404 = vmatpush1.msra.mxu0 0.0
    %405 = vmatprep.subr.mxu0 0.0
    %406 = vmatpush1.msra.mxu0 0.0
    %407 = vmatprep.subr.mxu0 0.0
    %408 = vmatpush1.msra.mxu0 0.0
    %409 = vmatprep.subr.mxu0 0.0
    %410 = vmatpush1.msra.mxu0 0.0
    %411 = vmatprep.subr.mxu0 0.0
    %412 = vmatpush1.msra.mxu0 0.0
    %413 = vmatprep.subr.mxu0 0.0
    %414 = vmatpush1.msra.mxu0 0.0
    %415 = vmatprep.subr.mxu0 0.0
    %416 = vmatpush1.msra.mxu0 0.0
    %417 = vmatprep.subr.mxu0 0.0
    %418 = vmatpush1.msra.mxu0 0.0
    %419 = vmatprep.subr.mxu0 0.0
    %420 = vmatpush1.msra.mxu0 0.0
    %421 = vmatprep.subr.mxu0 0.0
    %422 = vmatpush1.msra.mxu0 0.0
    %423 = vmatprep.subr.mxu0 0.0
    %424 = vmatpush1.msra.mxu0 0.0
    %425 = vmatprep.subr.mxu0 0.0
    %426 = vmatpush1.msra.mxu0 0.0
    %427 = vmatprep.subr.mxu0 0.0
    %428 = vmatpush1.msra.mxu0 0.0
    %429 = vmatprep.subr.mxu0 0.0
    %430 = vmatpush1.msra.mxu0 0.0
    %431 = vmatprep.subr.mxu0 0.0
    %432 = vmatpush1.msra.mxu0 0.0
    %433 = vmatprep.subr.mxu0 0.0
    %434 = vmatpush1.msra.mxu0 0.0
    %435 = vmatprep.subr.mxu0 0.0
    %436 = vmatpush1.msra.mxu0 0.0
    %437 = vmatprep.subr.mxu0 0.0
    %438 = vmatpush1.msra.mxu0 0.0
    %439 = vmatprep.subr.mxu0 0.0
    %440 = vmatpush1.msra.mxu0 0.0
    %441 = vmatprep.subr.mxu0 0.0
    %442 = vmatpush1.msra.mxu0 0.0
    %443 = vmatprep.subr.mxu0 0.0
    %444 = vmatpush1.msra.mxu0 0.0
    %445 = vmatprep.mubr.f32.mxu0 0.0
    %446 = vmatmul.mubr.f32.gmra.mrb[0].mxu0 %v265
    %v447 = vpop.f32.mrb[0].mxu0
    %v448 = vadd.f32 %v261, %v447
    %v449 = vpop.f32.mrb[0].mxu0
    %v450 = vadd.f32 %v261, %v449
    %451 = vdwg.mxu0
    %452 = vmatprep.subr.mxu0 %v234
    %453 = vmatpush1.msra.mxu0 %v233
    %454 = vmatprep.subr.mxu0 %v284
    %455 = vmatpush1.msra.mxu0 %v281
    %456 = vmatprep.subr.mxu0 0.0
    %457 = vmatpush1.msra.mxu0 0.0
    %458 = vmatprep.subr.mxu0 0.0
    %459 = vmatpush1.msra.mxu0 0.0
    %460 = vmatprep.subr.mxu0 0.0
    %461 = vmatpush1.msra.mxu0 0.0
    %462 = vmatprep.subr.mxu0 0.0
    %463 = vmatpush1.msra.mxu0 0.0
    %464 = vmatprep.subr.mxu0 0.0
    %465 = vmatpush1.msra.mxu0 0.0
    %466 = vmatprep.subr.mxu0 0.0
    %467 = vmatpush1.msra.mxu0 0.0
    %468 = vmatprep.subr.mxu0 0.0
    %469 = vmatpush1.msra.mxu0 0.0
    %470 = vmatprep.subr.mxu0 0.0
    %471 = vmatpush1.msra.mxu0 0.0
    %472 = vmatprep.subr.mxu0 0.0
    %473 = vmatpush1.msra.mxu0 0.0
    %474 = vmatprep.subr.mxu0 0.0
    %475 = vmatpush1.msra.mxu0 0.0
    %476 = vmatprep.subr.mxu0 0.0
    %477 = vmatpush1.msra.mxu0 0.0
    %478 = vmatprep.subr.mxu0 0.0
    %479 = vmatpush1.msra.mxu0 0.0
    %480 = vmatprep.subr.mxu0 0.0
    %481 = vmatpush1.msra.mxu0 0.0
    %482 = vmatprep.subr.mxu0 0.0
    %483 = vmatpush1.msra.mxu0 0.0
    %484 = vmatprep.subr.mxu0 0.0
    %485 = vmatpush1.msra.mxu0 0.0
    %486 = vmatprep.subr.mxu0 0.0
    %487 = vmatpush1.msra.mxu0 0.0
    %488 = vmatprep.subr.mxu0 0.0
    %489 = vmatpush1.msra.mxu0 0.0
    %490 = vmatprep.subr.mxu0 0.0
    %491 = vmatpush1.msra.mxu0 0.0
    %492 = vmatprep.subr.mxu0 0.0
    %493 = vmatpush1.msra.mxu0 0.0
    %494 = vmatprep.subr.mxu0 0.0
    %495 = vmatpush1.msra.mxu0 0.0
    %496 = vmatprep.subr.mxu0 0.0
    %497 = vmatpush1.msra.mxu0 0.0
    %498 = vmatprep.subr.mxu0 0.0
    %499 = vmatpush1.msra.mxu0 0.0
    %500 = vmatprep.subr.mxu0 0.0
    %501 = vmatpush1.msra.mxu0 0.0
    %502 = vmatprep.subr.mxu0 0.0
    %503 = vmatpush1.msra.mxu0 0.0
    %504 = vmatprep.subr.mxu0 0.0
    %505 = vmatpush1.msra.mxu0 0.0
    %506 = vmatprep.subr.mxu0 0.0
    %507 = vmatpush1.msra.mxu0 0.0
    %508 = vmatprep.subr.mxu0 0.0
    %509 = vmatpush1.msra.mxu0 0.0
    %510 = vmatprep.subr.mxu0 0.0
    %511 = vmatpush1.msra.mxu0 0.0
    %512 = vmatprep.subr.mxu0 0.0
    %513 = vmatpush1.msra.mxu0 0.0
    %514 = vmatprep.subr.mxu0 0.0
    %515 = vmatpush1.msra.mxu0 0.0
    %516 = vmatprep.mubr.f32.mxu0 0.0
    %517 = vmatmul.mubr.f32.gmra.mrb[0].mxu0 %v265
    %v518 = vpop.f32.mrb[0].mxu0
    %v519 = vadd.f32 %v261, %v518
    %v520 = vpop.f32.mrb[0].mxu0
    %v521 = vadd.f32 %v261, %v520
    %522 = vdwg.mxu0
    %523 = vmatprep.subr.mxu0 %v236
    %524 = vmatpush1.msra.mxu0 %v235
    %525 = vmatprep.subr.mxu0 %v290
    %526 = vmatpush1.msra.mxu0 %v287
    %527 = vmatprep.subr.mxu0 0.0
    %528 = vmatpush1.msra.mxu0 0.0
    %529 = vmatprep.subr.mxu0 0.0
    %530 = vmatpush1.msra.mxu0 0.0
    %531 = vmatprep.subr.mxu0 0.0
    %532 = vmatpush1.msra.mxu0 0.0
    %533 = vmatprep.subr.mxu0 0.0
    %534 = vmatpush1.msra.mxu0 0.0
    %535 = vmatprep.subr.mxu0 0.0
    %536 = vmatpush1.msra.mxu0 0.0
    %537 = vmatprep.subr.mxu0 0.0
    %538 = vmatpush1.msra.mxu0 0.0
    %539 = vmatprep.subr.mxu0 0.0
    %540 = vmatpush1.msra.mxu0 0.0
    %541 = vmatprep.subr.mxu0 0.0
    %542 = vmatpush1.msra.mxu0 0.0
    %543 = vmatprep.subr.mxu0 0.0
    %544 = vmatpush1.msra.mxu0 0.0
    %545 = vmatprep.subr.mxu0 0.0
    %546 = vmatpush1.msra.mxu0 0.0
    %547 = vmatprep.subr.mxu0 0.0
    %548 = vmatpush1.msra.mxu0 0.0
    %549 = vmatprep.subr.mxu0 0.0
    %550 = vmatpush1.msra.mxu0 0.0
    %551 = vmatprep.subr.mxu0 0.0
    %552 = vmatpush1.msra.mxu0 0.0
    %553 = vmatprep.subr.mxu0 0.0
    %554 = vmatpush1.msra.mxu0 0.0
    %555 = vmatprep.subr.mxu0 0.0
    %556 = vmatpush1.msra.mxu0 0.0
    %557 = vmatprep.subr.mxu0 0.0
    %558 = vmatpush1.msra.mxu0 0.0
    %559 = vmatprep.subr.mxu0 0.0
    %560 = vmatpush1.msra.mxu0 0.0
    %561 = vmatprep.subr.mxu0 0.0
    %562 = vmatpush1.msra.mxu0 0.0
    %563 = vmatprep.subr.mxu0 0.0
    %564 = vmatpush1.msra.mxu0 0.0
    %565 = vmatprep.subr.mxu0 0.0
    %566 = vmatpush1.msra.mxu0 0.0
    %567 = vmatprep.subr.mxu0 0.0
    %568 = vmatpush1.msra.mxu0 0.0
    %569 = vmatprep.subr.mxu0 0.0
    %570 = vmatpush1.msra.mxu0 0.0
    %571 = vmatprep.subr.mxu0 0.0
    %572 = vmatpush1.msra.mxu0 0.0
    %573 = vmatprep.subr.mxu0 0.0
    %574 = vmatpush1.msra.mxu0 0.0
    %575 = vmatprep.subr.mxu0 0.0
    %576 = vmatpush1.msra.mxu0 0.0
    %577 = vmatprep.subr.mxu0 0.0
    %578 = vmatpush1.msra.mxu0 0.0
    %579 = vmatprep.subr.mxu0 0.0
    %580 = vmatpush1.msra.mxu0 0.0
    %581 = vmatprep.subr.mxu0 0.0
    %582 = vmatpush1.msra.mxu0 0.0
    %583 = vmatprep.subr.mxu0 0.0
    %584 = vmatpush1.msra.mxu0 0.0
    %585 = vmatprep.subr.mxu0 0.0
    %586 = vmatpush1.msra.mxu0 0.0
    %587 = vmatprep.mubr.f32.mxu0 0.0
    %588 = vmatmul.mubr.f32.gmra.mrb[0].mxu0 %v265
    %v589 = vpop.f32.mrb[0].mxu0
    %v590 = vadd.f32 %v261, %v589
    %v591 = vpop.f32.mrb[0].mxu0
    %v592 = vadd.f32 %v261, %v591
    %593 = vdwg.mxu0
    %594 = vmatprep.subr.mxu0 %v238
    %595 = vmatpush1.msra.mxu0 %v237
    %596 = vmatprep.subr.mxu0 %v296
    %597 = vmatpush1.msra.mxu0 %v293
    %598 = vmatprep.subr.mxu0 0.0
    %599 = vmatpush1.msra.mxu0 0.0
    %600 = vmatprep.subr.mxu0 0.0
    %601 = vmatpush1.msra.mxu0 0.0
    %602 = vmatprep.subr.mxu0 0.0
    %603 = vmatpush1.msra.mxu0 0.0
    %604 = vmatprep.subr.mxu0 0.0
    %605 = vmatpush1.msra.mxu0 0.0
    %606 = vmatprep.subr.mxu0 0.0
    %607 = vmatpush1.msra.mxu0 0.0
    %608 = vmatprep.subr.mxu0 0.0
    %609 = vmatpush1.msra.mxu0 0.0
    %610 = vmatprep.subr.mxu0 0.0
    %611 = vmatpush1.msra.mxu0 0.0
    %612 = vmatprep.subr.mxu0 0.0
    %613 = vmatpush1.msra.mxu0 0.0
    %614 = vmatprep.subr.mxu0 0.0
    %615 = vmatpush1.msra.mxu0 0.0
    %616 = vmatprep.subr.mxu0 0.0
    %617 = vmatpush1.msra.mxu0 0.0
    %618 = vmatprep.subr.mxu0 0.0
    %619 = vmatpush1.msra.mxu0 0.0
    %620 = vmatprep.subr.mxu0 0.0
    %621 = vmatpush1.msra.mxu0 0.0
    %622 = vmatprep.subr.mxu0 0.0
    %623 = vmatpush1.msra.mxu0 0.0
    %624 = vmatprep.subr.mxu0 0.0
    %625 = vmatpush1.msra.mxu0 0.0
    %626 = vmatprep.subr.mxu0 0.0
    %627 = vmatpush1.msra.mxu0 0.0
    %628 = vmatprep.subr.mxu0 0.0
    %629 = vmatpush1.msra.mxu0 0.0
    %630 = vmatprep.subr.mxu0 0.0
    %631 = vmatpush1.msra.mxu0 0.0
    %632 = vmatprep.subr.mxu0 0.0
    %633 = vmatpush1.msra.mxu0 0.0
    %634 = vmatprep.subr.mxu0 0.0
    %635 = vmatpush1.msra.mxu0 0.0
    %636 = vmatprep.subr.mxu0 0.0
    %637 = vmatpush1.msra.mxu0 0.0
    %638 = vmatprep.subr.mxu0 0.0
    %639 = vmatpush1.msra.mxu0 0.0
    %640 = vmatprep.subr.mxu0 0.0
    %641 = vmatpush1.msra.mxu0 0.0
    %642 = vmatprep.subr.mxu0 0.0
    %643 = vmatpush1.msra.mxu0 0.0
    %644 = vmatprep.subr.mxu0 0.0
    %645 = vmatpush1.msra.mxu0 0.0
    %646 = vmatprep.subr.mxu0 0.0
    %647 = vmatpush1.msra.mxu0 0.0
    %648 = vmatprep.subr.mxu0 0.0
    %649 = vmatpush1.msra.mxu0 0.0
    %650 = vmatprep.subr.mxu0 0.0
    %651 = vmatpush1.msra.mxu0 0.0
    %652 = vmatprep.subr.mxu0 0.0
    %653 = vmatpush1.msra.mxu0 0.0
    %654 = vmatprep.subr.mxu0 0.0
    %655 = vmatpush1.msra.mxu0 0.0
    %656 = vmatprep.subr.mxu0 0.0
    %657 = vmatpush1.msra.mxu0 0.0
    %658 = vmatprep.mubr.f32.mxu0 0.0
    %659 = vmatmul.mubr.f32.gmra.mrb[0].mxu0 %v265
    %v660 = vpop.f32.mrb[0].mxu0
    %v661 = vadd.f32 %v261, %v660
    %v662 = vpop.f32.mrb[0].mxu0
    %v663 = vadd.f32 %v261, %v662
    %664 = vdwg.mxu0
    %665 = vmatprep.subr.mxu0 %v240
    %666 = vmatpush1.msra.mxu0 %v239
    %667 = vmatprep.subr.mxu0 %v302
    %668 = vmatpush1.msra.mxu0 %v299
    %669 = vmatprep.subr.mxu0 0.0
    %670 = vmatpush1.msra.mxu0 0.0
    %671 = vmatprep.subr.mxu0 0.0
    %672 = vmatpush1.msra.mxu0 0.0
    %673 = vmatprep.subr.mxu0 0.0
    %674 = vmatpush1.msra.mxu0 0.0
    %675 = vmatprep.subr.mxu0 0.0
    %676 = vmatpush1.msra.mxu0 0.0
    %677 = vmatprep.subr.mxu0 0.0
    %678 = vmatpush1.msra.mxu0 0.0
    %679 = vmatprep.subr.mxu0 0.0
    %680 = vmatpush1.msra.mxu0 0.0
    %681 = vmatprep.subr.mxu0 0.0
    %682 = vmatpush1.msra.mxu0 0.0
    %683 = vmatprep.subr.mxu0 0.0
    %684 = vmatpush1.msra.mxu0 0.0
    %685 = vmatprep.subr.mxu0 0.0
    %686 = vmatpush1.msra.mxu0 0.0
    %687 = vmatprep.subr.mxu0 0.0
    %688 = vmatpush1.msra.mxu0 0.0
    %689 = vmatprep.subr.mxu0 0.0
    %690 = vmatpush1.msra.mxu0 0.0
    %691 = vmatprep.subr.mxu0 0.0
    %692 = vmatpush1.msra.mxu0 0.0
    %693 = vmatprep.subr.mxu0 0.0
    %694 = vmatpush1.msra.mxu0 0.0
    %695 = vmatprep.subr.mxu0 0.0
    %696 = vmatpush1.msra.mxu0 0.0
    %697 = vmatprep.subr.mxu0 0.0
    %698 = vmatpush1.msra.mxu0 0.0
    %699 = vmatprep.subr.mxu0 0.0
    %700 = vmatpush1.msra.mxu0 0.0
    %701 = vmatprep.subr.mxu0 0.0
    %702 = vmatpush1.msra.mxu0 0.0
    %703 = vmatprep.subr.mxu0 0.0
    %704 = vmatpush1.msra.mxu0 0.0
    %705 = vmatprep.subr.mxu0 0.0
    %706 = vmatpush1.msra.mxu0 0.0
    %707 = vmatprep.subr.mxu0 0.0
    %708 = vmatpush1.msra.mxu0 0.0
    %709 = vmatprep.subr.mxu0 0.0
    %710 = vmatpush1.msra.mxu0 0.0
    %711 = vmatprep.subr.mxu0 0.0
    %712 = vmatpush1.msra.mxu0 0.0
    %713 = vmatprep.subr.mxu0 0.0
    %714 = vmatpush1.msra.mxu0 0.0
    %715 = vmatprep.subr.mxu0 0.0
    %716 = vmatpush1.msra.mxu0 0.0
    %717 = vmatprep.subr.mxu0 0.0
    %718 = vmatpush1.msra.mxu0 0.0
    %719 = vmatprep.subr.mxu0 0.0
    %720 = vmatpush1.msra.mxu0 0.0
    %721 = vmatprep.subr.mxu0 0.0
    %722 = vmatpush1.msra.mxu0 0.0
    %723 = vmatprep.subr.mxu0 0.0
    %724 = vmatpush1.msra.mxu0 0.0
    %725 = vmatprep.subr.mxu0 0.0
    %726 = vmatpush1.msra.mxu0 0.0
    %727 = vmatprep.subr.mxu0 0.0
    %728 = vmatpush1.msra.mxu0 0.0
    %729 = vmatprep.mubr.f32.mxu0 0.0
    %730 = vmatmul.mubr.f32.gmra.mrb[0].mxu0 %v265
    %v731 = vpop.f32.mrb[0].mxu0
    %v732 = vadd.f32 %v261, %v731
    %v733 = vpop.f32.mrb[0].mxu0
    %v734 = vadd.f32 %v261, %v733
    %735 = vdwg.mxu0
    %736 = vmatprep.subr.mxu0 %v242
    %737 = vmatpush1.msra.mxu0 %v241
    %738 = vmatprep.subr.mxu0 %v308
    %739 = vmatpush1.msra.mxu0 %v305
    %740 = vmatprep.subr.mxu0 0.0
    %741 = vmatpush1.msra.mxu0 0.0
    %742 = vmatprep.subr.mxu0 0.0
    %743 = vmatpush1.msra.mxu0 0.0
    %744 = vmatprep.subr.mxu0 0.0
    %745 = vmatpush1.msra.mxu0 0.0
    %746 = vmatprep.subr.mxu0 0.0
    %747 = vmatpush1.msra.mxu0 0.0
    %748 = vmatprep.subr.mxu0 0.0
    %749 = vmatpush1.msra.mxu0 0.0
    %750 = vmatprep.subr.mxu0 0.0
    %751 = vmatpush1.msra.mxu0 0.0
    %752 = vmatprep.subr.mxu0 0.0
    %753 = vmatpush1.msra.mxu0 0.0
    %754 = vmatprep.subr.mxu0 0.0
    %755 = vmatpush1.msra.mxu0 0.0
    %756 = vmatprep.subr.mxu0 0.0
    %757 = vmatpush1.msra.mxu0 0.0
    %758 = vmatprep.subr.mxu0 0.0
    %759 = vmatpush1.msra.mxu0 0.0
    %760 = vmatprep.subr.mxu0 0.0
    %761 = vmatpush1.msra.mxu0 0.0
    %762 = vmatprep.subr.mxu0 0.0
    %763 = vmatpush1.msra.mxu0 0.0
    %764 = vmatprep.subr.mxu0 0.0
    %765 = vmatpush1.msra.mxu0 0.0
    %766 = vmatprep.subr.mxu0 0.0
    %767 = vmatpush1.msra.mxu0 0.0
    %768 = vmatprep.subr.mxu0 0.0
    %769 = vmatpush1.msra.mxu0 0.0
    %770 = vmatprep.subr.mxu0 0.0
    %771 = vmatpush1.msra.mxu0 0.0
    %772 = vmatprep.subr.mxu0 0.0
    %773 = vmatpush1.msra.mxu0 0.0
    %774 = vmatprep.subr.mxu0 0.0
    %775 = vmatpush1.msra.mxu0 0.0
    %776 = vmatprep.subr.mxu0 0.0
    %777 = vmatpush1.msra.mxu0 0.0
    %778 = vmatprep.subr.mxu0 0.0
    %779 = vmatpush1.msra.mxu0 0.0
    %780 = vmatprep.subr.mxu0 0.0
    %781 = vmatpush1.msra.mxu0 0.0
    %782 = vmatprep.subr.mxu0 0.0
    %783 = vmatpush1.msra.mxu0 0.0
    %784 = vmatprep.subr.mxu0 0.0
    %785 = vmatpush1.msra.mxu0 0.0
    %786 = vmatprep.subr.mxu0 0.0
    %787 = vmatpush1.msra.mxu0 0.0
    %788 = vmatprep.subr.mxu0 0.0
    %789 = vmatpush1.msra.mxu0 0.0
    %790 = vmatprep.subr.mxu0 0.0
    %791 = vmatpush1.msra.mxu0 0.0
    %792 = vmatprep.subr.mxu0 0.0
    %793 = vmatpush1.msra.mxu0 0.0
    %794 = vmatprep.subr.mxu0 0.0
    %795 = vmatpush1.msra.mxu0 0.0
    %796 = vmatprep.subr.mxu0 0.0
    %797 = vmatpush1.msra.mxu0 0.0
    %798 = vmatprep.subr.mxu0 0.0
    %799 = vmatpush1.msra.mxu0 0.0
    %800 = vmatprep.mubr.f32.mxu0 0.0
    %801 = vmatmul.mubr.f32.gmra.mrb[0].mxu0 %v265
    %v802 = vpop.f32.mrb[0].mxu0
    %v803 = vadd.f32 %v261, %v802
    %v804 = vpop.f32.mrb[0].mxu0
    %v805 = vadd.f32 %v261, %v804
    %806 = vdwg.mxu0
    %v807 = vmax.f32 %v377, 0.0
    %v808 = vmax.f32 %v379, 0.0
    %v809 = vmax.f32 %v448, 0.0
    %v810 = vmax.f32 %v450, 0.0
    %v811 = vmax.f32 %v519, 0.0
    %v812 = vmax.f32 %v521, 0.0
    %v813 = vmax.f32 %v590, 0.0
    %v814 = vmax.f32 %v592, 0.0
    %v815 = vmax.f32 %v661, 0.0
    %v816 = vmax.f32 %v663, 0.0
    %v817 = vmax.f32 %v732, 0.0
    %v818 = vmax.f32 %v734, 0.0
    %v819 = vmax.f32 %v803, 0.0
    %v820 = vmax.f32 %v805, 0.0
    %v821 = vld [vmem:[%s5] sm:$0xff]
    %v822 = vld [vmem:[%s5 + $0x8] sm:$0x3f]
    %v825 = vlaneseq
    %v826 = vshrl.u32 %v825, 7
    %v827 = vsub.s32 0, %v826
    %v828 = vrot.slane %v821, %v827
    %v829 = vlaneseq
    %v830 = vshrl.u32 %v829, 7
    %v831 = vsub.s32 1, %v830
    %v832 = vrot.slane %v821, %v831
    %v833 = vlaneseq
    %v834 = vshrl.u32 %v833, 7
    %v835 = vsub.s32 2, %v834
    %v836 = vrot.slane %v821, %v835
    %v837 = vlaneseq
    %v838 = vshrl.u32 %v837, 7
    %v839 = vsub.s32 3, %v838
    %v840 = vrot.slane %v821, %v839
    %v841 = vlaneseq
    %v842 = vshrl.u32 %v841, 7
    %v843 = vsub.s32 4, %v842
    %v844 = vrot.slane %v821, %v843
    %v845 = vlaneseq
    %v846 = vshrl.u32 %v845, 7
    %v847 = vsub.s32 5, %v846
    %v848 = vrot.slane %v821, %v847
    %v849 = vlaneseq
    %v850 = vshrl.u32 %v849, 7
    %v851 = vsub.s32 6, %v850
    %v852 = vrot.slane %v821, %v851
    %v853 = vlaneseq
    %v854 = vshrl.u32 %v853, 7
    %v855 = vsub.s32 7, %v854
    %v856 = vrot.slane %v821, %v855
    %v857 = vlaneseq
    %v858 = vshrl.u32 %v857, 7
    %v859 = vsub.s32 0, %v858
    %v860 = vrot.slane %v822, %v859
    %v861 = vlaneseq
    %v862 = vshrl.u32 %v861, 7
    %v863 = vsub.s32 1, %v862
    %v864 = vrot.slane %v822, %v863
    %v865 = vlaneseq
    %v866 = vshrl.u32 %v865, 7
    %v867 = vsub.s32 2, %v866
    %v868 = vrot.slane %v822, %v867
    %v869 = vlaneseq
    %v870 = vshrl.u32 %v869, 7
    %v871 = vsub.s32 3, %v870
    %v872 = vrot.slane %v822, %v871
    %v873 = vlaneseq
    %v874 = vshrl.u32 %v873, 7
    %v875 = vsub.s32 4, %v874
    %v876 = vrot.slane %v822, %v875
    %v877 = vlaneseq
    %v878 = vshrl.u32 %v877, 7
    %v879 = vsub.s32 5, %v878
    %v880 = vrot.slane %v822, %v879
    %v895 = vmul.f32 %v807, %v828
    %v896 = vmul.f32 %v808, %v832
    %v897 = vmul.f32 %v809, %v836
    %v898 = vmul.f32 %v810, %v840
    %v899 = vmul.f32 %v811, %v844
    %v900 = vmul.f32 %v812, %v848
    %v901 = vmul.f32 %v813, %v852
    %v902 = vmul.f32 %v814, %v856
    %v903 = vmul.f32 %v815, %v860
    %v904 = vmul.f32 %v816, %v864
    %v905 = vmul.f32 %v817, %v868
    %v906 = vmul.f32 %v818, %v872
    %v907 = vmul.f32 %v819, %v876
    %v908 = vmul.f32 %v820, %v880
    %vm909 = vcmask 252928
    %910 = vst.msk [vmem:[#allocation3] sm:$0xff] %vm909, 0.0
    %vm911 = vcmask 1048376
    %912 = vst.msk [vmem:[#allocation3 + $0x30] sm:$0xff] %vm911, 0.0
    %vm913 = vcmask 64512
    %914 = vst.msk [vmem:[#allocation3 + $0x38] sm:$0xff] %vm913, 0.0
    %922 = vrot.lane.b32.xlu0 %v895, 31
    %v923 = vpop.permute.xlu0 %922
    %924 = vrot.lane.b32.xlu0 %v896, 31
    %v925 = vpop.permute.xlu0 %924
    %926 = vrot.lane.b32.xlu0 %v897, 31
    %v927 = vpop.permute.xlu0 %926
    %928 = vrot.lane.b32.xlu0 %v898, 31
    %v929 = vpop.permute.xlu0 %928
    %930 = vrot.lane.b32.xlu0 %v899, 31
    %v931 = vpop.permute.xlu0 %930
    %932 = vrot.lane.b32.xlu0 %v900, 31
    %v933 = vpop.permute.xlu0 %932
    %934 = vrot.lane.b32.xlu0 %v901, 31
    %v935 = vpop.permute.xlu0 %934
    %v936 = vsel %vm909, %v923, %v925
    %v937 = vsel %vm909, %v925, %v927
    %v938 = vsel %vm909, %v927, %v929
    %v939 = vsel %vm909, %v929, %v931
    %v940 = vsel %vm909, %v931, %v933
    %v941 = vsel %vm909, %v933, %v935
    %vm949 = vcmask 1047800
    %950 = vst.msk [vmem:[#allocation3] sm:$0xff] %vm949, %v923
    %951 = vst [vmem:[#allocation3 + $0x8] sm:$0xff] %v936
    %952 = vst [vmem:[#allocation3 + $0x10] sm:$0xff] %v937
    %953 = vst [vmem:[#allocation3 + $0x18] sm:$0xff] %v938
    %954 = vst [vmem:[#allocation3 + $0x20] sm:$0xff] %v939
    %955 = vst [vmem:[#allocation3 + $0x28] sm:$0xff] %v940
    %vm956 = vcmask 842752
    %957 = vst.msk [vmem:[#allocation3 + $0x30] sm:$0xff] %vm956, %v941
    %vm958 = vcmask 318528
    %959 = vst.msk [vmem:[#allocation3 + $0x38] sm:$0xff] %vm958, 0.0
    %vm960 = vcmask 1048440
    %961 = vst.msk [vmem:[#allocation3 + $0x68] sm:$0xff] %vm960, 0.0
    %vm962 = vcmask 130048
    %963 = vst.msk [vmem:[#allocation3 + $0x70] sm:$0xff] %vm962, 0.0
    %971 = vrot.lane.b32.xlu0 %v901, 95
    %v972 = vpop.permute.xlu0 %971
    %973 = vrot.lane.b32.xlu0 %v902, 95
    %v974 = vpop.permute.xlu0 %973
    %975 = vrot.lane.b32.xlu0 %v903, 95
    %v976 = vpop.permute.xlu0 %975
    %977 = vrot.lane.b32.xlu0 %v904, 95
    %v978 = vpop.permute.xlu0 %977
    %979 = vrot.lane.b32.xlu0 %v905, 95
    %v980 = vpop.permute.xlu0 %979
    %981 = vrot.lane.b32.xlu0 %v906, 95
    %v982 = vpop.permute.xlu0 %981
    %983 = vrot.lane.b32.xlu0 %v907, 95
    %v984 = vpop.permute.xlu0 %983
    %985 = vrot.lane.b32.xlu0 %v908, 95
    %v986 = vpop.permute.xlu0 %985
    %vm987 = vcmask 777216
    %v988 = vsel %vm987, %v972, %v974
    %v989 = vsel %vm987, %v974, %v976
    %v990 = vsel %vm987, %v976, %v978
    %v991 = vsel %vm987, %v978, %v980
    %v992 = vsel %vm987, %v980, %v982
    %v993 = vsel %vm987, %v982, %v984
    %v994 = vsel %vm987, %v984, %v986
    %vm1002 = vcmask 1047864
    %1003 = vst.msk [vmem:[#allocation3 + $0x38] sm:$0xff] %vm1002, %v988
    %1004 = vst [vmem:[#allocation3 + $0x40] sm:$0xff] %v989
    %1005 = vst [vmem:[#allocation3 + $0x48] sm:$0xff] %v990
    %1006 = vst [vmem:[#allocation3 + $0x50] sm:$0xff] %v991
    %1007 = vst [vmem:[#allocation3 + $0x58] sm:$0xff] %v992
    %1008 = vst [vmem:[#allocation3 + $0x60] sm:$0xff] %v993
    %vm1009 = vcmask 908288
    %1010 = vst.msk [vmem:[#allocation3 + $0x68] sm:$0xff] %vm1009, %v994
    %v1011 = vld [vmem:[#allocation3] sm:$0xff]
    %v1012 = vld [vmem:[#allocation3 + $0x8] sm:$0xff]
    %v1013 = vld [vmem:[#allocation3 + $0x10] sm:$0xff]
    %v1014 = vld [vmem:[#allocation3 + $0x18] sm:$0xff]
    %v1015 = vld [vmem:[#allocation3 + $0x20] sm:$0xff]
    %v1016 = vld [vmem:[#allocation3 + $0x28] sm:$0xff]
    %v1017 = vld [vmem:[#allocation3 + $0x30] sm:$0xff]
    %1018 = vst [vmem:[#allocation4] sm:$0xff] %v1011
    %1019 = vst [vmem:[#allocation4 + $0x8] sm:$0xff] %v1012
    %1020 = vst [vmem:[#allocation4 + $0x10] sm:$0xff] %v1013
    %1021 = vst [vmem:[#allocation4 + $0x18] sm:$0xff] %v1014
    %1022 = vst [vmem:[#allocation4 + $0x20] sm:$0xff] %v1015
    %1023 = vst [vmem:[#allocation4 + $0x28] sm:$0xff] %v1016
    %1024 = vst.msk [vmem:[#allocation4 + $0x30] sm:$0xff] %vm131, %v1017
    %v1025 = vld [vmem:[#allocation3] sm:$0xff]
    %v1026 = vld [vmem:[#allocation3 + $0x8] sm:$0xff]
    %v1027 = vld [vmem:[#allocation3 + $0x10] sm:$0xff]
    %v1028 = vld [vmem:[#allocation3 + $0x18] sm:$0xff]
    %v1029 = vld [vmem:[#allocation3 + $0x20] sm:$0xff]
    %v1030 = vld [vmem:[#allocation3 + $0x28] sm:$0xff]
    %v1031 = vld [vmem:[#allocation3 + $0x30] sm:$0xff]
    %1039 = vrot.lane.b32.xlu0 %v1025, 127
    %v1040 = vpop.permute.xlu0 %1039
    %1041 = vrot.lane.b32.xlu0 %v1026, 127
    %v1042 = vpop.permute.xlu0 %1041
    %1043 = vrot.lane.b32.xlu0 %v1027, 127
    %v1044 = vpop.permute.xlu0 %1043
    %1045 = vrot.lane.b32.xlu0 %v1028, 127
    %v1046 = vpop.permute.xlu0 %1045
    %1047 = vrot.lane.b32.xlu0 %v1029, 127
    %v1048 = vpop.permute.xlu0 %1047
    %1049 = vrot.lane.b32.xlu0 %v1030, 127
    %v1050 = vpop.permute.xlu0 %1049
    %1051 = vrot.lane.b32.xlu0 %v1031, 127
    %v1052 = vpop.permute.xlu0 %1051
    %v1053 = vsel %vm42, %v1040, %v1042
    %v1054 = vsel %vm42, %v1042, %v1044
    %v1055 = vsel %vm42, %v1044, %v1046
    %v1056 = vsel %vm42, %v1046, %v1048
    %v1057 = vsel %vm42, %v1048, %v1050
    %v1058 = vsel %vm42, %v1050, %v1052
    %1066 = vst [vmem:[#allocation4 + $0x70] sm:$0xff] %v1053
    %1067 = vst [vmem:[#allocation4 + $0x78] sm:$0xff] %v1054
    %1068 = vst [vmem:[#allocation4 + $0x80] sm:$0xff] %v1055
    %1069 = vst [vmem:[#allocation4 + $0x88] sm:$0xff] %v1056
    %1070 = vst [vmem:[#allocation4 + $0x90] sm:$0xff] %v1057
    %1071 = vst [vmem:[#allocation4 + $0x98] sm:$0xff] %v1058
    %1072 = vst.msk [vmem:[#allocation4 + $0xa0] sm:$0xff] %vm131, %v1052
    %v1073 = vld [vmem:[#allocation3] sm:$0xff]
    %v1074 = vld [vmem:[#allocation3 + $0x8] sm:$0xff]
    %v1075 = vld [vmem:[#allocation3 + $0x10] sm:$0xff]
    %v1076 = vld [vmem:[#allocation3 + $0x18] sm:$0xff]
    %v1077 = vld [vmem:[#allocation3 + $0x20] sm:$0xff]
    %v1078 = vld [vmem:[#allocation3 + $0x28] sm:$0xff]
    %v1079 = vld [vmem:[#allocation3 + $0x30] sm:$0xff]
    %1087 = vrot.lane.b32.xlu0 %v1073, 126
    %v1088 = vpop.permute.xlu0 %1087
    %1089 = vrot.lane.b32.xlu0 %v1074, 126
    %v1090 = vpop.permute.xlu0 %1089
    %1091 = vrot.lane.b32.xlu0 %v1075, 126
    %v1092 = vpop.permute.xlu0 %1091
    %1093 = vrot.lane.b32.xlu0 %v1076, 126
    %v1094 = vpop.permute.xlu0 %1093
    %1095 = vrot.lane.b32.xlu0 %v1077, 126
    %v1096 = vpop.permute.xlu0 %1095
    %1097 = vrot.lane.b32.xlu0 %v1078, 126
    %v1098 = vpop.permute.xlu0 %1097
    %1099 = vrot.lane.b32.xlu0 %v1079, 126
    %v1100 = vpop.permute.xlu0 %1099
    %v1101 = vsel %vm53, %v1088, %v1090
    %v1102 = vsel %vm53, %v1090, %v1092
    %v1103 = vsel %vm53, %v1092, %v1094
    %v1104 = vsel %vm53, %v1094, %v1096
    %v1105 = vsel %vm53, %v1096, %v1098
    %v1106 = vsel %vm53, %v1098, %v1100
    %1114 = vst [vmem:[#allocation4 + $0xe0] sm:$0xff] %v1101
    %1115 = vst [vmem:[#allocation4 + $0xe8] sm:$0xff] %v1102
    %1116 = vst [vmem:[#allocation4 + $0xf0] sm:$0xff] %v1103
    %1117 = vst [vmem:[#allocation4 + $0xf8] sm:$0xff] %v1104
    %1118 = vst [vmem:[#allocation4 + $0x100] sm:$0xff] %v1105
    %1119 = vst [vmem:[#allocation4 + $0x108] sm:$0xff] %v1106
    %1120 = vst.msk [vmem:[#allocation4 + $0x110] sm:$0xff] %vm131, %v1100
    %v1121 = vld [vmem:[#allocation3] sm:$0xff]
    %v1122 = vld [vmem:[#allocation3 + $0x8] sm:$0xff]
    %v1123 = vld [vmem:[#allocation3 + $0x10] sm:$0xff]
    %v1124 = vld [vmem:[#allocation3 + $0x18] sm:$0xff]
    %v1125 = vld [vmem:[#allocation3 + $0x20] sm:$0xff]
    %v1126 = vld [vmem:[#allocation3 + $0x28] sm:$0xff]
    %v1127 = vld [vmem:[#allocation3 + $0x30] sm:$0xff]
    %1135 = vrot.lane.b32.xlu0 %v1121, 98
    %v1136 = vpop.permute.xlu0 %1135
    %1137 = vrot.lane.b32.xlu0 %v1122, 98
    %v1138 = vpop.permute.xlu0 %1137
    %1139 = vrot.lane.b32.xlu0 %v1123, 98
    %v1140 = vpop.permute.xlu0 %1139
    %1141 = vrot.lane.b32.xlu0 %v1124, 98
    %v1142 = vpop.permute.xlu0 %1141
    %1143 = vrot.lane.b32.xlu0 %v1125, 98
    %v1144 = vpop.permute.xlu0 %1143
    %1145 = vrot.lane.b32.xlu0 %v1126, 98
    %v1146 = vpop.permute.xlu0 %1145
    %1147 = vrot.lane.b32.xlu0 %v1127, 98
    %v1148 = vpop.permute.xlu0 %1147
    %v1149 = vsel %vm64, %v1136, %v1138
    %v1150 = vsel %vm64, %v1138, %v1140
    %v1151 = vsel %vm64, %v1140, %v1142
    %v1152 = vsel %vm64, %v1142, %v1144
    %v1153 = vsel %vm64, %v1144, %v1146
    %v1154 = vsel %vm64, %v1146, %v1148
    %1162 = vst [vmem:[#allocation4 + $0x150] sm:$0xff] %v1149
    %1163 = vst [vmem:[#allocation4 + $0x158] sm:$0xff] %v1150
    %1164 = vst [vmem:[#allocation4 + $0x160] sm:$0xff] %v1151
    %1165 = vst [vmem:[#allocation4 + $0x168] sm:$0xff] %v1152
    %1166 = vst [vmem:[#allocation4 + $0x170] sm:$0xff] %v1153
    %1167 = vst [vmem:[#allocation4 + $0x178] sm:$0xff] %v1154
    %1168 = vst.msk [vmem:[#allocation4 + $0x180] sm:$0xff] %vm131, %v1148
    %v1169 = vld [vmem:[#allocation3] sm:$0xff]
    %v1170 = vld [vmem:[#allocation3 + $0x8] sm:$0xff]
    %v1171 = vld [vmem:[#allocation3 + $0x10] sm:$0xff]
    %v1172 = vld [vmem:[#allocation3 + $0x18] sm:$0xff]
    %v1173 = vld [vmem:[#allocation3 + $0x20] sm:$0xff]
    %v1174 = vld [vmem:[#allocation3 + $0x28] sm:$0xff]
    %v1175 = vld [vmem:[#allocation3 + $0x30] sm:$0xff]
    %1183 = vrot.lane.b32.xlu0 %v1169, 97
    %v1184 = vpop.permute.xlu0 %1183
    %1185 = vrot.lane.b32.xlu0 %v1170, 97
    %v1186 = vpop.permute.xlu0 %1185
    %1187 = vrot.lane.b32.xlu0 %v1171, 97
    %v1188 = vpop.permute.xlu0 %1187
    %1189 = vrot.lane.b32.xlu0 %v1172, 97
    %v1190 = vpop.permute.xlu0 %1189
    %1191 = vrot.lane.b32.xlu0 %v1173, 97
    %v1192 = vpop.permute.xlu0 %1191
    %1193 = vrot.lane.b32.xlu0 %v1174, 97
    %v1194 = vpop.permute.xlu0 %1193
    %1195 = vrot.lane.b32.xlu0 %v1175, 97
    %v1196 = vpop.permute.xlu0 %1195
    %v1197 = vsel %vm75, %v1184, %v1186
    %v1198 = vsel %vm75, %v1186, %v1188
    %v1199 = vsel %vm75, %v1188, %v1190
    %v1200 = vsel %vm75, %v1190, %v1192
    %v1201 = vsel %vm75, %v1192, %v1194
    %v1202 = vsel %vm75, %v1194, %v1196
    %1210 = vst [vmem:[#allocation4 + $0x1c0] sm:$0xff] %v1197
    %1211 = vst [vmem:[#allocation4 + $0x1c8] sm:$0xff] %v1198
    %1212 = vst [vmem:[#allocation4 + $0x1d0] sm:$0xff] %v1199
    %1213 = vst [vmem:[#allocation4 + $0x1d8] sm:$0xff] %v1200
    %1214 = vst [vmem:[#allocation4 + $0x1e0] sm:$0xff] %v1201
    %1215 = vst [vmem:[#allocation4 + $0x1e8] sm:$0xff] %v1202
    %1216 = vst.msk [vmem:[#allocation4 + $0x1f0] sm:$0xff] %vm131, %v1196
    %v1217 = vld [vmem:[#allocation3] sm:$0xff]
    %v1218 = vld [vmem:[#allocation3 + $0x8] sm:$0xff]
    %v1219 = vld [vmem:[#allocation3 + $0x10] sm:$0xff]
    %v1220 = vld [vmem:[#allocation3 + $0x18] sm:$0xff]
    %v1221 = vld [vmem:[#allocation3 + $0x20] sm:$0xff]
    %v1222 = vld [vmem:[#allocation3 + $0x28] sm:$0xff]
    %v1223 = vld [vmem:[#allocation3 + $0x30] sm:$0xff]
    %1231 = vrot.lane.b32.xlu0 %v1217, 96
    %v1232 = vpop.permute.xlu0 %1231
    %1233 = vrot.lane.b32.xlu0 %v1218, 96
    %v1234 = vpop.permute.xlu0 %1233
    %1235 = vrot.lane.b32.xlu0 %v1219, 96
    %v1236 = vpop.permute.xlu0 %1235
    %1237 = vrot.lane.b32.xlu0 %v1220, 96
    %v1238 = vpop.permute.xlu0 %1237
    %1239 = vrot.lane.b32.xlu0 %v1221, 96
    %v1240 = vpop.permute.xlu0 %1239
    %1241 = vrot.lane.b32.xlu0 %v1222, 96
    %v1242 = vpop.permute.xlu0 %1241
    %1243 = vrot.lane.b32.xlu0 %v1223, 96
    %v1244 = vpop.permute.xlu0 %1243
    %v1245 = vsel %vm86, %v1232, %v1234
    %v1246 = vsel %vm86, %v1234, %v1236
    %v1247 = vsel %vm86, %v1236, %v1238
    %v1248 = vsel %vm86, %v1238, %v1240
    %v1249 = vsel %vm86, %v1240, %v1242
    %v1250 = vsel %vm86, %v1242, %v1244
    %1258 = vst [vmem:[#allocation4 + $0x230] sm:$0xff] %v1245
    %1259 = vst [vmem:[#allocation4 + $0x238] sm:$0xff] %v1246
    %1260 = vst [vmem:[#allocation4 + $0x240] sm:$0xff] %v1247
    %1261 = vst [vmem:[#allocation4 + $0x248] sm:$0xff] %v1248
    %1262 = vst [vmem:[#allocation4 + $0x250] sm:$0xff] %v1249
    %1263 = vst [vmem:[#allocation4 + $0x258] sm:$0xff] %v1250
    %1264 = vst.msk [vmem:[#allocation4 + $0x260] sm:$0xff] %vm131, %v1244
    %v1265 = vld [vmem:[#allocation3] sm:$0xff]
    %v1266 = vld [vmem:[#allocation3 + $0x8] sm:$0xff]
    %v1267 = vld [vmem:[#allocation3 + $0x10] sm:$0xff]
    %v1268 = vld [vmem:[#allocation3 + $0x18] sm:$0xff]
    %v1269 = vld [vmem:[#allocation3 + $0x20] sm:$0xff]
    %v1270 = vld [vmem:[#allocation3 + $0x28] sm:$0xff]
    %v1271 = vld [vmem:[#allocation3 + $0x30] sm:$0xff]
    %v1272 = vld [vmem:[#allocation3 + $0x38] sm:$0xff]
    %1281 = vrot.lane.b32.xlu0 %v1265, 68
    %v1282 = vpop.permute.xlu0 %1281
    %1283 = vrot.lane.b32.xlu0 %v1266, 68
    %v1284 = vpop.permute.xlu0 %1283
    %1285 = vrot.lane.b32.xlu0 %v1267, 68
    %v1286 = vpop.permute.xlu0 %1285
    %1287 = vrot.lane.b32.xlu0 %v1268, 68
    %v1288 = vpop.permute.xlu0 %1287
    %1289 = vrot.lane.b32.xlu0 %v1269, 68
    %v1290 = vpop.permute.xlu0 %1289
    %1291 = vrot.lane.b32.xlu0 %v1270, 68
    %v1292 = vpop.permute.xlu0 %1291
    %1293 = vrot.lane.b32.xlu0 %v1271, 68
    %v1294 = vpop.permute.xlu0 %1293
    %1295 = vrot.lane.b32.xlu0 %v1272, 68
    %v1296 = vpop.permute.xlu0 %1295
    %v1297 = vsel %vm97, %v1282, %v1284
    %v1298 = vsel %vm97, %v1284, %v1286
    %v1299 = vsel %vm97, %v1286, %v1288
    %v1300 = vsel %vm97, %v1288, %v1290
    %v1301 = vsel %vm97, %v1290, %v1292
    %v1302 = vsel %vm97, %v1292, %v1294
    %v1303 = vsel %vm97, %v1294, %v1296
    %1311 = vst [vmem:[#allocation4 + $0x2a0] sm:$0xff] %v1297
    %1312 = vst [vmem:[#allocation4 + $0x2a8] sm:$0xff] %v1298
    %1313 = vst [vmem:[#allocation4 + $0x2b0] sm:$0xff] %v1299
    %1314 = vst [vmem:[#allocation4 + $0x2b8] sm:$0xff] %v1300
    %1315 = vst [vmem:[#allocation4 + $0x2c0] sm:$0xff] %v1301
    %1316 = vst [vmem:[#allocation4 + $0x2c8] sm:$0xff] %v1302
    %1317 = vst.msk [vmem:[#allocation4 + $0x2d0] sm:$0xff] %vm131, %v1303
    %v1318 = vld [vmem:[#allocation3] sm:$0xff]
    %v1319 = vld [vmem:[#allocation3 + $0x8] sm:$0xff]
    %v1320 = vld [vmem:[#allocation3 + $0x10] sm:$0xff]
    %v1321 = vld [vmem:[#allocation3 + $0x18] sm:$0xff]
    %v1322 = vld [vmem:[#allocation3 + $0x20] sm:$0xff]
    %v1323 = vld [vmem:[#allocation3 + $0x28] sm:$0xff]
    %v1324 = vld [vmem:[#allocation3 + $0x30] sm:$0xff]
    %v1325 = vld [vmem:[#allocation3 + $0x38] sm:$0xff]
    %1334 = vrot.lane.b32.xlu0 %v1318, 67
    %v1335 = vpop.permute.xlu0 %1334
    %1336 = vrot.lane.b32.xlu0 %v1319, 67
    %v1337 = vpop.permute.xlu0 %1336
    %1338 = vrot.lane.b32.xlu0 %v1320, 67
    %v1339 = vpop.permute.xlu0 %1338
    %1340 = vrot.lane.b32.xlu0 %v1321, 67
    %v1341 = vpop.permute.xlu0 %1340
    %1342 = vrot.lane.b32.xlu0 %v1322, 67
    %v1343 = vpop.permute.xlu0 %1342
    %1344 = vrot.lane.b32.xlu0 %v1323, 67
    %v1345 = vpop.permute.xlu0 %1344
    %1346 = vrot.lane.b32.xlu0 %v1324, 67
    %v1347 = vpop.permute.xlu0 %1346
    %1348 = vrot.lane.b32.xlu0 %v1325, 67
    %v1349 = vpop.permute.xlu0 %1348
    %v1350 = vsel %vm108, %v1335, %v1337
    %v1351 = vsel %vm108, %v1337, %v1339
    %v1352 = vsel %vm108, %v1339, %v1341
    %v1353 = vsel %vm108, %v1341, %v1343
    %v1354 = vsel %vm108, %v1343, %v1345
    %v1355 = vsel %vm108, %v1345, %v1347
    %v1356 = vsel %vm108, %v1347, %v1349
    %1364 = vst [vmem:[#allocation4 + $0x310] sm:$0xff] %v1350
    %1365 = vst [vmem:[#allocation4 + $0x318] sm:$0xff] %v1351
    %1366 = vst [vmem:[#allocation4 + $0x320] sm:$0xff] %v1352
    %1367 = vst [vmem:[#allocation4 + $0x328] sm:$0xff] %v1353
    %1368 = vst [vmem:[#allocation4 + $0x330] sm:$0xff] %v1354
    %1369 = vst [vmem:[#allocation4 + $0x338] sm:$0xff] %v1355
    %1370 = vst.msk [vmem:[#allocation4 + $0x340] sm:$0xff] %vm131, %v1356
    %v1371 = vld [vmem:[#allocation3] sm:$0xff]
    %v1372 = vld [vmem:[#allocation3 + $0x8] sm:$0xff]
    %v1373 = vld [vmem:[#allocation3 + $0x10] sm:$0xff]
    %v1374 = vld [vmem:[#allocation3 + $0x18] sm:$0xff]
    %v1375 = vld [vmem:[#allocation3 + $0x20] sm:$0xff]
    %v1376 = vld [vmem:[#allocation3 + $0x28] sm:$0xff]
    %v1377 = vld [vmem:[#allocation3 + $0x30] sm:$0xff]
    %v1378 = vld [vmem:[#allocation3 + $0x38] sm:$0xff]
    %1387 = vrot.lane.b32.xlu0 %v1371, 66
    %v1388 = vpop.permute.xlu0 %1387
    %1389 = vrot.lane.b32.xlu0 %v1372, 66
    %v1390 = vpop.permute.xlu0 %1389
    %1391 = vrot.lane.b32.xlu0 %v1373, 66
    %v1392 = vpop.permute.xlu0 %1391
    %1393 = vrot.lane.b32.xlu0 %v1374, 66
    %v1394 = vpop.permute.xlu0 %1393
    %1395 = vrot.lane.b32.xlu0 %v1375, 66
    %v1396 = vpop.permute.xlu0 %1395
    %1397 = vrot.lane.b32.xlu0 %v1376, 66
    %v1398 = vpop.permute.xlu0 %1397
    %1399 = vrot.lane.b32.xlu0 %v1377, 66
    %v1400 = vpop.permute.xlu0 %1399
    %1401 = vrot.lane.b32.xlu0 %v1378, 66
    %v1402 = vpop.permute.xlu0 %1401
    %v1403 = vsel %vm119, %v1388, %v1390
    %v1404 = vsel %vm119, %v1390, %v1392
    %v1405 = vsel %vm119, %v1392, %v1394
    %v1406 = vsel %vm119, %v1394, %v1396
    %v1407 = vsel %vm119, %v1396, %v1398
    %v1408 = vsel %vm119, %v1398, %v1400
    %v1409 = vsel %vm119, %v1400, %v1402
    %1417 = vst [vmem:[#allocation4 + $0x380] sm:$0xff] %v1403
    %1418 = vst [vmem:[#allocation4 + $0x388] sm:$0xff] %v1404
    %1419 = vst [vmem:[#allocation4 + $0x390] sm:$0xff] %v1405
    %1420 = vst [vmem:[#allocation4 + $0x398] sm:$0xff] %v1406
    %1421 = vst [vmem:[#allocation4 + $0x3a0] sm:$0xff] %v1407
    %1422 = vst [vmem:[#allocation4 + $0x3a8] sm:$0xff] %v1408
    %1423 = vst.msk [vmem:[#allocation4 + $0x3b0] sm:$0xff] %vm131, %v1409
    %v1424 = vld [vmem:[#allocation3 + $0x38] sm:$0xff]
    %v1425 = vld [vmem:[#allocation3 + $0x40] sm:$0xff]
    %v1426 = vld [vmem:[#allocation3 + $0x48] sm:$0xff]
    %v1427 = vld [vmem:[#allocation3 + $0x50] sm:$0xff]
    %v1428 = vld [vmem:[#allocation3 + $0x58] sm:$0xff]
    %v1429 = vld [vmem:[#allocation3 + $0x60] sm:$0xff]
    %v1430 = vld [vmem:[#allocation3 + $0x68] sm:$0xff]
    %1438 = vrot.lane.b32.xlu0 %v1424, 64
    %v1439 = vpop.permute.xlu0 %1438
    %1440 = vrot.lane.b32.xlu0 %v1425, 64
    %v1441 = vpop.permute.xlu0 %1440
    %1442 = vrot.lane.b32.xlu0 %v1426, 64
    %v1443 = vpop.permute.xlu0 %1442
    %1444 = vrot.lane.b32.xlu0 %v1427, 64
    %v1445 = vpop.permute.xlu0 %1444
    %1446 = vrot.lane.b32.xlu0 %v1428, 64
    %v1447 = vpop.permute.xlu0 %1446
    %1448 = vrot.lane.b32.xlu0 %v1429, 64
    %v1449 = vpop.permute.xlu0 %1448
    %1450 = vrot.lane.b32.xlu0 %v1430, 64
    %v1451 = vpop.permute.xlu0 %1450
    %vm1452 = vcmask 523264
    %v1453 = vsel %vm1452, %v1439, %v1441
    %v1454 = vsel %vm1452, %v1441, %v1443
    %v1455 = vsel %vm1452, %v1443, %v1445
    %v1456 = vsel %vm1452, %v1445, %v1447
    %v1457 = vsel %vm1452, %v1447, %v1449
    %v1458 = vsel %vm1452, %v1449, %v1451
    %vm1467 = vcmask 1048128
    %1468 = vst.msk [vmem:[#allocation4 + $0x30] sm:$0xff] %vm1467, %v1439
    %1469 = vst [vmem:[#allocation4 + $0x38] sm:$0xff] %v1453
    %1470 = vst [vmem:[#allocation4 + $0x40] sm:$0xff] %v1454
    %1471 = vst [vmem:[#allocation4 + $0x48] sm:$0xff] %v1455
    %1472 = vst [vmem:[#allocation4 + $0x50] sm:$0xff] %v1456
    %1473 = vst [vmem:[#allocation4 + $0x58] sm:$0xff] %v1457
    %1474 = vst [vmem:[#allocation4 + $0x60] sm:$0xff] %v1458
    %1475 = vst.msk [vmem:[#allocation4 + $0x68] sm:$0xff] %vm962, %v1451
    %v1476 = vld [vmem:[#allocation3 + $0x38] sm:$0xff]
    %v1477 = vld [vmem:[#allocation3 + $0x40] sm:$0xff]
    %v1478 = vld [vmem:[#allocation3 + $0x48] sm:$0xff]
    %v1479 = vld [vmem:[#allocation3 + $0x50] sm:$0xff]
    %v1480 = vld [vmem:[#allocation3 + $0x58] sm:$0xff]
    %v1481 = vld [vmem:[#allocation3 + $0x60] sm:$0xff]
    %v1482 = vld [vmem:[#allocation3 + $0x68] sm:$0xff]
    %1490 = vrot.lane.b32.xlu0 %v1476, 63
    %v1491 = vpop.permute.xlu0 %1490
    %1492 = vrot.lane.b32.xlu0 %v1477, 63
    %v1493 = vpop.permute.xlu0 %1492
    %1494 = vrot.lane.b32.xlu0 %v1478, 63
    %v1495 = vpop.permute.xlu0 %1494
    %1496 = vrot.lane.b32.xlu0 %v1479, 63
    %v1497 = vpop.permute.xlu0 %1496
    %1498 = vrot.lane.b32.xlu0 %v1480, 63
    %v1499 = vpop.permute.xlu0 %1498
    %1500 = vrot.lane.b32.xlu0 %v1481, 63
    %v1501 = vpop.permute.xlu0 %1500
    %1502 = vrot.lane.b32.xlu0 %v1482, 63
    %v1503 = vpop.permute.xlu0 %1502
    %vm1504 = vcmask 515072
    %v1505 = vsel %vm1504, %v1491, %v1493
    %v1506 = vsel %vm1504, %v1493, %v1495
    %v1507 = vsel %vm1504, %v1495, %v1497
    %v1508 = vsel %vm1504, %v1497, %v1499
    %v1509 = vsel %vm1504, %v1499, %v1501
    %v1510 = vsel %vm1504, %v1501, %v1503
    %1519 = vst.msk [vmem:[#allocation4 + $0xa0] sm:$0xff] %vm1467, %v1491
    %1520 = vst [vmem:[#allocation4 + $0xa8] sm:$0xff] %v1505
    %1521 = vst [vmem:[#allocation4 + $0xb0] sm:$0xff] %v1506
    %1522 = vst [vmem:[#allocation4 + $0xb8] sm:$0xff] %v1507
    %1523 = vst [vmem:[#allocation4 + $0xc0] sm:$0xff] %v1508
    %1524 = vst [vmem:[#allocation4 + $0xc8] sm:$0xff] %v1509
    %1525 = vst [vmem:[#allocation4 + $0xd0] sm:$0xff] %v1510
    %1526 = vst.msk [vmem:[#allocation4 + $0xd8] sm:$0xff] %vm962, %v1503
    %v1527 = vld [vmem:[#allocation3 + $0x38] sm:$0xff]
    %v1528 = vld [vmem:[#allocation3 + $0x40] sm:$0xff]
    %v1529 = vld [vmem:[#allocation3 + $0x48] sm:$0xff]
    %v1530 = vld [vmem:[#allocation3 + $0x50] sm:$0xff]
    %v1531 = vld [vmem:[#allocation3 + $0x58] sm:$0xff]
    %v1532 = vld [vmem:[#allocation3 + $0x60] sm:$0xff]
    %v1533 = vld [vmem:[#allocation3 + $0x68] sm:$0xff]
    %1541 = vrot.lane.b32.xlu0 %v1527, 62
    %v1542 = vpop.permute.xlu0 %1541
    %1543 = vrot.lane.b32.xlu0 %v1528, 62
    %v1544 = vpop.permute.xlu0 %1543
    %1545 = vrot.lane.b32.xlu0 %v1529, 62
    %v1546 = vpop.permute.xlu0 %1545
    %1547 = vrot.lane.b32.xlu0 %v1530, 62
    %v1548 = vpop.permute.xlu0 %1547
    %1549 = vrot.lane.b32.xlu0 %v1531, 62
    %v1550 = vpop.permute.xlu0 %1549
    %1551 = vrot.lane.b32.xlu0 %v1532, 62
    %v1552 = vpop.permute.xlu0 %1551
    %1553 = vrot.lane.b32.xlu0 %v1533, 62
    %v1554 = vpop.permute.xlu0 %1553
    %vm1555 = vcmask 506880
    %v1556 = vsel %vm1555, %v1542, %v1544
    %v1557 = vsel %vm1555, %v1544, %v1546
    %v1558 = vsel %vm1555, %v1546, %v1548
    %v1559 = vsel %vm1555, %v1548, %v1550
    %v1560 = vsel %vm1555, %v1550, %v1552
    %v1561 = vsel %vm1555, %v1552, %v1554
    %1570 = vst.msk [vmem:[#allocation4 + $0x110] sm:$0xff] %vm1467, %v1542
    %1571 = vst [vmem:[#allocation4 + $0x118] sm:$0xff] %v1556
    %1572 = vst [vmem:[#allocation4 + $0x120] sm:$0xff] %v1557
    %1573 = vst [vmem:[#allocation4 + $0x128] sm:$0xff] %v1558
    %1574 = vst [vmem:[#allocation4 + $0x130] sm:$0xff] %v1559
    %1575 = vst [vmem:[#allocation4 + $0x138] sm:$0xff] %v1560
    %1576 = vst [vmem:[#allocation4 + $0x140] sm:$0xff] %v1561
    %1577 = vst.msk [vmem:[#allocation4 + $0x148] sm:$0xff] %vm962, %v1554
    %v1578 = vld [vmem:[#allocation3 + $0x38] sm:$0xff]
    %v1579 = vld [vmem:[#allocation3 + $0x40] sm:$0xff]
    %v1580 = vld [vmem:[#allocation3 + $0x48] sm:$0xff]
    %v1581 = vld [vmem:[#allocation3 + $0x50] sm:$0xff]
    %v1582 = vld [vmem:[#allocation3 + $0x58] sm:$0xff]
    %v1583 = vld [vmem:[#allocation3 + $0x60] sm:$0xff]
    %v1584 = vld [vmem:[#allocation3 + $0x68] sm:$0xff]
    %1592 = vrot.lane.b32.xlu0 %v1578, 34
    %v1593 = vpop.permute.xlu0 %1592
    %1594 = vrot.lane.b32.xlu0 %v1579, 34
    %v1595 = vpop.permute.xlu0 %1594
    %1596 = vrot.lane.b32.xlu0 %v1580, 34
    %v1597 = vpop.permute.xlu0 %1596
    %1598 = vrot.lane.b32.xlu0 %v1581, 34
    %v1599 = vpop.permute.xlu0 %1598
    %1600 = vrot.lane.b32.xlu0 %v1582, 34
    %v1601 = vpop.permute.xlu0 %1600
    %1602 = vrot.lane.b32.xlu0 %v1583, 34
    %v1603 = vpop.permute.xlu0 %1602
    %1604 = vrot.lane.b32.xlu0 %v1584, 34
    %v1605 = vpop.permute.xlu0 %1604
    %vm1606 = vcmask 277504
    %v1607 = vsel %vm1606, %v1593, %v1595
    %v1608 = vsel %vm1606, %v1595, %v1597
    %v1609 = vsel %vm1606, %v1597, %v1599
    %v1610 = vsel %vm1606, %v1599, %v1601
    %v1611 = vsel %vm1606, %v1601, %v1603
    %v1612 = vsel %vm1606, %v1603, %v1605
    %1621 = vst.msk [vmem:[#allocation4 + $0x180] sm:$0xff] %vm1467, %v1593
    %1622 = vst [vmem:[#allocation4 + $0x188] sm:$0xff] %v1607
    %1623 = vst [vmem:[#allocation4 + $0x190] sm:$0xff] %v1608
    %1624 = vst [vmem:[#allocation4 + $0x198] sm:$0xff] %v1609
    %1625 = vst [vmem:[#allocation4 + $0x1a0] sm:$0xff] %v1610
    %1626 = vst [vmem:[#allocation4 + $0x1a8] sm:$0xff] %v1611
    %1627 = vst [vmem:[#allocation4 + $0x1b0] sm:$0xff] %v1612
    %1628 = vst.msk [vmem:[#allocation4 + $0x1b8] sm:$0xff] %vm962, %v1605
    %v1629 = vld [vmem:[#allocation3 + $0x38] sm:$0xff]
    %v1630 = vld [vmem:[#allocation3 + $0x40] sm:$0xff]
    %v1631 = vld [vmem:[#allocation3 + $0x48] sm:$0xff]
    %v1632 = vld [vmem:[#allocation3 + $0x50] sm:$0xff]
    %v1633 = vld [vmem:[#allocation3 + $0x58] sm:$0xff]
    %v1634 = vld [vmem:[#allocation3 + $0x60] sm:$0xff]
    %v1635 = vld [vmem:[#allocation3 + $0x68] sm:$0xff]
    %1643 = vrot.lane.b32.xlu0 %v1629, 33
    %v1644 = vpop.permute.xlu0 %1643
    %1645 = vrot.lane.b32.xlu0 %v1630, 33
    %v1646 = vpop.permute.xlu0 %1645
    %1647 = vrot.lane.b32.xlu0 %v1631, 33
    %v1648 = vpop.permute.xlu0 %1647
    %1649 = vrot.lane.b32.xlu0 %v1632, 33
    %v1650 = vpop.permute.xlu0 %1649
    %1651 = vrot.lane.b32.xlu0 %v1633, 33
    %v1652 = vpop.permute.xlu0 %1651
    %1653 = vrot.lane.b32.xlu0 %v1634, 33
    %v1654 = vpop.permute.xlu0 %1653
    %1655 = vrot.lane.b32.xlu0 %v1635, 33
    %v1656 = vpop.permute.xlu0 %1655
    %vm1657 = vcmask 269312
    %v1658 = vsel %vm1657, %v1644, %v1646
    %v1659 = vsel %vm1657, %v1646, %v1648
    %v1660 = vsel %vm1657, %v1648, %v1650
    %v1661 = vsel %vm1657, %v1650, %v1652
    %v1662 = vsel %vm1657, %v1652, %v1654
    %v1663 = vsel %vm1657, %v1654, %v1656
    %1672 = vst.msk [vmem:[#allocation4 + $0x1f0] sm:$0xff] %vm1467, %v1644
    %1673 = vst [vmem:[#allocation4 + $0x1f8] sm:$0xff] %v1658
    %1674 = vst [vmem:[#allocation4 + $0x200] sm:$0xff] %v1659
    %1675 = vst [vmem:[#allocation4 + $0x208] sm:$0xff] %v1660
    %1676 = vst [vmem:[#allocation4 + $0x210] sm:$0xff] %v1661
    %1677 = vst [vmem:[#allocation4 + $0x218] sm:$0xff] %v1662
    %1678 = vst [vmem:[#allocation4 + $0x220] sm:$0xff] %v1663
    %1679 = vst.msk [vmem:[#allocation4 + $0x228] sm:$0xff] %vm962, %v1656
    %v1680 = vld [vmem:[#allocation3 + $0x38] sm:$0xff]
    %v1681 = vld [vmem:[#allocation3 + $0x40] sm:$0xff]
    %v1682 = vld [vmem:[#allocation3 + $0x48] sm:$0xff]
    %v1683 = vld [vmem:[#allocation3 + $0x50] sm:$0xff]
    %v1684 = vld [vmem:[#allocation3 + $0x58] sm:$0xff]
    %v1685 = vld [vmem:[#allocation3 + $0x60] sm:$0xff]
    %v1686 = vld [vmem:[#allocation3 + $0x68] sm:$0xff]
    %1694 = vrot.lane.b32.xlu0 %v1680, 32
    %v1695 = vpop.permute.xlu0 %1694
    %1696 = vrot.lane.b32.xlu0 %v1681, 32
    %v1697 = vpop.permute.xlu0 %1696
    %1698 = vrot.lane.b32.xlu0 %v1682, 32
    %v1699 = vpop.permute.xlu0 %1698
    %1700 = vrot.lane.b32.xlu0 %v1683, 32
    %v1701 = vpop.permute.xlu0 %1700
    %1702 = vrot.lane.b32.xlu0 %v1684, 32
    %v1703 = vpop.permute.xlu0 %1702
    %1704 = vrot.lane.b32.xlu0 %v1685, 32
    %v1705 = vpop.permute.xlu0 %1704
    %1706 = vrot.lane.b32.xlu0 %v1686, 32
    %v1707 = vpop.permute.xlu0 %1706
    %vm1708 = vcmask 261120
    %v1709 = vsel %vm1708, %v1695, %v1697
    %v1710 = vsel %vm1708, %v1697, %v1699
    %v1711 = vsel %vm1708, %v1699, %v1701
    %v1712 = vsel %vm1708, %v1701, %v1703
    %v1713 = vsel %vm1708, %v1703, %v1705
    %v1714 = vsel %vm1708, %v1705, %v1707
    %1723 = vst.msk [vmem:[#allocation4 + $0x260] sm:$0xff] %vm1467, %v1695
    %1724 = vst [vmem:[#allocation4 + $0x268] sm:$0xff] %v1709
    %1725 = vst [vmem:[#allocation4 + $0x270] sm:$0xff] %v1710
    %1726 = vst [vmem:[#allocation4 + $0x278] sm:$0xff] %v1711
    %1727 = vst [vmem:[#allocation4 + $0x280] sm:$0xff] %v1712
    %1728 = vst [vmem:[#allocation4 + $0x288] sm:$0xff] %v1713
    %1729 = vst [vmem:[#allocation4 + $0x290] sm:$0xff] %v1714
    %1730 = vst.msk [vmem:[#allocation4 + $0x298] sm:$0xff] %vm962, %v1707
    %v1731 = vld [vmem:[#allocation3 + $0x38] sm:$0xff]
    %v1732 = vld [vmem:[#allocation3 + $0x40] sm:$0xff]
    %v1733 = vld [vmem:[#allocation3 + $0x48] sm:$0xff]
    %v1734 = vld [vmem:[#allocation3 + $0x50] sm:$0xff]
    %v1735 = vld [vmem:[#allocation3 + $0x58] sm:$0xff]
    %v1736 = vld [vmem:[#allocation3 + $0x60] sm:$0xff]
    %v1737 = vld [vmem:[#allocation3 + $0x68] sm:$0xff]
    %v1738 = vld [vmem:[#allocation3 + $0x70] sm:$0xff]
    %1747 = vrot.lane.b32.xlu0 %v1731, 4
    %v1748 = vpop.permute.xlu0 %1747
    %1749 = vrot.lane.b32.xlu0 %v1732, 4
    %v1750 = vpop.permute.xlu0 %1749
    %1751 = vrot.lane.b32.xlu0 %v1733, 4
    %v1752 = vpop.permute.xlu0 %1751
    %1753 = vrot.lane.b32.xlu0 %v1734, 4
    %v1754 = vpop.permute.xlu0 %1753
    %1755 = vrot.lane.b32.xlu0 %v1735, 4
    %v1756 = vpop.permute.xlu0 %1755
    %1757 = vrot.lane.b32.xlu0 %v1736, 4
    %v1758 = vpop.permute.xlu0 %1757
    %1759 = vrot.lane.b32.xlu0 %v1737, 4
    %v1760 = vpop.permute.xlu0 %1759
    %1761 = vrot.lane.b32.xlu0 %v1738, 4
    %v1762 = vpop.permute.xlu0 %1761
    %vm1763 = vcmask 31744
    %v1764 = vsel %vm1763, %v1748, %v1750
    %v1765 = vsel %vm1763, %v1750, %v1752
    %v1766 = vsel %vm1763, %v1752, %v1754
    %v1767 = vsel %vm1763, %v1754, %v1756
    %v1768 = vsel %vm1763, %v1756, %v1758
    %v1769 = vsel %vm1763, %v1758, %v1760
    %v1770 = vsel %vm1763, %v1760, %v1762
    %1779 = vst.msk [vmem:[#allocation4 + $0x2d0] sm:$0xff] %vm1467, %v1748
    %1780 = vst [vmem:[#allocation4 + $0x2d8] sm:$0xff] %v1764
    %1781 = vst [vmem:[#allocation4 + $0x2e0] sm:$0xff] %v1765
    %1782 = vst [vmem:[#allocation4 + $0x2e8] sm:$0xff] %v1766
    %1783 = vst [vmem:[#allocation4 + $0x2f0] sm:$0xff] %v1767
    %1784 = vst [vmem:[#allocation4 + $0x2f8] sm:$0xff] %v1768
    %1785 = vst [vmem:[#allocation4 + $0x300] sm:$0xff] %v1769
    %1786 = vst.msk [vmem:[#allocation4 + $0x308] sm:$0xff] %vm962, %v1770
    %v1787 = vld [vmem:[#allocation3 + $0x38] sm:$0xff]
    %v1788 = vld [vmem:[#allocation3 + $0x40] sm:$0xff]
    %v1789 = vld [vmem:[#allocation3 + $0x48] sm:$0xff]
    %v1790 = vld [vmem:[#allocation3 + $0x50] sm:$0xff]
    %v1791 = vld [vmem:[#allocation3 + $0x58] sm:$0xff]
    %v1792 = vld [vmem:[#allocation3 + $0x60] sm:$0xff]
    %v1793 = vld [vmem:[#allocation3 + $0x68] sm:$0xff]
    %v1794 = vld [vmem:[#allocation3 + $0x70] sm:$0xff]
    %1803 = vrot.lane.b32.xlu0 %v1787, 3
    %v1804 = vpop.permute.xlu0 %1803
    %1805 = vrot.lane.b32.xlu0 %v1788, 3
    %v1806 = vpop.permute.xlu0 %1805
    %1807 = vrot.lane.b32.xlu0 %v1789, 3
    %v1808 = vpop.permute.xlu0 %1807
    %1809 = vrot.lane.b32.xlu0 %v1790, 3
    %v1810 = vpop.permute.xlu0 %1809
    %1811 = vrot.lane.b32.xlu0 %v1791, 3
    %v1812 = vpop.permute.xlu0 %1811
    %1813 = vrot.lane.b32.xlu0 %v1792, 3
    %v1814 = vpop.permute.xlu0 %1813
    %1815 = vrot.lane.b32.xlu0 %v1793, 3
    %v1816 = vpop.permute.xlu0 %1815
    %1817 = vrot.lane.b32.xlu0 %v1794, 3
    %v1818 = vpop.permute.xlu0 %1817
    %vm1819 = vcmask 23552
    %v1820 = vsel %vm1819, %v1804, %v1806
    %v1821 = vsel %vm1819, %v1806, %v1808
    %v1822 = vsel %vm1819, %v1808, %v1810
    %v1823 = vsel %vm1819, %v1810, %v1812
    %v1824 = vsel %vm1819, %v1812, %v1814
    %v1825 = vsel %vm1819, %v1814, %v1816
    %v1826 = vsel %vm1819, %v1816, %v1818
    %1835 = vst.msk [vmem:[#allocation4 + $0x340] sm:$0xff] %vm1467, %v1804
    %1836 = vst [vmem:[#allocation4 + $0x348] sm:$0xff] %v1820
    %1837 = vst [vmem:[#allocation4 + $0x350] sm:$0xff] %v1821
    %1838 = vst [vmem:[#allocation4 + $0x358] sm:$0xff] %v1822
    %1839 = vst [vmem:[#allocation4 + $0x360] sm:$0xff] %v1823
    %1840 = vst [vmem:[#allocation4 + $0x368] sm:$0xff] %v1824
    %1841 = vst [vmem:[#allocation4 + $0x370] sm:$0xff] %v1825
    %1842 = vst.msk [vmem:[#allocation4 + $0x378] sm:$0xff] %vm962, %v1826
    %v1843 = vld [vmem:[#allocation3 + $0x38] sm:$0xff]
    %v1844 = vld [vmem:[#allocation3 + $0x40] sm:$0xff]
    %v1845 = vld [vmem:[#allocation3 + $0x48] sm:$0xff]
    %v1846 = vld [vmem:[#allocation3 + $0x50] sm:$0xff]
    %v1847 = vld [vmem:[#allocation3 + $0x58] sm:$0xff]
    %v1848 = vld [vmem:[#allocation3 + $0x60] sm:$0xff]
    %v1849 = vld [vmem:[#allocation3 + $0x68] sm:$0xff]
    %v1850 = vld [vmem:[#allocation3 + $0x70] sm:$0xff]
    %1859 = vrot.lane.b32.xlu0 %v1843, 2
    %v1860 = vpop.permute.xlu0 %1859
    %1861 = vrot.lane.b32.xlu0 %v1844, 2
    %v1862 = vpop.permute.xlu0 %1861
    %1863 = vrot.lane.b32.xlu0 %v1845, 2
    %v1864 = vpop.permute.xlu0 %1863
    %1865 = vrot.lane.b32.xlu0 %v1846, 2
    %v1866 = vpop.permute.xlu0 %1865
    %1867 = vrot.lane.b32.xlu0 %v1847, 2
    %v1868 = vpop.permute.xlu0 %1867
    %1869 = vrot.lane.b32.xlu0 %v1848, 2
    %v1870 = vpop.permute.xlu0 %1869
    %1871 = vrot.lane.b32.xlu0 %v1849, 2
    %v1872 = vpop.permute.xlu0 %1871
    %1873 = vrot.lane.b32.xlu0 %v1850, 2
    %v1874 = vpop.permute.xlu0 %1873
    %vm1875 = vcmask 15360
    %v1876 = vsel %vm1875, %v1860, %v1862
    %v1877 = vsel %vm1875, %v1862, %v1864
    %v1878 = vsel %vm1875, %v1864, %v1866
    %v1879 = vsel %vm1875, %v1866, %v1868
    %v1880 = vsel %vm1875, %v1868, %v1870
    %v1881 = vsel %vm1875, %v1870, %v1872
    %v1882 = vsel %vm1875, %v1872, %v1874
    %1891 = vst.msk [vmem:[#allocation4 + $0x3b0] sm:$0xff] %vm1467, %v1860
    %1892 = vst [vmem:[#allocation4 + $0x3b8] sm:$0xff] %v1876
    %1893 = vst [vmem:[#allocation4 + $0x3c0] sm:$0xff] %v1877
    %1894 = vst [vmem:[#allocation4 + $0x3c8] sm:$0xff] %v1878
    %1895 = vst [vmem:[#allocation4 + $0x3d0] sm:$0xff] %v1879
    %1896 = vst [vmem:[#allocation4 + $0x3d8] sm:$0xff] %v1880
    %1897 = vst [vmem:[#allocation4 + $0x3e0] sm:$0xff] %v1881
    %1898 = vst.msk [vmem:[#allocation4 + $0x3e8] sm:$0xff] %vm962, %v1882
    %v1899 = vld [vmem:[%s3] sm:$0xff]
    %v1900 = vld [vmem:[#allocation4] sm:$0xff]
    %v1901 = vld [vmem:[#allocation4 + $0x8] sm:$0xff]
    %v1902 = vld [vmem:[#allocation4 + $0x10] sm:$0xff]
    %v1903 = vld [vmem:[#allocation4 + $0x18] sm:$0xff]
    %v1904 = vld [vmem:[#allocation4 + $0x20] sm:$0xff]
    %v1905 = vld [vmem:[#allocation4 + $0x28] sm:$0xff]
    %v1906 = vld [vmem:[#allocation4 + $0x30] sm:$0xff]
    %v1907 = vld [vmem:[#allocation4 + $0x38] sm:$0xff]
    %v1908 = vld [vmem:[#allocation4 + $0x40] sm:$0xff]
    %v1909 = vld [vmem:[#allocation4 + $0x48] sm:$0xff]
    %v1910 = vld [vmem:[#allocation4 + $0x50] sm:$0xff]
    %v1911 = vld [vmem:[#allocation4 + $0x58] sm:$0xff]
    %v1912 = vld [vmem:[#allocation4 + $0x60] sm:$0xff]
    %v1913 = vld [vmem:[#allocation4 + $0x68] sm:$0xff]
    %v1914 = vld [vmem:[#allocation4 + $0x70] sm:$0xff]
    %v1915 = vld [vmem:[#allocation4 + $0x78] sm:$0xff]
    %v1916 = vld [vmem:[#allocation4 + $0x80] sm:$0xff]
    %v1917 = vld [vmem:[#allocation4 + $0x88] sm:$0xff]
    %v1918 = vld [vmem:[#allocation4 + $0x90] sm:$0xff]
    %v1919 = vld [vmem:[#allocation4 + $0x98] sm:$0xff]
    %v1920 = vld [vmem:[#allocation4 + $0xa0] sm:$0xff]
    %v1921 = vld [vmem:[#allocation4 + $0xa8] sm:$0xff]
    %v1922 = vld [vmem:[#allocation4 + $0xb0] sm:$0xff]
    %v1923 = vld [vmem:[#allocation4 + $0xb8] sm:$0xff]
    %v1924 = vld [vmem:[#allocation4 + $0xc0] sm:$0xff]
    %v1925 = vld [vmem:[#allocation4 + $0xc8] sm:$0xff]
    %v1926 = vld [vmem:[#allocation4 + $0xd0] sm:$0xff]
    %v1927 = vld [vmem:[#allocation4 + $0xd8] sm:$0xff]
    %v1928 = vld [vmem:[#allocation4 + $0xe0] sm:$0xff]
    %v1929 = vld [vmem:[#allocation4 + $0xe8] sm:$0xff]
    %v1930 = vld [vmem:[#allocation4 + $0xf0] sm:$0xff]
    %v1931 = vld [vmem:[#allocation4 + $0xf8] sm:$0xff]
    %v1932 = vld [vmem:[#allocation4 + $0x100] sm:$0xff]
    %v1933 = vld [vmem:[#allocation4 + $0x108] sm:$0xff]
    %v1934 = vld [vmem:[#allocation4 + $0x110] sm:$0xff]
    %v1935 = vld [vmem:[#allocation4 + $0x118] sm:$0xff]
    %v1936 = vld [vmem:[#allocation4 + $0x120] sm:$0xff]
    %v1937 = vld [vmem:[#allocation4 + $0x128] sm:$0xff]
    %v1938 = vld [vmem:[#allocation4 + $0x130] sm:$0xff]
    %v1939 = vld [vmem:[#allocation4 + $0x138] sm:$0xff]
    %v1940 = vld [vmem:[#allocation4 + $0x140] sm:$0xff]
    %v1941 = vld [vmem:[#allocation4 + $0x148] sm:$0xff]
    %v1942 = vld [vmem:[#allocation4 + $0x150] sm:$0xff]
    %v1943 = vld [vmem:[#allocation4 + $0x158] sm:$0xff]
    %v1944 = vld [vmem:[#allocation4 + $0x160] sm:$0xff]
    %v1945 = vld [vmem:[#allocation4 + $0x168] sm:$0xff]
    %v1946 = vld [vmem:[#allocation4 + $0x170] sm:$0xff]
    %v1947 = vld [vmem:[#allocation4 + $0x178] sm:$0xff]
    %v1948 = vld [vmem:[#allocation4 + $0x180] sm:$0xff]
    %v1949 = vld [vmem:[#allocation4 + $0x188] sm:$0xff]
    %v1950 = vld [vmem:[#allocation4 + $0x190] sm:$0xff]
    %v1951 = vld [vmem:[#allocation4 + $0x198] sm:$0xff]
    %v1952 = vld [vmem:[#allocation4 + $0x1a0] sm:$0xff]
    %v1953 = vld [vmem:[#allocation4 + $0x1a8] sm:$0xff]
    %v1954 = vld [vmem:[#allocation4 + $0x1b0] sm:$0xff]
    %v1955 = vld [vmem:[#allocation4 + $0x1b8] sm:$0xff]
    %v1956 = vld [vmem:[#allocation4 + $0x1c0] sm:$0xff]
    %v1957 = vld [vmem:[#allocation4 + $0x1c8] sm:$0xff]
    %v1958 = vld [vmem:[#allocation4 + $0x1d0] sm:$0xff]
    %v1959 = vld [vmem:[#allocation4 + $0x1d8] sm:$0xff]
    %v1960 = vld [vmem:[#allocation4 + $0x1e0] sm:$0xff]
    %v1961 = vld [vmem:[#allocation4 + $0x1e8] sm:$0xff]
    %v1962 = vld [vmem:[#allocation4 + $0x1f0] sm:$0xff]
    %v1963 = vld [vmem:[#allocation4 + $0x1f8] sm:$0xff]
    %v1964 = vld [vmem:[#allocation4 + $0x200] sm:$0xff]
    %v1965 = vld [vmem:[#allocation4 + $0x208] sm:$0xff]
    %v1966 = vld [vmem:[#allocation4 + $0x210] sm:$0xff]
    %v1967 = vld [vmem:[#allocation4 + $0x218] sm:$0xff]
    %v1968 = vld [vmem:[#allocation4 + $0x220] sm:$0xff]
    %v1969 = vld [vmem:[#allocation4 + $0x228] sm:$0xff]
    %v1970 = vld [vmem:[#allocation4 + $0x230] sm:$0xff]
    %v1971 = vld [vmem:[#allocation4 + $0x238] sm:$0xff]
    %v1972 = vld [vmem:[#allocation4 + $0x240] sm:$0xff]
    %v1973 = vld [vmem:[#allocation4 + $0x248] sm:$0xff]
    %v1974 = vld [vmem:[#allocation4 + $0x250] sm:$0xff]
    %v1975 = vld [vmem:[#allocation4 + $0x258] sm:$0xff]
    %v1976 = vld [vmem:[#allocation4 + $0x260] sm:$0xff]
    %v1977 = vld [vmem:[#allocation4 + $0x268] sm:$0xff]
    %v1978 = vld [vmem:[#allocation4 + $0x270] sm:$0xff]
    %v1979 = vld [vmem:[#allocation4 + $0x278] sm:$0xff]
    %v1980 = vld [vmem:[#allocation4 + $0x280] sm:$0xff]
    %v1981 = vld [vmem:[#allocation4 + $0x288] sm:$0xff]
    %v1982 = vld [vmem:[#allocation4 + $0x290] sm:$0xff]
    %v1983 = vld [vmem:[#allocation4 + $0x298] sm:$0xff]
    %v1984 = vld [vmem:[#allocation4 + $0x2a0] sm:$0xff]
    %v1985 = vld [vmem:[#allocation4 + $0x2a8] sm:$0xff]
    %v1986 = vld [vmem:[#allocation4 + $0x2b0] sm:$0xff]
    %v1987 = vld [vmem:[#allocation4 + $0x2b8] sm:$0xff]
    %v1988 = vld [vmem:[#allocation4 + $0x2c0] sm:$0xff]
    %v1989 = vld [vmem:[#allocation4 + $0x2c8] sm:$0xff]
    %v1990 = vld [vmem:[#allocation4 + $0x2d0] sm:$0xff]
    %v1991 = vld [vmem:[#allocation4 + $0x2d8] sm:$0xff]
    %v1992 = vld [vmem:[#allocation4 + $0x2e0] sm:$0xff]
    %v1993 = vld [vmem:[#allocation4 + $0x2e8] sm:$0xff]
    %v1994 = vld [vmem:[#allocation4 + $0x2f0] sm:$0xff]
    %v1995 = vld [vmem:[#allocation4 + $0x2f8] sm:$0xff]
    %v1996 = vld [vmem:[#allocation4 + $0x300] sm:$0xff]
    %v1997 = vld [vmem:[#allocation4 + $0x308] sm:$0xff]
    %v1998 = vld [vmem:[#allocation4 + $0x310] sm:$0xff]
    %v1999 = vld [vmem:[#allocation4 + $0x318] sm:$0xff]
    %v2000 = vld [vmem:[#allocation4 + $0x320] sm:$0xff]
    %v2001 = vld [vmem:[#allocation4 + $0x328] sm:$0xff]
    %v2002 = vld [vmem:[#allocation4 + $0x330] sm:$0xff]
    %v2003 = vld [vmem:[#allocation4 + $0x338] sm:$0xff]
    %v2004 = vld [vmem:[#allocation4 + $0x340] sm:$0xff]
    %v2005 = vld [vmem:[#allocation4 + $0x348] sm:$0xff]
    %v2006 = vld [vmem:[#allocation4 + $0x350] sm:$0xff]
    %v2007 = vld [vmem:[#allocation4 + $0x358] sm:$0xff]
    %v2008 = vld [vmem:[#allocation4 + $0x360] sm:$0xff]
    %v2009 = vld [vmem:[#allocation4 + $0x368] sm:$0xff]
    %v2010 = vld [vmem:[#allocation4 + $0x370] sm:$0xff]
    %v2011 = vld [vmem:[#allocation4 + $0x378] sm:$0xff]
    %v2012 = vld [vmem:[#allocation4 + $0x380] sm:$0xff]
    %v2013 = vld [vmem:[#allocation4 + $0x388] sm:$0xff]
    %v2014 = vld [vmem:[#allocation4 + $0x390] sm:$0xff]
    %v2015 = vld [vmem:[#allocation4 + $0x398] sm:$0xff]
    %v2016 = vld [vmem:[#allocation4 + $0x3a0] sm:$0xff]
    %v2017 = vld [vmem:[#allocation4 + $0x3a8] sm:$0xff]
    %v2018 = vld [vmem:[#allocation4 + $0x3b0] sm:$0xff]
    %v2019 = vld [vmem:[#allocation4 + $0x3b8] sm:$0xff]
    %v2020 = vld [vmem:[#allocation4 + $0x3c0] sm:$0xff]
    %v2021 = vld [vmem:[#allocation4 + $0x3c8] sm:$0xff]
    %v2022 = vld [vmem:[#allocation4 + $0x3d0] sm:$0xff]
    %v2023 = vld [vmem:[#allocation4 + $0x3d8] sm:$0xff]
    %v2024 = vld [vmem:[#allocation4 + $0x3e0] sm:$0xff]
    %v2025 = vld [vmem:[#allocation4 + $0x3e8] sm:$0xff]
    %v2026 = vld [vmem:[%s4] sm:$0xff]
    %2028 = vset.pattern.permute.xlu0 0
    %2029 = vperm.xlu0 %2028, %v2026
    %v2030 = vpop.permute.xlu0 %2029
    %v2033 = vsel %vm131, %v1899, 0
    %2035 = vmatprep.subr.mxu0 %v1901
    %2036 = vmatpush1.msra.mxu0 %v1900
    %2037 = vmatprep.subr.mxu0 %v1915
    %2038 = vmatpush1.msra.mxu0 %v1914
    %2039 = vmatprep.subr.mxu0 %v1929
    %2040 = vmatpush1.msra.mxu0 %v1928
    %2041 = vmatprep.subr.mxu0 %v1943
    %2042 = vmatpush1.msra.mxu0 %v1942
    %2043 = vmatprep.subr.mxu0 %v1957
    %2044 = vmatpush1.msra.mxu0 %v1956
    %2045 = vmatprep.subr.mxu0 %v1971
    %2046 = vmatpush1.msra.mxu0 %v1970
    %2047 = vmatprep.subr.mxu0 %v1985
    %2048 = vmatpush1.msra.mxu0 %v1984
    %2049 = vmatprep.subr.mxu0 %v1999
    %2050 = vmatpush1.msra.mxu0 %v1998
    %2051 = vmatprep.subr.mxu0 %v2013
    %2052 = vmatpush1.msra.mxu0 %v2012
    %2053 = vmatprep.subr.mxu0 0.0
    %2054 = vmatpush1.msra.mxu0 0.0
    %2055 = vmatprep.subr.mxu0 0.0
    %2056 = vmatpush1.msra.mxu0 0.0
    %2057 = vmatprep.subr.mxu0 0.0
    %2058 = vmatpush1.msra.mxu0 0.0
    %2059 = vmatprep.subr.mxu0 0.0
    %2060 = vmatpush1.msra.mxu0 0.0
    %2061 = vmatprep.subr.mxu0 0.0
    %2062 = vmatpush1.msra.mxu0 0.0
    %2063 = vmatprep.subr.mxu0 0.0
    %2064 = vmatpush1.msra.mxu0 0.0
    %2065 = vmatprep.subr.mxu0 0.0
    %2066 = vmatpush1.msra.mxu0 0.0
    %2067 = vmatprep.subr.mxu0 0.0
    %2068 = vmatpush1.msra.mxu0 0.0
    %2069 = vmatprep.subr.mxu0 0.0
    %2070 = vmatpush1.msra.mxu0 0.0
    %2071 = vmatprep.subr.mxu0 0.0
    %2072 = vmatpush1.msra.mxu0 0.0
    %2073 = vmatprep.subr.mxu0 0.0
    %2074 = vmatpush1.msra.mxu0 0.0
    %2075 = vmatprep.subr.mxu0 0.0
    %2076 = vmatpush1.msra.mxu0 0.0
    %2077 = vmatprep.subr.mxu0 0.0
    %2078 = vmatpush1.msra.mxu0 0.0
    %2079 = vmatprep.subr.mxu0 0.0
    %2080 = vmatpush1.msra.mxu0 0.0
    %2081 = vmatprep.subr.mxu0 0.0
    %2082 = vmatpush1.msra.mxu0 0.0
    %2083 = vmatprep.subr.mxu0 0.0
    %2084 = vmatpush1.msra.mxu0 0.0
    %2085 = vmatprep.subr.mxu0 0.0
    %2086 = vmatpush1.msra.mxu0 0.0
    %2087 = vmatprep.subr.mxu0 0.0
    %2088 = vmatpush1.msra.mxu0 0.0
    %2089 = vmatprep.subr.mxu0 0.0
    %2090 = vmatpush1.msra.mxu0 0.0
    %2091 = vmatprep.subr.mxu0 0.0
    %2092 = vmatpush1.msra.mxu0 0.0
    %2093 = vmatprep.subr.mxu0 0.0
    %2094 = vmatpush1.msra.mxu0 0.0
    %2095 = vmatprep.subr.mxu0 0.0
    %2096 = vmatpush1.msra.mxu0 0.0
    %2097 = vmatprep.subr.mxu0 0.0
    %2098 = vmatpush1.msra.mxu0 0.0
    %2099 = vmatprep.mubr.f32.mxu0 0.0
    %2100 = vmatmul.mubr.f32.gmra.mrb[0].mxu0 %v2033
    %v2101 = vpop.f32.mrb[0].mxu0
    %v2102 = vadd.f32 %v2030, %v2101
    %v2103 = vpop.f32.mrb[0].mxu0
    %v2104 = vadd.f32 %v2030, %v2103
    %2105 = vdwg.mxu0
    %2106 = vmatprep.subr.mxu0 %v1903
    %2107 = vmatpush1.msra.mxu0 %v1902
    %2108 = vmatprep.subr.mxu0 %v1917
    %2109 = vmatpush1.msra.mxu0 %v1916
    %2110 = vmatprep.subr.mxu0 %v1931
    %2111 = vmatpush1.msra.mxu0 %v1930
    %2112 = vmatprep.subr.mxu0 %v1945
    %2113 = vmatpush1.msra.mxu0 %v1944
    %2114 = vmatprep.subr.mxu0 %v1959
    %2115 = vmatpush1.msra.mxu0 %v1958
    %2116 = vmatprep.subr.mxu0 %v1973
    %2117 = vmatpush1.msra.mxu0 %v1972
    %2118 = vmatprep.subr.mxu0 %v1987
    %2119 = vmatpush1.msra.mxu0 %v1986
    %2120 = vmatprep.subr.mxu0 %v2001
    %2121 = vmatpush1.msra.mxu0 %v2000
    %2122 = vmatprep.subr.mxu0 %v2015
    %2123 = vmatpush1.msra.mxu0 %v2014
    %2124 = vmatprep.subr.mxu0 0.0
    %2125 = vmatpush1.msra.mxu0 0.0
    %2126 = vmatprep.subr.mxu0 0.0
    %2127 = vmatpush1.msra.mxu0 0.0
    %2128 = vmatprep.subr.mxu0 0.0
    %2129 = vmatpush1.msra.mxu0 0.0
    %2130 = vmatprep.subr.mxu0 0.0
    %2131 = vmatpush1.msra.mxu0 0.0
    %2132 = vmatprep.subr.mxu0 0.0
    %2133 = vmatpush1.msra.mxu0 0.0
    %2134 = vmatprep.subr.mxu0 0.0
    %2135 = vmatpush1.msra.mxu0 0.0
    %2136 = vmatprep.subr.mxu0 0.0
    %2137 = vmatpush1.msra.mxu0 0.0
    %2138 = vmatprep.subr.mxu0 0.0
    %2139 = vmatpush1.msra.mxu0 0.0
    %2140 = vmatprep.subr.mxu0 0.0
    %2141 = vmatpush1.msra.mxu0 0.0
    %2142 = vmatprep.subr.mxu0 0.0
    %2143 = vmatpush1.msra.mxu0 0.0
    %2144 = vmatprep.subr.mxu0 0.0
    %2145 = vmatpush1.msra.mxu0 0.0
    %2146 = vmatprep.subr.mxu0 0.0
    %2147 = vmatpush1.msra.mxu0 0.0
    %2148 = vmatprep.subr.mxu0 0.0
    %2149 = vmatpush1.msra.mxu0 0.0
    %2150 = vmatprep.subr.mxu0 0.0
    %2151 = vmatpush1.msra.mxu0 0.0
    %2152 = vmatprep.subr.mxu0 0.0
    %2153 = vmatpush1.msra.mxu0 0.0
    %2154 = vmatprep.subr.mxu0 0.0
    %2155 = vmatpush1.msra.mxu0 0.0
    %2156 = vmatprep.subr.mxu0 0.0
    %2157 = vmatpush1.msra.mxu0 0.0
    %2158 = vmatprep.subr.mxu0 0.0
    %2159 = vmatpush1.msra.mxu0 0.0
    %2160 = vmatprep.subr.mxu0 0.0
    %2161 = vmatpush1.msra.mxu0 0.0
    %2162 = vmatprep.subr.mxu0 0.0
    %2163 = vmatpush1.msra.mxu0 0.0
    %2164 = vmatprep.subr.mxu0 0.0
    %2165 = vmatpush1.msra.mxu0 0.0
    %2166 = vmatprep.subr.mxu0 0.0
    %2167 = vmatpush1.msra.mxu0 0.0
    %2168 = vmatprep.subr.mxu0 0.0
    %2169 = vmatpush1.msra.mxu0 0.0
    %2170 = vmatprep.mubr.f32.mxu0 0.0
    %2171 = vmatmul.mubr.f32.gmra.mrb[0].mxu0 %v2033
    %v2172 = vpop.f32.mrb[0].mxu0
    %v2173 = vadd.f32 %v2030, %v2172
    %v2174 = vpop.f32.mrb[0].mxu0
    %v2175 = vadd.f32 %v2030, %v2174
    %2176 = vdwg.mxu0
    %2177 = vmatprep.subr.mxu0 %v1905
    %2178 = vmatpush1.msra.mxu0 %v1904
    %2179 = vmatprep.subr.mxu0 %v1919
    %2180 = vmatpush1.msra.mxu0 %v1918
    %2181 = vmatprep.subr.mxu0 %v1933
    %2182 = vmatpush1.msra.mxu0 %v1932
    %2183 = vmatprep.subr.mxu0 %v1947
    %2184 = vmatpush1.msra.mxu0 %v1946
    %2185 = vmatprep.subr.mxu0 %v1961
    %2186 = vmatpush1.msra.mxu0 %v1960
    %2187 = vmatprep.subr.mxu0 %v1975
    %2188 = vmatpush1.msra.mxu0 %v1974
    %2189 = vmatprep.subr.mxu0 %v1989
    %2190 = vmatpush1.msra.mxu0 %v1988
    %2191 = vmatprep.subr.mxu0 %v2003
    %2192 = vmatpush1.msra.mxu0 %v2002
    %2193 = vmatprep.subr.mxu0 %v2017
    %2194 = vmatpush1.msra.mxu0 %v2016
    %2195 = vmatprep.subr.mxu0 0.0
    %2196 = vmatpush1.msra.mxu0 0.0
    %2197 = vmatprep.subr.mxu0 0.0
    %2198 = vmatpush1.msra.mxu0 0.0
    %2199 = vmatprep.subr.mxu0 0.0
    %2200 = vmatpush1.msra.mxu0 0.0
    %2201 = vmatprep.subr.mxu0 0.0
    %2202 = vmatpush1.msra.mxu0 0.0
    %2203 = vmatprep.subr.mxu0 0.0
    %2204 = vmatpush1.msra.mxu0 0.0
    %2205 = vmatprep.subr.mxu0 0.0
    %2206 = vmatpush1.msra.mxu0 0.0
    %2207 = vmatprep.subr.mxu0 0.0
    %2208 = vmatpush1.msra.mxu0 0.0
    %2209 = vmatprep.subr.mxu0 0.0
    %2210 = vmatpush1.msra.mxu0 0.0
    %2211 = vmatprep.subr.mxu0 0.0
    %2212 = vmatpush1.msra.mxu0 0.0
    %2213 = vmatprep.subr.mxu0 0.0
    %2214 = vmatpush1.msra.mxu0 0.0
    %2215 = vmatprep.subr.mxu0 0.0
    %2216 = vmatpush1.msra.mxu0 0.0
    %2217 = vmatprep.subr.mxu0 0.0
    %2218 = vmatpush1.msra.mxu0 0.0
    %2219 = vmatprep.subr.mxu0 0.0
    %2220 = vmatpush1.msra.mxu0 0.0
    %2221 = vmatprep.subr.mxu0 0.0
    %2222 = vmatpush1.msra.mxu0 0.0
    %2223 = vmatprep.subr.mxu0 0.0
    %2224 = vmatpush1.msra.mxu0 0.0
    %2225 = vmatprep.subr.mxu0 0.0
    %2226 = vmatpush1.msra.mxu0 0.0
    %2227 = vmatprep.subr.mxu0 0.0
    %2228 = vmatpush1.msra.mxu0 0.0
    %2229 = vmatprep.subr.mxu0 0.0
    %2230 = vmatpush1.msra.mxu0 0.0
    %2231 = vmatprep.subr.mxu0 0.0
    %2232 = vmatpush1.msra.mxu0 0.0
    %2233 = vmatprep.subr.mxu0 0.0
    %2234 = vmatpush1.msra.mxu0 0.0
    %2235 = vmatprep.subr.mxu0 0.0
    %2236 = vmatpush1.msra.mxu0 0.0
    %2237 = vmatprep.subr.mxu0 0.0
    %2238 = vmatpush1.msra.mxu0 0.0
    %2239 = vmatprep.subr.mxu0 0.0
    %2240 = vmatpush1.msra.mxu0 0.0
    %2241 = vmatprep.mubr.f32.mxu0 0.0
    %2242 = vmatmul.mubr.f32.gmra.mrb[0].mxu0 %v2033
    %v2243 = vpop.f32.mrb[0].mxu0
    %v2244 = vadd.f32 %v2030, %v2243
    %v2245 = vpop.f32.mrb[0].mxu0
    %v2246 = vadd.f32 %v2030, %v2245
    %2247 = vdwg.mxu0
    %2248 = vmatprep.subr.mxu0 %v1907
    %2249 = vmatpush1.msra.mxu0 %v1906
    %2250 = vmatprep.subr.mxu0 %v1921
    %2251 = vmatpush1.msra.mxu0 %v1920
    %2252 = vmatprep.subr.mxu0 %v1935
    %2253 = vmatpush1.msra.mxu0 %v1934
    %2254 = vmatprep.subr.mxu0 %v1949
    %2255 = vmatpush1.msra.mxu0 %v1948
    %2256 = vmatprep.subr.mxu0 %v1963
    %2257 = vmatpush1.msra.mxu0 %v1962
    %2258 = vmatprep.subr.mxu0 %v1977
    %2259 = vmatpush1.msra.mxu0 %v1976
    %2260 = vmatprep.subr.mxu0 %v1991
    %2261 = vmatpush1.msra.mxu0 %v1990
    %2262 = vmatprep.subr.mxu0 %v2005
    %2263 = vmatpush1.msra.mxu0 %v2004
    %2264 = vmatprep.subr.mxu0 %v2019
    %2265 = vmatpush1.msra.mxu0 %v2018
    %2266 = vmatprep.subr.mxu0 0.0
    %2267 = vmatpush1.msra.mxu0 0.0
    %2268 = vmatprep.subr.mxu0 0.0
    %2269 = vmatpush1.msra.mxu0 0.0
    %2270 = vmatprep.subr.mxu0 0.0
    %2271 = vmatpush1.msra.mxu0 0.0
    %2272 = vmatprep.subr.mxu0 0.0
    %2273 = vmatpush1.msra.mxu0 0.0
    %2274 = vmatprep.subr.mxu0 0.0
    %2275 = vmatpush1.msra.mxu0 0.0
    %2276 = vmatprep.subr.mxu0 0.0
    %2277 = vmatpush1.msra.mxu0 0.0
    %2278 = vmatprep.subr.mxu0 0.0
    %2279 = vmatpush1.msra.mxu0 0.0
    %2280 = vmatprep.subr.mxu0 0.0
    %2281 = vmatpush1.msra.mxu0 0.0
    %2282 = vmatprep.subr.mxu0 0.0
    %2283 = vmatpush1.msra.mxu0 0.0
    %2284 = vmatprep.subr.mxu0 0.0
    %2285 = vmatpush1.msra.mxu0 0.0
    %2286 = vmatprep.subr.mxu0 0.0
    %2287 = vmatpush1.msra.mxu0 0.0
    %2288 = vmatprep.subr.mxu0 0.0
    %2289 = vmatpush1.msra.mxu0 0.0
    %2290 = vmatprep.subr.mxu0 0.0
    %2291 = vmatpush1.msra.mxu0 0.0
    %2292 = vmatprep.subr.mxu0 0.0
    %2293 = vmatpush1.msra.mxu0 0.0
    %2294 = vmatprep.subr.mxu0 0.0
    %2295 = vmatpush1.msra.mxu0 0.0
    %2296 = vmatprep.subr.mxu0 0.0
    %2297 = vmatpush1.msra.mxu0 0.0
    %2298 = vmatprep.subr.mxu0 0.0
    %2299 = vmatpush1.msra.mxu0 0.0
    %2300 = vmatprep.subr.mxu0 0.0
    %2301 = vmatpush1.msra.mxu0 0.0
    %2302 = vmatprep.subr.mxu0 0.0
    %2303 = vmatpush1.msra.mxu0 0.0
    %2304 = vmatprep.subr.mxu0 0.0
    %2305 = vmatpush1.msra.mxu0 0.0
    %2306 = vmatprep.subr.mxu0 0.0
    %2307 = vmatpush1.msra.mxu0 0.0
    %2308 = vmatprep.subr.mxu0 0.0
    %2309 = vmatpush1.msra.mxu0 0.0
    %2310 = vmatprep.subr.mxu0 0.0
    %2311 = vmatpush1.msra.mxu0 0.0
    %2312 = vmatprep.mubr.f32.mxu0 0.0
    %2313 = vmatmul.mubr.f32.gmra.mrb[0].mxu0 %v2033
    %v2314 = vpop.f32.mrb[0].mxu0
    %v2315 = vadd.f32 %v2030, %v2314
    %v2316 = vpop.f32.mrb[0].mxu0
    %v2317 = vadd.f32 %v2030, %v2316
    %2318 = vdwg.mxu0
    %2319 = vmatprep.subr.mxu0 %v1909
    %2320 = vmatpush1.msra.mxu0 %v1908
    %2321 = vmatprep.subr.mxu0 %v1923
    %2322 = vmatpush1.msra.mxu0 %v1922
    %2323 = vmatprep.subr.mxu0 %v1937
    %2324 = vmatpush1.msra.mxu0 %v1936
    %2325 = vmatprep.subr.mxu0 %v1951
    %2326 = vmatpush1.msra.mxu0 %v1950
    %2327 = vmatprep.subr.mxu0 %v1965
    %2328 = vmatpush1.msra.mxu0 %v1964
    %2329 = vmatprep.subr.mxu0 %v1979
    %2330 = vmatpush1.msra.mxu0 %v1978
    %2331 = vmatprep.subr.mxu0 %v1993
    %2332 = vmatpush1.msra.mxu0 %v1992
    %2333 = vmatprep.subr.mxu0 %v2007
    %2334 = vmatpush1.msra.mxu0 %v2006
    %2335 = vmatprep.subr.mxu0 %v2021
    %2336 = vmatpush1.msra.mxu0 %v2020
    %2337 = vmatprep.subr.mxu0 0.0
    %2338 = vmatpush1.msra.mxu0 0.0
    %2339 = vmatprep.subr.mxu0 0.0
    %2340 = vmatpush1.msra.mxu0 0.0
    %2341 = vmatprep.subr.mxu0 0.0
    %2342 = vmatpush1.msra.mxu0 0.0
    %2343 = vmatprep.subr.mxu0 0.0
    %2344 = vmatpush1.msra.mxu0 0.0
    %2345 = vmatprep.subr.mxu0 0.0
    %2346 = vmatpush1.msra.mxu0 0.0
    %2347 = vmatprep.subr.mxu0 0.0
    %2348 = vmatpush1.msra.mxu0 0.0
    %2349 = vmatprep.subr.mxu0 0.0
    %2350 = vmatpush1.msra.mxu0 0.0
    %2351 = vmatprep.subr.mxu0 0.0
    %2352 = vmatpush1.msra.mxu0 0.0
    %2353 = vmatprep.subr.mxu0 0.0
    %2354 = vmatpush1.msra.mxu0 0.0
    %2355 = vmatprep.subr.mxu0 0.0
    %2356 = vmatpush1.msra.mxu0 0.0
    %2357 = vmatprep.subr.mxu0 0.0
    %2358 = vmatpush1.msra.mxu0 0.0
    %2359 = vmatprep.subr.mxu0 0.0
    %2360 = vmatpush1.msra.mxu0 0.0
    %2361 = vmatprep.subr.mxu0 0.0
    %2362 = vmatpush1.msra.mxu0 0.0
    %2363 = vmatprep.subr.mxu0 0.0
    %2364 = vmatpush1.msra.mxu0 0.0
    %2365 = vmatprep.subr.mxu0 0.0
    %2366 = vmatpush1.msra.mxu0 0.0
    %2367 = vmatprep.subr.mxu0 0.0
    %2368 = vmatpush1.msra.mxu0 0.0
    %2369 = vmatprep.subr.mxu0 0.0
    %2370 = vmatpush1.msra.mxu0 0.0
    %2371 = vmatprep.subr.mxu0 0.0
    %2372 = vmatpush1.msra.mxu0 0.0
    %2373 = vmatprep.subr.mxu0 0.0
    %2374 = vmatpush1.msra.mxu0 0.0
    %2375 = vmatprep.subr.mxu0 0.0
    %2376 = vmatpush1.msra.mxu0 0.0
    %2377 = vmatprep.subr.mxu0 0.0
    %2378 = vmatpush1.msra.mxu0 0.0
    %2379 = vmatprep.subr.mxu0 0.0
    %2380 = vmatpush1.msra.mxu0 0.0
    %2381 = vmatprep.subr.mxu0 0.0
    %2382 = vmatpush1.msra.mxu0 0.0
    %2383 = vmatprep.mubr.f32.mxu0 0.0
    %2384 = vmatmul.mubr.f32.gmra.mrb[0].mxu0 %v2033
    %v2385 = vpop.f32.mrb[0].mxu0
    %v2386 = vadd.f32 %v2030, %v2385
    %v2387 = vpop.f32.mrb[0].mxu0
    %v2388 = vadd.f32 %v2030, %v2387
    %2389 = vdwg.mxu0
    %2390 = vmatprep.subr.mxu0 %v1911
    %2391 = vmatpush1.msra.mxu0 %v1910
    %2392 = vmatprep.subr.mxu0 %v1925
    %2393 = vmatpush1.msra.mxu0 %v1924
    %2394 = vmatprep.subr.mxu0 %v1939
    %2395 = vmatpush1.msra.mxu0 %v1938
    %2396 = vmatprep.subr.mxu0 %v1953
    %2397 = vmatpush1.msra.mxu0 %v1952
    %2398 = vmatprep.subr.mxu0 %v1967
    %2399 = vmatpush1.msra.mxu0 %v1966
    %2400 = vmatprep.subr.mxu0 %v1981
    %2401 = vmatpush1.msra.mxu0 %v1980
    %2402 = vmatprep.subr.mxu0 %v1995
    %2403 = vmatpush1.msra.mxu0 %v1994
    %2404 = vmatprep.subr.mxu0 %v2009
    %2405 = vmatpush1.msra.mxu0 %v2008
    %2406 = vmatprep.subr.mxu0 %v2023
    %2407 = vmatpush1.msra.mxu0 %v2022
    %2408 = vmatprep.subr.mxu0 0.0
    %2409 = vmatpush1.msra.mxu0 0.0
    %2410 = vmatprep.subr.mxu0 0.0
    %2411 = vmatpush1.msra.mxu0 0.0
    %2412 = vmatprep.subr.mxu0 0.0
    %2413 = vmatpush1.msra.mxu0 0.0
    %2414 = vmatprep.subr.mxu0 0.0
    %2415 = vmatpush1.msra.mxu0 0.0
    %2416 = vmatprep.subr.mxu0 0.0
    %2417 = vmatpush1.msra.mxu0 0.0
    %2418 = vmatprep.subr.mxu0 0.0
    %2419 = vmatpush1.msra.mxu0 0.0
    %2420 = vmatprep.subr.mxu0 0.0
    %2421 = vmatpush1.msra.mxu0 0.0
    %2422 = vmatprep.subr.mxu0 0.0
    %2423 = vmatpush1.msra.mxu0 0.0
    %2424 = vmatprep.subr.mxu0 0.0
    %2425 = vmatpush1.msra.mxu0 0.0
    %2426 = vmatprep.subr.mxu0 0.0
    %2427 = vmatpush1.msra.mxu0 0.0
    %2428 = vmatprep.subr.mxu0 0.0
    %2429 = vmatpush1.msra.mxu0 0.0
    %2430 = vmatprep.subr.mxu0 0.0
    %2431 = vmatpush1.msra.mxu0 0.0
    %2432 = vmatprep.subr.mxu0 0.0
    %2433 = vmatpush1.msra.mxu0 0.0
    %2434 = vmatprep.subr.mxu0 0.0
    %2435 = vmatpush1.msra.mxu0 0.0
    %2436 = vmatprep.subr.mxu0 0.0
    %2437 = vmatpush1.msra.mxu0 0.0
    %2438 = vmatprep.subr.mxu0 0.0
    %2439 = vmatpush1.msra.mxu0 0.0
    %2440 = vmatprep.subr.mxu0 0.0
    %2441 = vmatpush1.msra.mxu0 0.0
    %2442 = vmatprep.subr.mxu0 0.0
    %2443 = vmatpush1.msra.mxu0 0.0
    %2444 = vmatprep.subr.mxu0 0.0
    %2445 = vmatpush1.msra.mxu0 0.0
    %2446 = vmatprep.subr.mxu0 0.0
    %2447 = vmatpush1.msra.mxu0 0.0
    %2448 = vmatprep.subr.mxu0 0.0
    %2449 = vmatpush1.msra.mxu0 0.0
    %2450 = vmatprep.subr.mxu0 0.0
    %2451 = vmatpush1.msra.mxu0 0.0
    %2452 = vmatprep.subr.mxu0 0.0
    %2453 = vmatpush1.msra.mxu0 0.0
    %2454 = vmatprep.mubr.f32.mxu0 0.0
    %2455 = vmatmul.mubr.f32.gmra.mrb[0].mxu0 %v2033
    %v2456 = vpop.f32.mrb[0].mxu0
    %v2457 = vadd.f32 %v2030, %v2456
    %v2458 = vpop.f32.mrb[0].mxu0
    %v2459 = vadd.f32 %v2030, %v2458
    %2460 = vdwg.mxu0
    %2461 = vmatprep.subr.mxu0 %v1913
    %2462 = vmatpush1.msra.mxu0 %v1912
    %2463 = vmatprep.subr.mxu0 %v1927
    %2464 = vmatpush1.msra.mxu0 %v1926
    %2465 = vmatprep.subr.mxu0 %v1941
    %2466 = vmatpush1.msra.mxu0 %v1940
    %2467 = vmatprep.subr.mxu0 %v1955
    %2468 = vmatpush1.msra.mxu0 %v1954
    %2469 = vmatprep.subr.mxu0 %v1969
    %2470 = vmatpush1.msra.mxu0 %v1968
    %2471 = vmatprep.subr.mxu0 %v1983
    %2472 = vmatpush1.msra.mxu0 %v1982
    %2473 = vmatprep.subr.mxu0 %v1997
    %2474 = vmatpush1.msra.mxu0 %v1996
    %2475 = vmatprep.subr.mxu0 %v2011
    %2476 = vmatpush1.msra.mxu0 %v2010
    %2477 = vmatprep.subr.mxu0 %v2025
    %2478 = vmatpush1.msra.mxu0 %v2024
    %2479 = vmatprep.subr.mxu0 0.0
    %2480 = vmatpush1.msra.mxu0 0.0
    %2481 = vmatprep.subr.mxu0 0.0
    %2482 = vmatpush1.msra.mxu0 0.0
    %2483 = vmatprep.subr.mxu0 0.0
    %2484 = vmatpush1.msra.mxu0 0.0
    %2485 = vmatprep.subr.mxu0 0.0
    %2486 = vmatpush1.msra.mxu0 0.0
    %2487 = vmatprep.subr.mxu0 0.0
    %2488 = vmatpush1.msra.mxu0 0.0
    %2489 = vmatprep.subr.mxu0 0.0
    %2490 = vmatpush1.msra.mxu0 0.0
    %2491 = vmatprep.subr.mxu0 0.0
    %2492 = vmatpush1.msra.mxu0 0.0
    %2493 = vmatprep.subr.mxu0 0.0
    %2494 = vmatpush1.msra.mxu0 0.0
    %2495 = vmatprep.subr.mxu0 0.0
    %2496 = vmatpush1.msra.mxu0 0.0
    %2497 = vmatprep.subr.mxu0 0.0
    %2498 = vmatpush1.msra.mxu0 0.0
    %2499 = vmatprep.subr.mxu0 0.0
    %2500 = vmatpush1.msra.mxu0 0.0
    %2501 = vmatprep.subr.mxu0 0.0
    %2502 = vmatpush1.msra.mxu0 0.0
    %2503 = vmatprep.subr.mxu0 0.0
    %2504 = vmatpush1.msra.mxu0 0.0
    %2505 = vmatprep.subr.mxu0 0.0
    %2506 = vmatpush1.msra.mxu0 0.0
    %2507 = vmatprep.subr.mxu0 0.0
    %2508 = vmatpush1.msra.mxu0 0.0
    %2509 = vmatprep.subr.mxu0 0.0
    %2510 = vmatpush1.msra.mxu0 0.0
    %2511 = vmatprep.subr.mxu0 0.0
    %2512 = vmatpush1.msra.mxu0 0.0
    %2513 = vmatprep.subr.mxu0 0.0
    %2514 = vmatpush1.msra.mxu0 0.0
    %2515 = vmatprep.subr.mxu0 0.0
    %2516 = vmatpush1.msra.mxu0 0.0
    %2517 = vmatprep.subr.mxu0 0.0
    %2518 = vmatpush1.msra.mxu0 0.0
    %2519 = vmatprep.subr.mxu0 0.0
    %2520 = vmatpush1.msra.mxu0 0.0
    %2521 = vmatprep.subr.mxu0 0.0
    %2522 = vmatpush1.msra.mxu0 0.0
    %2523 = vmatprep.subr.mxu0 0.0
    %2524 = vmatpush1.msra.mxu0 0.0
    %2525 = vmatprep.mubr.f32.mxu0 0.0
    %2526 = vmatmul.mubr.f32.gmra.mrb[0].mxu0 %v2033
    %v2527 = vpop.f32.mrb[0].mxu0
    %v2528 = vadd.f32 %v2030, %v2527
    %v2529 = vpop.f32.mrb[0].mxu0
    %v2530 = vadd.f32 %v2030, %v2529
    %2531 = vdwg.mxu0
    %v2532 = vmax.f32 %v2102, 0.0
    %v2533 = vmax.f32 %v2104, 0.0
    %v2534 = vmax.f32 %v2173, 0.0
    %v2535 = vmax.f32 %v2175, 0.0
    %v2536 = vmax.f32 %v2244, 0.0
    %v2537 = vmax.f32 %v2246, 0.0
    %v2538 = vmax.f32 %v2315, 0.0
    %v2539 = vmax.f32 %v2317, 0.0
    %v2540 = vmax.f32 %v2386, 0.0
    %v2541 = vmax.f32 %v2388, 0.0
    %v2542 = vmax.f32 %v2457, 0.0
    %v2543 = vmax.f32 %v2459, 0.0
    %v2544 = vmax.f32 %v2528, 0.0
    %v2545 = vmax.f32 %v2530, 0.0
    %2553 = vrot.lane.b32.xlu0 %v2532, 127
    %v2554 = vpop.permute.xlu0 %2553
    %2555 = vrot.lane.b32.xlu0 %v2533, 127
    %v2556 = vpop.permute.xlu0 %2555
    %2557 = vrot.lane.b32.xlu0 %v2534, 127
    %v2558 = vpop.permute.xlu0 %2557
    %2559 = vrot.lane.b32.xlu0 %v2535, 127
    %v2560 = vpop.permute.xlu0 %2559
    %2561 = vrot.lane.b32.xlu0 %v2536, 127
    %v2562 = vpop.permute.xlu0 %2561
    %2563 = vrot.lane.b32.xlu0 %v2537, 127
    %v2564 = vpop.permute.xlu0 %2563
    %2565 = vrot.lane.b32.xlu0 %v2538, 127
    %v2566 = vpop.permute.xlu0 %2565
    %v2567 = vsel %vm42, %v2554, %v2556
    %v2568 = vsel %vm42, %v2556, %v2558
    %v2569 = vsel %vm42, %v2558, %v2560
    %v2570 = vsel %vm42, %v2560, %v2562
    %v2571 = vsel %vm42, %v2562, %v2564
    %v2572 = vsel %vm42, %v2564, %v2566
    %v2580 = vmax.f32 %v2532, %v2567
    %v2581 = vmax.f32 %v2533, %v2568
    %v2582 = vmax.f32 %v2534, %v2569
    %v2583 = vmax.f32 %v2535, %v2570
    %v2584 = vmax.f32 %v2536, %v2571
    %v2585 = vmax.f32 %v2537, %v2572
    %v2586 = vmax.f32 %v2538, %v2566
    %2594 = vrot.lane.b32.xlu0 %v2580, 98
    %v2595 = vpop.permute.xlu0 %2594
    %2596 = vrot.lane.b32.xlu0 %v2581, 98
    %v2597 = vpop.permute.xlu0 %2596
    %2598 = vrot.lane.b32.xlu0 %v2582, 98
    %v2599 = vpop.permute.xlu0 %2598
    %2600 = vrot.lane.b32.xlu0 %v2583, 98
    %v2601 = vpop.permute.xlu0 %2600
    %2602 = vrot.lane.b32.xlu0 %v2584, 98
    %v2603 = vpop.permute.xlu0 %2602
    %2604 = vrot.lane.b32.xlu0 %v2585, 98
    %v2605 = vpop.permute.xlu0 %2604
    %2606 = vrot.lane.b32.xlu0 %v2586, 98
    %v2607 = vpop.permute.xlu0 %2606
    %v2608 = vsel %vm64, %v2595, %v2597
    %v2609 = vsel %vm64, %v2597, %v2599
    %v2610 = vsel %vm64, %v2599, %v2601
    %v2611 = vsel %vm64, %v2601, %v2603
    %v2612 = vsel %vm64, %v2603, %v2605
    %v2613 = vsel %vm64, %v2605, %v2607
    %v2621 = vmax.f32 %v2580, %v2608
    %v2622 = vmax.f32 %v2581, %v2609
    %v2623 = vmax.f32 %v2582, %v2610
    %v2624 = vmax.f32 %v2583, %v2611
    %v2625 = vmax.f32 %v2584, %v2612
    %v2626 = vmax.f32 %v2585, %v2613
    %v2627 = vmax.f32 %v2586, %v2607
    %2628 = vst [vmem:[#allocation5] sm:$0xff] %v2621
    %2629 = vst [vmem:[#allocation5 + $0x8] sm:$0xff] %v2622
    %2630 = vst [vmem:[#allocation5 + $0x10] sm:$0xff] %v2623
    %2631 = vst [vmem:[#allocation5 + $0x18] sm:$0xff] %v2624
    %2632 = vst [vmem:[#allocation5 + $0x20] sm:$0xff] %v2625
    %2633 = vst [vmem:[#allocation5 + $0x28] sm:$0xff] %v2626
    %2634 = vst.msk [vmem:[#allocation5 + $0x30] sm:$0xff] %vm189, %v2627
    %2641 = vrot.lane.b32.xlu0 %v2539, 127
    %v2642 = vpop.permute.xlu0 %2641
    %2643 = vrot.lane.b32.xlu0 %v2540, 127
    %v2644 = vpop.permute.xlu0 %2643
    %2645 = vrot.lane.b32.xlu0 %v2541, 127
    %v2646 = vpop.permute.xlu0 %2645
    %2647 = vrot.lane.b32.xlu0 %v2542, 127
    %v2648 = vpop.permute.xlu0 %2647
    %2649 = vrot.lane.b32.xlu0 %v2543, 127
    %v2650 = vpop.permute.xlu0 %2649
    %2651 = vrot.lane.b32.xlu0 %v2544, 127
    %v2652 = vpop.permute.xlu0 %2651
    %v2653 = vsel %vm42, %v2566, %v2642
    %v2654 = vsel %vm42, %v2642, %v2644
    %v2655 = vsel %vm42, %v2644, %v2646
    %v2656 = vsel %vm42, %v2646, %v2648
    %v2657 = vsel %vm42, %v2648, %v2650
    %v2658 = vsel %vm42, %v2650, %v2652
    %v2666 = vmax.f32 %v2538, %v2653
    %v2667 = vmax.f32 %v2539, %v2654
    %v2668 = vmax.f32 %v2540, %v2655
    %v2669 = vmax.f32 %v2541, %v2656
    %v2670 = vmax.f32 %v2542, %v2657
    %v2671 = vmax.f32 %v2543, %v2658
    %v2672 = vmax.f32 %v2544, %v2652
    %2674 = vrot.lane.b32.xlu0 %v2545, 127
    %v2675 = vpop.permute.xlu0 %2674
    %v2676 = vsel %vm42, %v2652, %v2675
    %v2679 = vmax.f32 %v2544, %v2676
    %v2680 = vmax.f32 %v2545, %v2675
    %2689 = vrot.lane.b32.xlu0 %v2666, 98
    %v2690 = vpop.permute.xlu0 %2689
    %2691 = vrot.lane.b32.xlu0 %v2667, 98
    %v2692 = vpop.permute.xlu0 %2691
    %2693 = vrot.lane.b32.xlu0 %v2668, 98
    %v2694 = vpop.permute.xlu0 %2693
    %2695 = vrot.lane.b32.xlu0 %v2669, 98
    %v2696 = vpop.permute.xlu0 %2695
    %2697 = vrot.lane.b32.xlu0 %v2670, 98
    %v2698 = vpop.permute.xlu0 %2697
    %2699 = vrot.lane.b32.xlu0 %v2671, 98
    %v2700 = vpop.permute.xlu0 %2699
    %2701 = vrot.lane.b32.xlu0 %v2679, 98
    %v2702 = vpop.permute.xlu0 %2701
    %2703 = vrot.lane.b32.xlu0 %v2680, 98
    %v2704 = vpop.permute.xlu0 %2703
    %v2705 = vsel %vm64, %v2690, %v2692
    %v2706 = vsel %vm64, %v2692, %v2694
    %v2707 = vsel %vm64, %v2694, %v2696
    %v2708 = vsel %vm64, %v2696, %v2698
    %v2709 = vsel %vm64, %v2698, %v2700
    %v2710 = vsel %vm64, %v2700, %v2702
    %v2711 = vsel %vm64, %v2702, %v2704
    %v2719 = vmax.f32 %v2666, %v2705
    %v2720 = vmax.f32 %v2667, %v2706
    %v2721 = vmax.f32 %v2668, %v2707
    %v2722 = vmax.f32 %v2669, %v2708
    %v2723 = vmax.f32 %v2670, %v2709
    %v2724 = vmax.f32 %v2671, %v2710
    %v2725 = vmax.f32 %v2672, %v2711
    %2733 = vrot.lane.b32.xlu0 %v2719, 56
    %v2734 = vpop.permute.xlu0 %2733
    %2735 = vrot.lane.b32.xlu0 %v2720, 56
    %v2736 = vpop.permute.xlu0 %2735
    %2737 = vrot.lane.b32.xlu0 %v2721, 56
    %v2738 = vpop.permute.xlu0 %2737
    %2739 = vrot.lane.b32.xlu0 %v2722, 56
    %v2740 = vpop.permute.xlu0 %2739
    %2741 = vrot.lane.b32.xlu0 %v2723, 56
    %v2742 = vpop.permute.xlu0 %2741
    %2743 = vrot.lane.b32.xlu0 %v2724, 56
    %v2744 = vpop.permute.xlu0 %2743
    %2745 = vrot.lane.b32.xlu0 %v2725, 56
    %v2746 = vpop.permute.xlu0 %2745
    %vm2747 = vcmask 457728
    %v2748 = vsel %vm2747, %v2734, %v2736
    %v2749 = vsel %vm2747, %v2736, %v2738
    %v2750 = vsel %vm2747, %v2738, %v2740
    %v2751 = vsel %vm2747, %v2740, %v2742
    %v2752 = vsel %vm2747, %v2742, %v2744
    %v2753 = vsel %vm2747, %v2744, %v2746
    %2761 = vst [vmem:[#allocation5 + $0x38] sm:$0xff] %v2748
    %2762 = vst [vmem:[#allocation5 + $0x40] sm:$0xff] %v2749
    %2763 = vst [vmem:[#allocation5 + $0x48] sm:$0xff] %v2750
    %2764 = vst [vmem:[#allocation5 + $0x50] sm:$0xff] %v2751
    %2765 = vst [vmem:[#allocation5 + $0x58] sm:$0xff] %v2752
    %2766 = vst [vmem:[#allocation5 + $0x60] sm:$0xff] %v2753
    %2767 = vst.msk [vmem:[#allocation5 + $0x68] sm:$0xff] %vm189, %v2746
    %v2768 = vld [vmem:[#allocation5] sm:$0xff]
    %v2769 = vld [vmem:[#allocation5 + $0x8] sm:$0xff]
    %v2770 = vld [vmem:[#allocation5 + $0x10] sm:$0xff]
    %v2771 = vld [vmem:[#allocation5 + $0x18] sm:$0xff]
    %v2772 = vld [vmem:[#allocation5 + $0x20] sm:$0xff]
    %v2773 = vld [vmem:[#allocation5 + $0x28] sm:$0xff]
    %v2774 = vld [vmem:[#allocation5 + $0x30] sm:$0xff]
    %v2775 = vld [vmem:[#allocation5 + $0x38] sm:$0xff]
    %v2776 = vld [vmem:[#allocation5 + $0x40] sm:$0xff]
    %v2777 = vld [vmem:[#allocation5 + $0x48] sm:$0xff]
    %v2778 = vld [vmem:[#allocation5 + $0x50] sm:$0xff]
    %v2779 = vld [vmem:[#allocation5 + $0x58] sm:$0xff]
    %v2780 = vld [vmem:[#allocation5 + $0x60] sm:$0xff]
    %v2781 = vld [vmem:[#allocation5 + $0x68] sm:$0xff]
    %v2782 = vld [vmem:[%s6] sm:$0xff]
    %v2783 = vld [vmem:[%s6 + $0x8] sm:$0xff]
    %v2784 = vld [vmem:[%s6 + $0x10] sm:$0xff]
    %v2785 = vld [vmem:[%s6 + $0x18] sm:$0xff]
    %v2786 = vld [vmem:[%s6 + $0x20] sm:$0xff]
    %v2787 = vld [vmem:[%s6 + $0x28] sm:$0xff]
    %v2788 = vld [vmem:[%s6 + $0x30] sm:$0xff]
    %v2789 = vld [vmem:[%s6 + $0x38] sm:$0xff]
    %v2790 = vld [vmem:[%s6 + $0x40] sm:$0xff]
    %v2791 = vld [vmem:[%s6 + $0x48] sm:$0xff]
    %v2792 = vld [vmem:[%s6 + $0x50] sm:$0xff]
    %v2793 = vld [vmem:[%s6 + $0x58] sm:$0xff]
    %v2794 = vld [vmem:[%s6 + $0x60] sm:$0xff]
    %v2795 = vld [vmem:[%s6 + $0x68] sm:$0xff]
    %v2796 = vld [vmem:[%s6 + $0x70] sm:$0xff]
    %v2797 = vld [vmem:[%s6 + $0x78] sm:$0xff]
    %v2798 = vld [vmem:[%s6 + $0x80] sm:$0xff]
    %v2799 = vld [vmem:[%s6 + $0x88] sm:$0xff]
    %v2800 = vld [vmem:[%s6 + $0x90] sm:$0xff]
    %v2801 = vld [vmem:[%s6 + $0x98] sm:$0xff]
    %v2802 = vld [vmem:[%s6 + $0xa0] sm:$0xff]
    %v2803 = vld [vmem:[%s6 + $0xa8] sm:$0xff]
    %v2804 = vld [vmem:[%s6 + $0xb0] sm:$0xff]
    %v2805 = vld [vmem:[%s6 + $0xb8] sm:$0xff]
    %v2806 = vld [vmem:[%s6 + $0xc0] sm:$0xff]
    %v2807 = vld [vmem:[%s6 + $0xc8] sm:$0xff]
    %v2808 = vld [vmem:[%s6 + $0xd0] sm:$0xff]
    %v2809 = vld [vmem:[%s6 + $0xd8] sm:$0xff]
    %v2810 = vld [vmem:[%s6 + $0xe0] sm:$0xff]
    %v2811 = vld [vmem:[%s6 + $0xe8] sm:$0xff]
    %v2812 = vld [vmem:[%s6 + $0xf0] sm:$0xff]
    %v2813 = vld [vmem:[%s6 + $0xf8] sm:$0xff]
    %v2814 = vld [vmem:[%s6 + $0x100] sm:$0xff]
    %v2815 = vld [vmem:[%s6 + $0x108] sm:$0xff]
    %v2816 = vld [vmem:[%s6 + $0x110] sm:$0xff]
    %v2817 = vld [vmem:[%s6 + $0x118] sm:$0xff]
    %v2818 = vld [vmem:[%s6 + $0x120] sm:$0xff]
    %v2819 = vld [vmem:[%s6 + $0x128] sm:$0xff]
    %v2820 = vld [vmem:[%s6 + $0x130] sm:$0xff]
    %v2821 = vld [vmem:[%s6 + $0x138] sm:$0xff]
    %v2822 = vld [vmem:[%s6 + $0x140] sm:$0xff]
    %v2823 = vld [vmem:[%s6 + $0x148] sm:$0xff]
    %v2824 = vld [vmem:[%s6 + $0x150] sm:$0xff]
    %v2825 = vld [vmem:[%s6 + $0x158] sm:$0xff]
    %v2826 = vld [vmem:[%s6 + $0x160] sm:$0xff]
    %v2827 = vld [vmem:[%s6 + $0x168] sm:$0xff]
    %v2828 = vld [vmem:[%s6 + $0x170] sm:$0xff]
    %v2829 = vld [vmem:[%s6 + $0x178] sm:$0xff]
    %v2830 = vld [vmem:[%s6 + $0x180] sm:$0xff]
    %v2831 = vld [vmem:[%s6 + $0x188] sm:$0xff]
    %v2832 = vld [vmem:[%s6 + $0x190] sm:$0xff]
    %v2833 = vld [vmem:[%s6 + $0x198] sm:$0xff]
    %v2834 = vld [vmem:[%s6 + $0x1a0] sm:$0xff]
    %v2835 = vld [vmem:[%s6 + $0x1a8] sm:$0xff]
    %v2836 = vld [vmem:[%s6 + $0x1b0] sm:$0xff]
    %v2837 = vld [vmem:[%s6 + $0x1b8] sm:$0xff]
    %v2838 = vld [vmem:[%s6 + $0x1c0] sm:$0xff]
    %v2839 = vld [vmem:[%s6 + $0x1c8] sm:$0xff]
    %v2840 = vld [vmem:[%s6 + $0x1d0] sm:$0xff]
    %v2841 = vld [vmem:[%s6 + $0x1d8] sm:$0xff]
    %v2842 = vld [vmem:[%s6 + $0x1e0] sm:$0xff]
    %v2843 = vld [vmem:[%s6 + $0x1e8] sm:$0xff]
    %v2844 = vld [vmem:[%s6 + $0x1f0] sm:$0xff]
    %v2845 = vld [vmem:[%s6 + $0x1f8] sm:$0xff]
    %v2846 = vld [vmem:[%s6 + $0x200] sm:$0xff]
    %v2847 = vld [vmem:[%s6 + $0x208] sm:$0xff]
    %v2848 = vld [vmem:[%s6 + $0x210] sm:$0xff]
    %v2849 = vld [vmem:[%s6 + $0x218] sm:$0xff]
    %v2850 = vld [vmem:[%s6 + $0x220] sm:$0xff]
    %v2851 = vld [vmem:[%s6 + $0x228] sm:$0xff]
    %v2852 = vld [vmem:[%s6 + $0x230] sm:$0xff]
    %v2853 = vld [vmem:[%s6 + $0x238] sm:$0xff]
    %v2854 = vld [vmem:[%s6 + $0x240] sm:$0xff]
    %v2855 = vld [vmem:[%s6 + $0x248] sm:$0xff]
    %v2856 = vld [vmem:[%s6 + $0x250] sm:$0xff]
    %v2857 = vld [vmem:[%s6 + $0x258] sm:$0xff]
    %v2858 = vld [vmem:[%s6 + $0x260] sm:$0xff]
    %v2859 = vld [vmem:[%s6 + $0x268] sm:$0xff]
    %v2860 = vld [vmem:[%s6 + $0x270] sm:$0xff]
    %v2861 = vld [vmem:[%s6 + $0x278] sm:$0xff]
    %v2862 = vld [vmem:[%s6 + $0x280] sm:$0xff]
    %v2863 = vld [vmem:[%s6 + $0x288] sm:$0xff]
    %v2864 = vld [vmem:[%s6 + $0x290] sm:$0xff]
    %v2865 = vld [vmem:[%s6 + $0x298] sm:$0xff]
    %v2866 = vld [vmem:[%s6 + $0x2a0] sm:$0xff]
    %v2867 = vld [vmem:[%s6 + $0x2a8] sm:$0xff]
    %v2868 = vld [vmem:[%s6 + $0x2b0] sm:$0xff]
    %v2869 = vld [vmem:[%s6 + $0x2b8] sm:$0xff]
    %v2870 = vld [vmem:[%s6 + $0x2c0] sm:$0xff]
    %v2871 = vld [vmem:[%s6 + $0x2c8] sm:$0xff]
    %v2872 = vld [vmem:[%s6 + $0x2d0] sm:$0xff]
    %v2873 = vld [vmem:[%s6 + $0x2d8] sm:$0xff]
    %v2874 = vld [vmem:[%s6 + $0x2e0] sm:$0xff]
    %v2875 = vld [vmem:[%s6 + $0x2e8] sm:$0xff]
    %v2876 = vld [vmem:[%s6 + $0x2f0] sm:$0xff]
    %v2877 = vld [vmem:[%s6 + $0x2f8] sm:$0xff]
    %v2878 = vld [vmem:[%s6 + $0x300] sm:$0xff]
    %v2879 = vld [vmem:[%s6 + $0x308] sm:$0xff]
    %v2880 = vld [vmem:[%s6 + $0x310] sm:$0xff]
    %v2881 = vld [vmem:[%s6 + $0x318] sm:$0xff]
    %v2882 = vld [vmem:[%s6 + $0x320] sm:$0xff]
    %v2884 = vsel %vm189, %v2774, 0
    %v2887 = vsel %vm189, %v2781, 0
    %2889 = vmatprep.subr.mxu0 0.0
    %2890 = vmatpush1.msra.mxu0 %v2782
    %2891 = vmatprep.subr.mxu0 0.0
    %2892 = vmatpush1.msra.mxu0 %v2783
    %2893 = vmatprep.subr.mxu0 0.0
    %2894 = vmatpush1.msra.mxu0 %v2784
    %2895 = vmatprep.subr.mxu0 0.0
    %2896 = vmatpush1.msra.mxu0 %v2785
    %2897 = vmatprep.subr.mxu0 0.0
    %2898 = vmatpush1.msra.mxu0 %v2786
    %2899 = vmatprep.subr.mxu0 0.0
    %2900 = vmatpush1.msra.mxu0 %v2787
    %2901 = vmatprep.subr.mxu0 0.0
    %2902 = vmatpush1.msra.mxu0 %v2788
    %2903 = vmatprep.subr.mxu0 0.0
    %2904 = vmatpush1.msra.mxu0 %v2789
    %2905 = vmatprep.subr.mxu0 0.0
    %2906 = vmatpush1.msra.mxu0 %v2790
    %2907 = vmatprep.subr.mxu0 0.0
    %2908 = vmatpush1.msra.mxu0 %v2791
    %2909 = vmatprep.subr.mxu0 0.0
    %2910 = vmatpush1.msra.mxu0 %v2792
    %2911 = vmatprep.subr.mxu0 0.0
    %2912 = vmatpush1.msra.mxu0 %v2793
    %2913 = vmatprep.subr.mxu0 0.0
    %2914 = vmatpush1.msra.mxu0 %v2794
    %2915 = vmatprep.subr.mxu0 0.0
    %2916 = vmatpush1.msra.mxu0 %v2795
    %2917 = vmatprep.subr.mxu0 0.0
    %2918 = vmatpush1.msra.mxu0 %v2796
    %2919 = vmatprep.subr.mxu0 0.0
    %2920 = vmatpush1.msra.mxu0 %v2797
    %2921 = vmatprep.subr.mxu0 0.0
    %2922 = vmatpush1.msra.mxu0 %v2798
    %2923 = vmatprep.subr.mxu0 0.0
    %2924 = vmatpush1.msra.mxu0 %v2799
    %2925 = vmatprep.subr.mxu0 0.0
    %2926 = vmatpush1.msra.mxu0 %v2800
    %2927 = vmatprep.subr.mxu0 0.0
    %2928 = vmatpush1.msra.mxu0 %v2801
    %2929 = vmatprep.subr.mxu0 0.0
    %2930 = vmatpush1.msra.mxu0 %v2802
    %2931 = vmatprep.subr.mxu0 0.0
    %2932 = vmatpush1.msra.mxu0 %v2803
    %2933 = vmatprep.subr.mxu0 0.0
    %2934 = vmatpush1.msra.mxu0 %v2804
    %2935 = vmatprep.subr.mxu0 0.0
    %2936 = vmatpush1.msra.mxu0 %v2805
    %2937 = vmatprep.subr.mxu0 0.0
    %2938 = vmatpush1.msra.mxu0 %v2806
    %2939 = vmatprep.subr.mxu0 0.0
    %2940 = vmatpush1.msra.mxu0 %v2807
    %2941 = vmatprep.subr.mxu0 0.0
    %2942 = vmatpush1.msra.mxu0 %v2808
    %2943 = vmatprep.subr.mxu0 0.0
    %2944 = vmatpush1.msra.mxu0 %v2809
    %2945 = vmatprep.subr.mxu0 0.0
    %2946 = vmatpush1.msra.mxu0 %v2810
    %2947 = vmatprep.subr.mxu0 0.0
    %2948 = vmatpush1.msra.mxu0 %v2811
    %2949 = vmatprep.subr.mxu0 0.0
    %2950 = vmatpush1.msra.mxu0 %v2812
    %2951 = vmatprep.subr.mxu0 0.0
    %2952 = vmatpush1.msra.mxu0 %v2813
    %2953 = vmatprep.mubr.f32.mxu0 %v2769
    %2954 = vmatmul.mubr.f32.gmra.mrb[0].mxu0 %v2768
    %v2955 = vpop.f32.mrb[0].mxu0
    %v2956 = vadd.f32 0.0, %v2955
    %v2957 = vpop.f32.mrb[0].mxu0
    %2958 = vmatprep.mubr.f32.mxu0 %v2776
    %2959 = vmatmul.mubr.f32.gmra.mrb[0].mxu0 %v2775
    %v2960 = vpop.f32.mrb[0].mxu0
    %v2961 = vadd.f32 0.0, %v2960
    %v2962 = vpop.f32.mrb[0].mxu0
    %2963 = vdwg.mxu0
    %2964 = vmatprep.subr.mxu0 0.0
    %2965 = vmatpush1.msra.mxu0 %v2814
    %2966 = vmatprep.subr.mxu0 0.0
    %2967 = vmatpush1.msra.mxu0 %v2815
    %2968 = vmatprep.subr.mxu0 0.0
    %2969 = vmatpush1.msra.mxu0 %v2816
    %2970 = vmatprep.subr.mxu0 0.0
    %2971 = vmatpush1.msra.mxu0 %v2817
    %2972 = vmatprep.subr.mxu0 0.0
    %2973 = vmatpush1.msra.mxu0 %v2818
    %2974 = vmatprep.subr.mxu0 0.0
    %2975 = vmatpush1.msra.mxu0 %v2819
    %2976 = vmatprep.subr.mxu0 0.0
    %2977 = vmatpush1.msra.mxu0 %v2820
    %2978 = vmatprep.subr.mxu0 0.0
    %2979 = vmatpush1.msra.mxu0 %v2821
    %2980 = vmatprep.subr.mxu0 0.0
    %2981 = vmatpush1.msra.mxu0 %v2822
    %2982 = vmatprep.subr.mxu0 0.0
    %2983 = vmatpush1.msra.mxu0 %v2823
    %2984 = vmatprep.subr.mxu0 0.0
    %2985 = vmatpush1.msra.mxu0 %v2824
    %2986 = vmatprep.subr.mxu0 0.0
    %2987 = vmatpush1.msra.mxu0 %v2825
    %2988 = vmatprep.subr.mxu0 0.0
    %2989 = vmatpush1.msra.mxu0 %v2826
    %2990 = vmatprep.subr.mxu0 0.0
    %2991 = vmatpush1.msra.mxu0 %v2827
    %2992 = vmatprep.subr.mxu0 0.0
    %2993 = vmatpush1.msra.mxu0 %v2828
    %2994 = vmatprep.subr.mxu0 0.0
    %2995 = vmatpush1.msra.mxu0 %v2829
    %2996 = vmatprep.subr.mxu0 0.0
    %2997 = vmatpush1.msra.mxu0 %v2830
    %2998 = vmatprep.subr.mxu0 0.0
    %2999 = vmatpush1.msra.mxu0 %v2831
    %3000 = vmatprep.subr.mxu0 0.0
    %3001 = vmatpush1.msra.mxu0 %v2832
    %3002 = vmatprep.subr.mxu0 0.0
    %3003 = vmatpush1.msra.mxu0 %v2833
    %3004 = vmatprep.subr.mxu0 0.0
    %3005 = vmatpush1.msra.mxu0 %v2834
    %3006 = vmatprep.subr.mxu0 0.0
    %3007 = vmatpush1.msra.mxu0 %v2835
    %3008 = vmatprep.subr.mxu0 0.0
    %3009 = vmatpush1.msra.mxu0 %v2836
    %3010 = vmatprep.subr.mxu0 0.0
    %3011 = vmatpush1.msra.mxu0 %v2837
    %3012 = vmatprep.subr.mxu0 0.0
    %3013 = vmatpush1.msra.mxu0 %v2838
    %3014 = vmatprep.subr.mxu0 0.0
    %3015 = vmatpush1.msra.mxu0 %v2839
    %3016 = vmatprep.subr.mxu0 0.0
    %3017 = vmatpush1.msra.mxu0 %v2840
    %3018 = vmatprep.subr.mxu0 0.0
    %3019 = vmatpush1.msra.mxu0 %v2841
    %3020 = vmatprep.subr.mxu0 0.0
    %3021 = vmatpush1.msra.mxu0 %v2842
    %3022 = vmatprep.subr.mxu0 0.0
    %3023 = vmatpush1.msra.mxu0 %v2843
    %3024 = vmatprep.subr.mxu0 0.0
    %3025 = vmatpush1.msra.mxu0 %v2844
    %3026 = vmatprep.subr.mxu0 0.0
    %3027 = vmatpush1.msra.mxu0 %v2845
    %3028 = vmatprep.mubr.f32.mxu0 %v2771
    %3029 = vmatmul.mubr.f32.gmra.mrb[0].mxu0 %v2770
    %v3030 = vpop.f32.mrb[0].mxu0
    %v3031 = vadd.f32 %v2956, %v3030
    %v3032 = vpop.f32.mrb[0].mxu0
    %3033 = vmatprep.mubr.f32.mxu0 %v2778
    %3034 = vmatmul.mubr.f32.gmra.mrb[0].mxu0 %v2777
    %v3035 = vpop.f32.mrb[0].mxu0
    %v3036 = vadd.f32 %v2961, %v3035
    %v3037 = vpop.f32.mrb[0].mxu0
    %3038 = vdwg.mxu0
    %3039 = vmatprep.subr.mxu0 0.0
    %3040 = vmatpush1.msra.mxu0 %v2846
    %3041 = vmatprep.subr.mxu0 0.0
    %3042 = vmatpush1.msra.mxu0 %v2847
    %3043 = vmatprep.subr.mxu0 0.0
    %3044 = vmatpush1.msra.mxu0 %v2848
    %3045 = vmatprep.subr.mxu0 0.0
    %3046 = vmatpush1.msra.mxu0 %v2849
    %3047 = vmatprep.subr.mxu0 0.0
    %3048 = vmatpush1.msra.mxu0 %v2850
    %3049 = vmatprep.subr.mxu0 0.0
    %3050 = vmatpush1.msra.mxu0 %v2851
    %3051 = vmatprep.subr.mxu0 0.0
    %3052 = vmatpush1.msra.mxu0 %v2852
    %3053 = vmatprep.subr.mxu0 0.0
    %3054 = vmatpush1.msra.mxu0 %v2853
    %3055 = vmatprep.subr.mxu0 0.0
    %3056 = vmatpush1.msra.mxu0 %v2854
    %3057 = vmatprep.subr.mxu0 0.0
    %3058 = vmatpush1.msra.mxu0 %v2855
    %3059 = vmatprep.subr.mxu0 0.0
    %3060 = vmatpush1.msra.mxu0 %v2856
    %3061 = vmatprep.subr.mxu0 0.0
    %3062 = vmatpush1.msra.mxu0 %v2857
    %3063 = vmatprep.subr.mxu0 0.0
    %3064 = vmatpush1.msra.mxu0 %v2858
    %3065 = vmatprep.subr.mxu0 0.0
    %3066 = vmatpush1.msra.mxu0 %v2859
    %3067 = vmatprep.subr.mxu0 0.0
    %3068 = vmatpush1.msra.mxu0 %v2860
    %3069 = vmatprep.subr.mxu0 0.0
    %3070 = vmatpush1.msra.mxu0 %v2861
    %3071 = vmatprep.subr.mxu0 0.0
    %3072 = vmatpush1.msra.mxu0 %v2862
    %3073 = vmatprep.subr.mxu0 0.0
    %3074 = vmatpush1.msra.mxu0 %v2863
    %3075 = vmatprep.subr.mxu0 0.0
    %3076 = vmatpush1.msra.mxu0 %v2864
    %3077 = vmatprep.subr.mxu0 0.0
    %3078 = vmatpush1.msra.mxu0 %v2865
    %3079 = vmatprep.subr.mxu0 0.0
    %3080 = vmatpush1.msra.mxu0 %v2866
    %3081 = vmatprep.subr.mxu0 0.0
    %3082 = vmatpush1.msra.mxu0 %v2867
    %3083 = vmatprep.subr.mxu0 0.0
    %3084 = vmatpush1.msra.mxu0 %v2868
    %3085 = vmatprep.subr.mxu0 0.0
    %3086 = vmatpush1.msra.mxu0 %v2869
    %3087 = vmatprep.subr.mxu0 0.0
    %3088 = vmatpush1.msra.mxu0 %v2870
    %3089 = vmatprep.subr.mxu0 0.0
    %3090 = vmatpush1.msra.mxu0 %v2871
    %3091 = vmatprep.subr.mxu0 0.0
    %3092 = vmatpush1.msra.mxu0 %v2872
    %3093 = vmatprep.subr.mxu0 0.0
    %3094 = vmatpush1.msra.mxu0 %v2873
    %3095 = vmatprep.subr.mxu0 0.0
    %3096 = vmatpush1.msra.mxu0 %v2874
    %3097 = vmatprep.subr.mxu0 0.0
    %3098 = vmatpush1.msra.mxu0 %v2875
    %3099 = vmatprep.subr.mxu0 0.0
    %3100 = vmatpush1.msra.mxu0 %v2876
    %3101 = vmatprep.subr.mxu0 0.0
    %3102 = vmatpush1.msra.mxu0 %v2877
    %3103 = vmatprep.mubr.f32.mxu0 %v2773
    %3104 = vmatmul.mubr.f32.gmra.mrb[0].mxu0 %v2772
    %v3105 = vpop.f32.mrb[0].mxu0
    %v3106 = vadd.f32 %v3031, %v3105
    %v3107 = vpop.f32.mrb[0].mxu0
    %3108 = vmatprep.mubr.f32.mxu0 %v2780
    %3109 = vmatmul.mubr.f32.gmra.mrb[0].mxu0 %v2779
    %v3110 = vpop.f32.mrb[0].mxu0
    %v3111 = vadd.f32 %v3036, %v3110
    %v3112 = vpop.f32.mrb[0].mxu0
    %3113 = vdwg.mxu0
    %3114 = vmatprep.subr.mxu0 0.0
    %3115 = vmatpush1.msra.mxu0 %v2878
    %3116 = vmatprep.subr.mxu0 0.0
    %3117 = vmatpush1.msra.mxu0 %v2879
    %3118 = vmatprep.subr.mxu0 0.0
    %3119 = vmatpush1.msra.mxu0 %v2880
    %3120 = vmatprep.subr.mxu0 0.0
    %3121 = vmatpush1.msra.mxu0 %v2881
    %3122 = vmatprep.subr.mxu0 0.0
    %3123 = vmatpush1.msra.mxu0 %v2882
    %3124 = vmatprep.subr.mxu0 0.0
    %3125 = vmatpush1.msra.mxu0 0.0
    %3126 = vmatprep.subr.mxu0 0.0
    %3127 = vmatpush1.msra.mxu0 0.0
    %3128 = vmatprep.subr.mxu0 0.0
    %3129 = vmatpush1.msra.mxu0 0.0
    %3130 = vmatprep.subr.mxu0 0.0
    %3131 = vmatpush1.msra.mxu0 0.0
    %3132 = vmatprep.subr.mxu0 0.0
    %3133 = vmatpush1.msra.mxu0 0.0
    %3134 = vmatprep.subr.mxu0 0.0
    %3135 = vmatpush1.msra.mxu0 0.0
    %3136 = vmatprep.subr.mxu0 0.0
    %3137 = vmatpush1.msra.mxu0 0.0
    %3138 = vmatprep.subr.mxu0 0.0
    %3139 = vmatpush1.msra.mxu0 0.0
    %3140 = vmatprep.subr.mxu0 0.0
    %3141 = vmatpush1.msra.mxu0 0.0
    %3142 = vmatprep.subr.mxu0 0.0
    %3143 = vmatpush1.msra.mxu0 0.0
    %3144 = vmatprep.subr.mxu0 0.0
    %3145 = vmatpush1.msra.mxu0 0.0
    %3146 = vmatprep.subr.mxu0 0.0
    %3147 = vmatpush1.msra.mxu0 0.0
    %3148 = vmatprep.subr.mxu0 0.0
    %3149 = vmatpush1.msra.mxu0 0.0
    %3150 = vmatprep.subr.mxu0 0.0
    %3151 = vmatpush1.msra.mxu0 0.0
    %3152 = vmatprep.subr.mxu0 0.0
    %3153 = vmatpush1.msra.mxu0 0.0
    %3154 = vmatprep.subr.mxu0 0.0
    %3155 = vmatpush1.msra.mxu0 0.0
    %3156 = vmatprep.subr.mxu0 0.0
    %3157 = vmatpush1.msra.mxu0 0.0
    %3158 = vmatprep.subr.mxu0 0.0
    %3159 = vmatpush1.msra.mxu0 0.0
    %3160 = vmatprep.subr.mxu0 0.0
    %3161 = vmatpush1.msra.mxu0 0.0
    %3162 = vmatprep.subr.mxu0 0.0
    %3163 = vmatpush1.msra.mxu0 0.0
    %3164 = vmatprep.subr.mxu0 0.0
    %3165 = vmatpush1.msra.mxu0 0.0
    %3166 = vmatprep.subr.mxu0 0.0
    %3167 = vmatpush1.msra.mxu0 0.0
    %3168 = vmatprep.subr.mxu0 0.0
    %3169 = vmatpush1.msra.mxu0 0.0
    %3170 = vmatprep.subr.mxu0 0.0
    %3171 = vmatpush1.msra.mxu0 0.0
    %3172 = vmatprep.subr.mxu0 0.0
    %3173 = vmatpush1.msra.mxu0 0.0
    %3174 = vmatprep.subr.mxu0 0.0
    %3175 = vmatpush1.msra.mxu0 0.0
    %3176 = vmatprep.subr.mxu0 0.0
    %3177 = vmatpush1.msra.mxu0 0.0
    %3178 = vmatprep.mubr.f32.mxu0 0.0
    %3179 = vmatmul.mubr.f32.gmra.mrb[0].mxu0 %v2884
    %v3180 = vpop.f32.mrb[0].mxu0
    %v3181 = vadd.f32 %v3106, %v3180
    %v3182 = vpop.f32.mrb[0].mxu0
    %3183 = vmatprep.mubr.f32.mxu0 0.0
    %3184 = vmatmul.mubr.f32.gmra.mrb[0].mxu0 %v2887
    %v3185 = vpop.f32.mrb[0].mxu0
    %v3186 = vadd.f32 %v3111, %v3185
    %v3187 = vpop.f32.mrb[0].mxu0
    %3188 = vdwg.mxu0
    %v3189 = vld [vmem:[%s7] sm:$0x1]
    %v3190 = vadd.f32 %v3189, %v3181
    %v3193 = vunpack.c.l.s4 1966171168
    %v3194 = vunpack.c.0.s8 %v3193
    %v3195 = vlaneseq
    %v3196 = vshrl.u32 %v3195, 7
    %v3197 = vsub.s32 %v3194, %v3196
    %v3198 = vrot.slane %v3181, %v3197
    %v3199 = vcombine.high %v3198, %v3198
    %v3201 = vunpack.c.l.s4 1966171168
    %v3202 = vunpack.c.0.s8 %v3201
    %v3203 = vlaneseq
    %v3204 = vshrl.u32 %v3203, 7
    %v3205 = vsub.s32 %v3202, %v3204
    %v3206 = vrot.slane %v3198, %v3205
    %v3208 = vunpack.c.l.s4 1966171168
    %v3209 = vunpack.c.0.s8 %v3208
    %v3210 = vlaneseq
    %v3211 = vshrl.u32 %v3210, 7
    %v3212 = vsub.s32 %v3209, %v3211
    %v3213 = vrot.slane %v3199, %v3212
    %3214 = vrot.lane.b32.xlu0 %v3213, 118
    %v3215 = vpop.permute.xlu0 %3214
    %v3217 = vadd.f32 %v3190, %v3215
    %v3218 = vcombine.high %v3206, %v3206
    %3219 = vrot.lane.b32.xlu0 %v3218, 108
    %v3220 = vpop.permute.xlu0 %3219
    %v3222 = vadd.f32 %v3217, %v3220
    %v3223 = vcombine.high %v3213, %v3213
    %3224 = vrot.lane.b32.xlu0 %v3223, 98
    %v3225 = vpop.permute.xlu0 %3224
    %v3227 = vadd.f32 %v3222, %v3225
    %v3228 = vcombine.high %v3181, %v3181
    %v3230 = vunpack.c.l.s4 1966171168
    %v3231 = vunpack.c.0.s8 %v3230
    %v3232 = vlaneseq
    %v3233 = vshrl.u32 %v3232, 7
    %v3234 = vsub.s32 %v3231, %v3233
    %v3235 = vrot.slane %v3228, %v3234
    %v3237 = vunpack.c.l.s4 1966171168
    %v3238 = vunpack.c.0.s8 %v3237
    %v3239 = vlaneseq
    %v3240 = vshrl.u32 %v3239, 7
    %v3241 = vsub.s32 %v3238, %v3240
    %v3242 = vrot.slane %v3235, %v3241
    %3243 = vrot.lane.b32.xlu0 %v3242, 88
    %v3244 = vpop.permute.xlu0 %3243
    %v3246 = vadd.f32 %v3227, %v3244
    %v3247 = vcombine.high %v3235, %v3235
    %v3249 = vunpack.c.l.s4 1966171168
    %v3250 = vunpack.c.0.s8 %v3249
    %v3251 = vlaneseq
    %v3252 = vshrl.u32 %v3251, 7
    %v3253 = vsub.s32 %v3250, %v3252
    %v3254 = vrot.slane %v3247, %v3253
    %3255 = vrot.lane.b32.xlu0 %v3254, 78
    %v3256 = vpop.permute.xlu0 %3255
    %v3258 = vadd.f32 %v3246, %v3256
    %v3259 = vcombine.high %v3242, %v3242
    %3260 = vrot.lane.b32.xlu0 %v3259, 68
    %v3261 = vpop.permute.xlu0 %3260
    %v3263 = vadd.f32 %v3258, %v3261
    %v3264 = vcombine.high %v3254, %v3254
    %3265 = vrot.lane.b32.xlu0 %v3264, 58
    %v3266 = vpop.permute.xlu0 %3265
    %v3268 = vadd.f32 %v3263, %v3266
    %vm3269 = vcmask 73728
    %3270 = vst.msk [vmem:[#allocation6] sm:$0x1] %vm3269, %v3268
    %v3271 = vld [vmem:[%s7] sm:$0x1]
    %v3272 = vadd.f32 %v3271, %v3186
    %v3275 = vunpack.c.l.s4 1966171168
    %v3276 = vunpack.c.0.s8 %v3275
    %v3277 = vlaneseq
    %v3278 = vshrl.u32 %v3277, 7
    %v3279 = vsub.s32 %v3276, %v3278
    %v3280 = vrot.slane %v3186, %v3279
    %v3281 = vcombine.high %v3280, %v3280
    %v3283 = vunpack.c.l.s4 1966171168
    %v3284 = vunpack.c.0.s8 %v3283
    %v3285 = vlaneseq
    %v3286 = vshrl.u32 %v3285, 7
    %v3287 = vsub.s32 %v3284, %v3286
    %v3288 = vrot.slane %v3280, %v3287
    %v3290 = vunpack.c.l.s4 1966171168
    %v3291 = vunpack.c.0.s8 %v3290
    %v3292 = vlaneseq
    %v3293 = vshrl.u32 %v3292, 7
    %v3294 = vsub.s32 %v3291, %v3293
    %v3295 = vrot.slane %v3281, %v3294
    %3296 = vrot.lane.b32.xlu0 %v3295, 118
    %v3297 = vpop.permute.xlu0 %3296
    %v3299 = vadd.f32 %v3272, %v3297
    %v3300 = vcombine.high %v3288, %v3288
    %3301 = vrot.lane.b32.xlu0 %v3300, 108
    %v3302 = vpop.permute.xlu0 %3301
    %v3304 = vadd.f32 %v3299, %v3302
    %v3305 = vcombine.high %v3295, %v3295
    %3306 = vrot.lane.b32.xlu0 %v3305, 98
    %v3307 = vpop.permute.xlu0 %3306
    %v3309 = vadd.f32 %v3304, %v3307
    %v3310 = vcombine.high %v3186, %v3186
    %v3312 = vunpack.c.l.s4 1966171168
    %v3313 = vunpack.c.0.s8 %v3312
    %v3314 = vlaneseq
    %v3315 = vshrl.u32 %v3314, 7
    %v3316 = vsub.s32 %v3313, %v3315
    %v3317 = vrot.slane %v3310, %v3316
    %v3319 = vunpack.c.l.s4 1966171168
    %v3320 = vunpack.c.0.s8 %v3319
    %v3321 = vlaneseq
    %v3322 = vshrl.u32 %v3321, 7
    %v3323 = vsub.s32 %v3320, %v3322
    %v3324 = vrot.slane %v3317, %v3323
    %3325 = vrot.lane.b32.xlu0 %v3324, 88
    %v3326 = vpop.permute.xlu0 %3325
    %v3328 = vadd.f32 %v3309, %v3326
    %v3329 = vcombine.high %v3317, %v3317
    %v3331 = vunpack.c.l.s4 1966171168
    %v3332 = vunpack.c.0.s8 %v3331
    %v3333 = vlaneseq
    %v3334 = vshrl.u32 %v3333, 7
    %v3335 = vsub.s32 %v3332, %v3334
    %v3336 = vrot.slane %v3329, %v3335
    %3337 = vrot.lane.b32.xlu0 %v3336, 78
    %v3338 = vpop.permute.xlu0 %3337
    %v3340 = vadd.f32 %v3328, %v3338
    %v3341 = vcombine.high %v3324, %v3324
    %3342 = vrot.lane.b32.xlu0 %v3341, 68
    %v3343 = vpop.permute.xlu0 %3342
    %v3345 = vadd.f32 %v3340, %v3343
    %v3346 = vcombine.high %v3336, %v3336
    %3347 = vrot.lane.b32.xlu0 %v3346, 58
    %v3348 = vpop.permute.xlu0 %3347
    %v3350 = vadd.f32 %v3345, %v3348
    %3351 = vst.msk [vmem:[#allocation6 + $0x1] sm:$0x1] %vm3269, %v3350
    // Predicated region
    $region34: #{tpu_custom_call.1} parent=1 // pred_check
      _
    $region35: #{tpu_custom_call.1} parent=1 // pred_check_branch
      %3353 = sbr.rel (0) target = $region37
    $region36: #{tpu_custom_call.1} parent=1 // pred_region
      %s3355 = ssub.s32 32, 32
      %3356 = vsyncadd [#allocation7], %s3355
      %s3358 = sshll.u32 [#allocation6], 4
      %s3359 = int_to_ptr.vmem [resolvable:$true] %s3358
      %3361 = dma.vmem_to_hbm [thread:$0]  %s3359, 32, %s8, [#allocation7]
    $region37: #{tpu_custom_call.1} parent=1 // pred_fallthru
      _
    // Predicated region
    $region38: #{tpu_custom_call.1} parent=1 // pred_check
      _
    $region39: #{tpu_custom_call.1} parent=1 // pred_check_branch
      %3363 = sbr.rel (0) target = $region41
    $region40: #{tpu_custom_call.1} parent=1 // pred_region
      %3364 = dma.done [#allocation7], 32
    $region41: #{tpu_custom_call.1} parent=1 // pred_fallthru
      _
    %3365 = vsyncpa [#allocation7], 1

</llo_original>
